<compile_context>
chip_gen: v5e
topology: v5e:2x2
jax: 0.10.0
libtpu: 0.0.40
codegen_flags: <defaults>
</compile_context>

<pallas_src>
import functools

import jax
import jax.numpy as jnp
from jax.experimental import pallas as pl
from jax.experimental.pallas import tpu as pltpu

BN_EPS = 1e-5
BN_SCALE = 1.0 / (1.0 + BN_EPS) ** 0.5  # inference BN with init running stats

_CONV_PARAMS = pltpu.CompilerParams(
    dimension_semantics=("parallel",),
    vmem_limit_bytes=32 * 1024 * 1024,
)


# ----------------------------------------------------------------------------
# Pallas kernel bodies
# ----------------------------------------------------------------------------
def _leaky(y, slope):
    return jnp.where(y >= 0, y, slope * y)


def _conv_kernel(cols_ref, w_ref, sh_ref, o_ref, *, slope):
    # out = act(W @ cols + shift)
    y = jnp.dot(w_ref[...], cols_ref[...], preferred_element_type=jnp.float32)
    y = y + sh_ref[...]
    if slope is not None:
        y = _leaky(y, slope)
    o_ref[...] = y.astype(o_ref.dtype)


def _conv_dual_kernel(cols_ref, w_ref, sh_ref, o_ref, *, slope, cout):
    # Main conv and residual conv fused into ONE matmul: w_ref rows [0:cout] are
    # the BN-folded main conv, rows [cout:2*cout] the residual conv.
    acc = jnp.dot(w_ref[...], cols_ref[...], preferred_element_type=jnp.float32)
    acc = acc + sh_ref[...]
    y = _leaky(acc[:cout], slope) + acc[cout:]
    o_ref[...] = y.astype(o_ref.dtype)


def _conv_center_res_kernel(cols_ref, w_ref, sh_ref, wr_ref, br_ref, o_ref, *,
                            slope, center_row, cin):
    # out = act(W @ cols + shift) + (Wres @ cols[center-tap rows] + bres)
    # (1x1x1 residual conv: only the centre tap of the 3x3x3 window is read.)
    cols = cols_ref[...]
    y = _leaky(jnp.dot(w_ref[...], cols, preferred_element_type=jnp.float32)
               + sh_ref[...], slope)
    ctr = cols[center_row:center_row + cin, :]
    res = jnp.dot(wr_ref[...], ctr, preferred_element_type=jnp.float32) + br_ref[...]
    o_ref[...] = (y + res).astype(o_ref.dtype)


def _conv_resadd_kernel(cols_ref, w_ref, sh_ref, res_ref, o_ref, *, slope):
    # out = act(W @ cols + shift) + res   (identity-residual add fused)
    y = _leaky(jnp.dot(w_ref[...], cols_ref[...], preferred_element_type=jnp.float32)
               + sh_ref[...], slope)
    o_ref[...] = (y + res_ref[...].astype(jnp.float32)).astype(o_ref.dtype)


def _conv_resadd_final_kernel(cols_ref, w_ref, sh_ref, res_ref, wf_ref, o_ref, *,
                              slope):
    # Last up layer: ResidualUnit + the network's final 1x1x1 conv in one kernel.
    y = _leaky(jnp.dot(w_ref[...], cols_ref[...], preferred_element_type=jnp.float32)
               + sh_ref[...], slope)
    y = y + res_ref[...].astype(jnp.float32)
    o_ref[...] = jnp.dot(wf_ref[...], y.astype(jnp.bfloat16),
                         preferred_element_type=jnp.float32).astype(o_ref.dtype)


def _se_kernel(d_ref, wsel_ref, w1_ref, b1_ref, w2_ref, b2_ref, o_ref, *, n, s3):
    # Whole squeeze-excitation block in one kernel (no helper seg matrices):
    #  - feature selection: 1x1x1 conv (no bias) + BN (scale folded into wsel)
    #  - refinement ResConvBlock is the identity in the reference (ternary quirk)
    #  - attention: per-sample global average pool (masked lane reduction),
    #    2-layer MLP + skip, sigmoid gate, combine, LeakyReLU(0.2).
    sel = jnp.dot(wsel_ref[...], d_ref[...], preferred_element_type=jnp.float32)  # (f, M)
    idx = jax.lax.broadcasted_iota(jnp.int32, sel.shape, 1)
    gate_full = jnp.zeros_like(sel)
    inv_s3 = 1.0 / s3
    for i in range(n):                                   # n is tiny (batch per path)
        seg = jnp.logical_and(idx >= i * s3, idx < (i + 1) * s3)
        pool_i = jnp.sum(jnp.where(seg, sel, 0.0), axis=-1, keepdims=True) * inv_s3
        h = _leaky(jnp.dot(w1_ref[...], pool_i, preferred_element_type=jnp.float32)
                   + b1_ref[...], 0.2)
        pre = pool_i + jnp.dot(w2_ref[...], h, preferred_element_type=jnp.float32) \
              + b2_ref[...]
        gate_full = jnp.where(seg, jax.nn.sigmoid(pre), gate_full)
    y = sel * gate_full + sel
    o_ref[...] = _leaky(y, 0.2).astype(o_ref.dtype)


# ----------------------------------------------------------------------------
# pallas_call wrappers
# ----------------------------------------------------------------------------
def _pick_tm(m):
    # Largest 128-multiple tile giving >= 2 grid steps (so the "parallel" axis
    # actually splits across v7x's two TensorCores), else a single full block.
    for tm in (1024, 512, 256, 128):
        if m % tm == 0 and m // tm >= 2:
            return tm
    return m


def conv_matmul(cols, w, shift, *, slope=None, out_dtype=jnp.bfloat16,
                dual_split=None, wres=None, bres=None, center_row=None,
                res=None, wfinal=None):
    """Lane-dense fused conv matmul over im2col columns (K, M).

    Modes (mutually exclusive extras):
      dual_split=Cout        w = [w_main; w_res] stacked along Cout -> single
                             matmul, out = act(main) + res        (rk == k)
      wres/bres/center_row   1x1x1 residual conv on the centre-tap rows of cols
      res (+ wfinal)         identity-residual add; optionally fold the final
                             1x1x1 conv so only its (1, M) output leaves VMEM
    """
    K, M = cols.shape
    tm = _pick_tm(M)
    grid = (M // tm,)

    cols_spec = pl.BlockSpec((K, tm), lambda i: (0, i))
    full = lambda a: pl.BlockSpec(a.shape, lambda i: (0,) * a.ndim)

    in_specs = [cols_spec, full(w), full(shift)]
    args = [cols, w, shift]

    if dual_split is not None:
        cout = dual_split
        kern = functools.partial(_conv_dual_kernel, slope=slope, cout=cout)
    elif wres is not None:
        cout = w.shape[0]
        kern = functools.partial(_conv_center_res_kernel, slope=slope,
                                 center_row=center_row, cin=wres.shape[1])
        in_specs += [full(wres), full(bres)]
        args += [wres, bres]
    elif res is not None:
        cout = w.shape[0]
        in_specs += [pl.BlockSpec((res.shape[0], tm), lambda i: (0, i))]
        args += [res]
        if wfinal is not None:
            cout = wfinal.shape[0]
            kern = functools.partial(_conv_resadd_final_kernel, slope=slope)
            in_specs += [full(wfinal)]
            args += [wfinal]
        else:
            kern = functools.partial(_conv_resadd_kernel, slope=slope)
    else:
        cout = w.shape[0]
        kern = functools.partial(_conv_kernel, slope=slope)

    out_spec = pl.BlockSpec((cout, tm), lambda i: (0, i))
    return pl.pallas_call(
        kern,
        out_shape=jax.ShapeDtypeStruct((cout, M), out_dtype),
        grid=grid,
        in_specs=in_specs,
        out_specs=out_spec,
        compiler_params=_CONV_PARAMS,
    )(*args)


def _im2col(x, k, stride, pad):
    """x: (C, N, D, H, W) -> cols (k^3*C, N*Do*Ho*Wo) bf16, TAP-major / C-minor.

    Row index = tap*C + c with tap = kd*k*k + kh*k + kw, so the centre-tap rows
    are the contiguous block [((k^3)//2)*C, ((k^3)//2+1)*C).  Matches
    weight.transpose(0, 2, 3, 4, 1).reshape(Cout, -1).
    """
    # TODO(synk): fuse this expansion into the conv kernel (halo-tiled VMEM slab)
    # for production volume sizes; at these toy shapes the glue tensors are tiny.
    C, N, D, H, W = x.shape
    xp = jnp.pad(x.astype(jnp.bfloat16),
                 ((0, 0), (0, 0), (pad, pad), (pad, pad), (pad, pad)))
    Do = (D + 2 * pad - k) // stride + 1
    Ho = (H + 2 * pad - k) // stride + 1
    Wo = (W + 2 * pad - k) // stride + 1
    taps = []
    for kd in range(k):
        for kh in range(k):
            for kw in range(k):
                taps.append(xp[:, :,
                               kd:kd + stride * (Do - 1) + 1:stride,
                               kh:kh + stride * (Ho - 1) + 1:stride,
                               kw:kw + stride * (Wo - 1) + 1:stride])
    cols = jnp.stack(taps, axis=0)                  # (k^3, C, N, Do, Ho, Wo)
    return cols.reshape(k ** 3 * C, N * Do * Ho * Wo), (Do, Ho, Wo)


def _fold_w(w):
    # (Cout, Cin, k, k, k) -> (Cout, k^3*Cin) with tap-major / Cin-minor columns.
    cout = w.shape[0]
    return jnp.transpose(w, (0, 2, 3, 4, 1)).reshape(cout, -1)


# ----------------------------------------------------------------------------
# UNet3D blocks (channels-leading layout (C, N, D, H, W), bf16 activations)
# ----------------------------------------------------------------------------
def down_residual_unit(x, p, stride):
    # MONAI ResidualUnit, subunits=1: PReLU(BN(conv(x))) + residual_conv(x).
    cout, cin, k = p["conv_w"].shape[:3]
    cols, (Do, Ho, Wo) = _im2col(x, k, stride, k // 2)
    w = _fold_w(p["conv_w"]) * BN_SCALE
    sh = (p["conv_b"] * BN_SCALE).reshape(cout, 1).astype(jnp.float32)
    rk = p["res_w"].shape[-1]
    if rk == k:
        # Main + residual conv share the tap window: ONE (2*Cout, K) matmul.
        wr = _fold_w(p["res_w"])
        wcat = jnp.concatenate([w, wr], axis=0).astype(jnp.bfloat16)
        shcat = jnp.concatenate(
            [sh, p["res_b"].reshape(cout, 1).astype(jnp.float32)], axis=0)
        y = conv_matmul(cols, wcat, shcat, slope=0.25, dual_split=cout)
    else:
        # 1x1x1 residual conv: second matmul over the centre-tap rows only.
        wr = p["res_w"][:, :, 0, 0, 0].astype(jnp.bfloat16)          # (Cout, Cin)
        y = conv_matmul(cols, w.astype(jnp.bfloat16), sh, slope=0.25,
                        wres=wr,
                        bres=p["res_b"].reshape(cout, 1).astype(jnp.float32),
                        center_row=((k ** 3) // 2) * cin)
    return y.reshape(cout, x.shape[1], Do, Ho, Wo)


def se_block(a, b, p):
    # a, b: (f, N, D, H, W).  Entire SE block in one pallas_call (no seg matrices).
    f, N = a.shape[0], a.shape[1]
    s3 = a.shape[2] * a.shape[3] * a.shape[4]
    M = N * s3
    d = jnp.concatenate([a, b], axis=0).reshape(2 * f, M).astype(jnp.bfloat16)
    wsel = (p["sel_w"].reshape(f, 2 * f) * BN_SCALE).astype(jnp.bfloat16)
    # TODO(synk): tile this call over M (pool pass + gate pass) for production
    # volume sizes; at toy M everything fits comfortably in VMEM.
    out = pl.pallas_call(
        functools.partial(_se_kernel, n=N, s3=s3),
        out_shape=jax.ShapeDtypeStruct((f, M), jnp.bfloat16),
        compiler_params=pltpu.CompilerParams(vmem_limit_bytes=32 * 1024 * 1024),
    )(d, wsel,
      p["attn_w1"], p["attn_b1"].reshape(-1, 1),
      p["attn_w2"], p["attn_b2"].reshape(-1, 1))
    return out.reshape(a.shape)


_PHASE_KIDX = {(0, 0): 1, (1, 0): 2, (1, 1): 0}   # (output phase, input offset) -> tap


def _phase_weights(wt):
    # ConvTranspose3d weight (Cin, Cout, 3, 3, 3) -> (8*Cout, Cin*8) matrix:
    # row blocks are the 8 stride-2 output phases; columns index the 2x2x2 input
    # tap window (Cin-major, tap-minor), matching the up_layer col construction.
    # Valid only for k=3, stride=2, padding=1, output_padding=1.
    cin, cout = wt.shape[0], wt.shape[1]
    blocks = []
    for pd in range(2):
        for ph in range(2):
            for pw in range(2):
                wp = jnp.zeros((cout, cin, 2, 2, 2), wt.dtype)
                for a in range(2):
                    for b in range(2):
                        for c in range(2):
                            kd = _PHASE_KIDX.get((pd, a))
                            kh = _PHASE_KIDX.get((ph, b))
                            kw = _PHASE_KIDX.get((pw, c))
                            if kd is None or kh is None or kw is None:
                                continue
                            wp = wp.at[:, :, a, b, c].set(wt[:, :, kd, kh, kw].T)
                blocks.append(wp.reshape(cout, cin * 8))
    return jnp.concatenate(blocks, axis=0)


def up_layer(x, p, final_w=None):
    # Convolution(is_transposed=True, k=3, s=2, pad=1, output_pad=1) + BN + PReLU,
    # then ResidualUnit(stride 1): conv3 + BN + PReLU + identity residual (fused).
    # If final_w is given the network's final 1x1x1 conv is folded into the
    # ResidualUnit kernel and only the 1-channel result is emitted.
    cin, cout = p["up_w"].shape[0], p["up_w"].shape[1]
    N, Sd, Sh, Sw = x.shape[1], x.shape[2], x.shape[3], x.shape[4]
    # ---- phase-decomposed transposed conv: all 8 phases in one matmul ----
    xp = jnp.pad(x.astype(jnp.bfloat16), ((0, 0), (0, 0), (0, 1), (0, 1), (0, 1)))
    taps = [xp[:, :, a:a + Sd, b:b + Sh, c:c + Sw]
            for a in range(2) for b in range(2) for c in range(2)]
    cols = jnp.stack(taps, axis=1).reshape(cin * 8, N * Sd * Sh * Sw)
    w_all = (_phase_weights(p["up_w"]) * BN_SCALE).astype(jnp.bfloat16)
    sh_all = jnp.tile((p["up_b"] * BN_SCALE).reshape(cout, 1), (8, 1)).astype(jnp.float32)
    yph = conv_matmul(cols, w_all, sh_all, slope=0.25)            # (8*cout, M) bf16
    y = yph.reshape(2, 2, 2, cout, N, Sd, Sh, Sw)
    y = y.transpose(3, 4, 5, 0, 6, 1, 7, 2).reshape(cout, N, 2 * Sd, 2 * Sh, 2 * Sw)
    # TODO(synk): make the following im2col phase-aware to skip this XLA interleave.
    # ---- ResidualUnit with the identity-residual add fused into the kernel ----
    cols2, (Do, Ho, Wo) = _im2col(y, 3, 1, 1)
    w2 = (_fold_w(p["ru_w"]) * BN_SCALE).astype(jnp.bfloat16)
    sh2 = (p["ru_b"] * BN_SCALE).reshape(cout, 1).astype(jnp.float32)
    res = y.reshape(cout, -1)                                     # bf16
    if final_w is not None:
        wf = final_w.reshape(1, cout).astype(jnp.bfloat16)
        out = conv_matmul(cols2, w2, sh2, slope=0.25, res=res, wfinal=wf,
                          out_dtype=jnp.float32)
        return out.reshape(1, N, Do, Ho, Wo)
    out = conv_matmul(cols2, w2, sh2, slope=0.25, res=res)
    return out.reshape(cout, N, Do, Ho, Wo)


def unet3d_forward(params, x1, x2):
    # NCDHW -> channels-leading (C, N, D, H, W); batch both encoder inputs.
    xa = jnp.transpose(x1, (1, 0, 2, 3, 4))
    xb = jnp.transpose(x2, (1, 0, 2, 3, 4))
    N = xa.shape[1]
    x = jnp.concatenate([xa, xb], axis=1).astype(jnp.bfloat16)

    n_down = len(params["down"])
    outs = []
    out = x
    for i, p in enumerate(params["down"]):
        out = down_residual_unit(out, p, stride=2 if i != n_down - 1 else 1)
        outs.append(out)
    outs = list(reversed(outs))

    # TODO(synk): fuse the deepest down layer + its SE + the first up stage into
    # one kernel to fix lane sparsity at M=16..32.
    merged = [se_block(o[:, :N], o[:, N:], params["se"][i]) for i, o in enumerate(outs)]

    last = len(merged) - 1
    up = up_layer(jnp.concatenate([merged[0], merged[1]], axis=0), params["up"][0],
                  final_w=params["final_w"] if last == 1 else None)
    for i in range(2, len(merged)):
        up = up_layer(jnp.concatenate([up, merged[i]], axis=0), params["up"][i - 1],
                      final_w=params["final_w"] if i == last else None)

    # final 1x1x1 conv is fused into the last up layer's kernel
    return jnp.transpose(up.astype(jnp.float32), (1, 0, 2, 3, 4))


# ----------------------------------------------------------------------------
# Deterministic parameter initialization (synthetic, kaiming-like)
# ----------------------------------------------------------------------------
def init_params(key, in_channels=1, channels=(4, 8, 16)):
    def nrm(k, shape, fan_in):
        std = (2.0 / fan_in) ** 0.5
        return std * jax.random.normal(k, shape, jnp.float32)

    keys = iter(jax.random.split(key, 64))
    params = {"down": [], "se": [], "up": []}

    c = in_channels
    n_ch = len(channels)
    for i, ch in enumerate(channels):
        stride = 2 if i != n_ch - 1 else 1
        rk = 3 if stride != 1 else 1
        params["down"].append({
            "conv_w": nrm(next(keys), (ch, c, 3, 3, 3), c * 27),
            "conv_b": 0.01 * jax.random.normal(next(keys), (ch,), jnp.float32),
            "res_w": nrm(next(keys), (ch, c, rk, rk, rk), c * rk ** 3),
            "res_b": 0.01 * jax.random.normal(next(keys), (ch,), jnp.float32),
        })
        c = ch

    rev = list(reversed(channels))
    for f in rev:
        params["se"].append({
            "sel_w": nrm(next(keys), (f, 2 * f, 1, 1, 1), 2 * f),
            "attn_w1": nrm(next(keys), (2 * f, f), f),
            "attn_b1": 0.01 * jax.random.normal(next(keys), (2 * f,), jnp.float32),
            "attn_w2": nrm(next(keys), (f, 2 * f), 2 * f),
            "attn_b2": 0.01 * jax.random.normal(next(keys), (f,), jnp.float32),
        })

    c = channels[-1] + channels[-2]
    up_io = []
    for idx in range(2, len(rev)):
        up_io.append((c, rev[idx]))
        c = rev[idx] * 2
    up_io.append((channels[0] * 2, channels[0]))
    for cin, cout in up_io:
        params["up"].append({
            "up_w": nrm(next(keys), (cin, cout, 3, 3, 3), cin * 27),
            "up_b": 0.01 * jax.random.normal(next(keys), (cout,), jnp.float32),
            "ru_w": nrm(next(keys), (cout, cout, 3, 3, 3), cout * 27),
            "ru_b": 0.01 * jax.random.normal(next(keys), (cout,), jnp.float32),
        })

    params["final_w"] = nrm(next(keys), (1, rev[-1], 1, 1, 1), rev[-1])
    return params


if __name__ == "__main__":
    key = jax.random.PRNGKey(0)
    kp, k1, k2 = jax.random.split(key, 3)
    params = init_params(kp, in_channels=1, channels=(4, 8, 16))

    x1 = jax.random.normal(k1, (2, 1, 8, 8, 8), jnp.float32)
    x2 = jax.random.normal(k2, (2, 1, 8, 8, 8), jnp.float32)

    out = jax.jit(unet3d_forward)(params, x1, x2)
    out = jax.block_until_ready(out)
    assert out.shape == (2, 1, 8, 8, 8), out.shape
    assert bool(jnp.all(jnp.isfinite(out)))
    print("KERNEL_OK")
</pallas_src>

<mosaic_0001>
module attributes {stable_mosaic.version = 11 : i64} {
  func.func @_conv_dual_kernel(%arg0: i32, %arg1: memref<27x128xbf16, #tpu.memory_space<vmem>>, %arg2: memref<8x27xbf16, #tpu.memory_space<vmem>>, %arg3: memref<8x1xf32, #tpu.memory_space<vmem>>, %arg4: memref<4x128xbf16, #tpu.memory_space<vmem>>) attributes {dimension_semantics = [#tpu.dimension_semantics<parallel>], iteration_bounds = array<i64: 2>, scalar_prefetch = 0 : i64, scratch_operands = 0 : i64, tpu.core_type = #tpu.core_type<tc>, window_params = [{transform_indices = @transform_0, window_bounds = array<i64: 27, 128>}, {pipeline_mode = #tpu.pipeline_mode<synchronous>, transform_indices = @transform_1, window_bounds = array<i64: 8, 27>}, {pipeline_mode = #tpu.pipeline_mode<synchronous>, transform_indices = @transform_2, window_bounds = array<i64: 8, 1>}, {transform_indices = @transform_3, window_bounds = array<i64: 4, 128>}]} {
    %c0 = arith.constant 0 : index
    %c0_0 = arith.constant 0 : index
    %0 = vector.load %arg2[%c0, %c0_0] : memref<8x27xbf16, #tpu.memory_space<vmem>>, vector<8x27xbf16>
    %c0_1 = arith.constant 0 : index
    %c0_2 = arith.constant 0 : index
    %1 = vector.load %arg1[%c0_1, %c0_2] : memref<27x128xbf16, #tpu.memory_space<vmem>>, vector<27x128xbf16>
    %cst = arith.constant dense<0.000000e+00> : vector<8x128xf32>
    %2 = tpu.matmul %0, %1, %cst {dimension_numbers = #tpu.dot_dimension_numbers<[1], [0], [0], [1], [0, 0, 1, 1], [], []>} : vector<8x27xbf16>, vector<27x128xbf16>, vector<8x128xf32> -> vector<8x128xf32>
    %c0_3 = arith.constant 0 : index
    %c0_4 = arith.constant 0 : index
    %3 = vector.load %arg3[%c0_3, %c0_4] : memref<8x1xf32, #tpu.memory_space<vmem>>, vector<8x1xf32>
    %4 = vector.broadcast %3 : vector<8x1xf32> to vector<8x128xf32>
    %5 = arith.addf %2, %4 : vector<8x128xf32>
    %6 = vector.extract_strided_slice %5 {offsets = [0, 0], sizes = [4, 128], strides = [1, 1]} : vector<8x128xf32> to vector<4x128xf32>
    %cst_5 = arith.constant 0.000000e+00 : f32
    %7 = vector.broadcast %cst_5 : f32 to vector<4x128xf32>
    %8 = arith.cmpf oge, %6, %7 : vector<4x128xf32>
    %cst_6 = arith.constant 2.500000e-01 : f32
    %9 = vector.broadcast %cst_6 : f32 to vector<4x128xf32>
    %10 = arith.mulf %9, %6 : vector<4x128xf32>
    %11 = arith.select %8, %6, %10 : vector<4x128xi1>, vector<4x128xf32>
    %12 = vector.extract_strided_slice %5 {offsets = [4, 0], sizes = [4, 128], strides = [1, 1]} : vector<8x128xf32> to vector<4x128xf32>
    %13 = arith.addf %11, %12 : vector<4x128xf32>
    %14 = arith.truncf %13 : vector<4x128xf32> to vector<4x128xbf16>
    %c0_7 = arith.constant 0 : index
    %c0_8 = arith.constant 0 : index
    %15 = vector.load %arg4[%c0_7, %c0_8] : memref<4x128xbf16, #tpu.memory_space<vmem>>, vector<4x128xbf16>
    tpu.vector_store %arg4[%c0_7, %c0_8], %14 {strides = array<i32>} : memref<4x128xbf16, #tpu.memory_space<vmem>>, vector<4x128xbf16>,
    return
  }
  func.func @transform_0(%arg0: i32) -> (i32, i32) {
    %c0_i32 = arith.constant 0 : i32
    %c0_i32_0 = arith.constant 0 : i32
    return %c0_i32, %arg0 : i32, i32
  }
  func.func @transform_1(%arg0: i32) -> (i32, i32) {
    %c0_i32 = arith.constant 0 : i32
    %c0_i32_0 = arith.constant 0 : i32
    %c0_i32_1 = arith.constant 0 : i32
    return %c0_i32, %c0_i32_0 : i32, i32
  }
  func.func @transform_2(%arg0: i32) -> (i32, i32) {
    %c0_i32 = arith.constant 0 : i32
    %c0_i32_0 = arith.constant 0 : i32
    %c0_i32_1 = arith.constant 0 : i32
    return %c0_i32, %c0_i32_0 : i32, i32
  }
  func.func @transform_3(%arg0: i32) -> (i32, i32) {
    %c0_i32 = arith.constant 0 : i32
    %c0_i32_0 = arith.constant 0 : i32
    return %c0_i32, %arg0 : i32, i32
  }
}

module attributes {stable_mosaic.version = 11 : i64} {
  func.func @_conv_dual_kernel(%arg0: i32, %arg1: memref<108x32xbf16, #tpu.memory_space<vmem>>, %arg2: memref<16x108xbf16, #tpu.memory_space<vmem>>, %arg3: memref<16x1xf32, #tpu.memory_space<vmem>>, %arg4: memref<8x32xbf16, #tpu.memory_space<vmem>>) attributes {dimension_semantics = [#tpu.dimension_semantics<parallel>], iteration_bounds = array<i64: 1>, scalar_prefetch = 0 : i64, scratch_operands = 0 : i64, tpu.core_type = #tpu.core_type<tc>, window_params = [{transform_indices = @transform_0, window_bounds = array<i64: 108, 32>}, {pipeline_mode = #tpu.pipeline_mode<synchronous>, transform_indices = @transform_1, window_bounds = array<i64: 16, 108>}, {pipeline_mode = #tpu.pipeline_mode<synchronous>, transform_indices = @transform_2, window_bounds = array<i64: 16, 1>}, {transform_indices = @transform_3, window_bounds = array<i64: 8, 32>}]} {
    %c0 = arith.constant 0 : index
    %c0_0 = arith.constant 0 : index
    %0 = vector.load %arg2[%c0, %c0_0] : memref<16x108xbf16, #tpu.memory_space<vmem>>, vector<16x108xbf16>
    %c0_1 = arith.constant 0 : index
    %c0_2 = arith.constant 0 : index
    %1 = vector.load %arg1[%c0_1, %c0_2] : memref<108x32xbf16, #tpu.memory_space<vmem>>, vector<108x32xbf16>
    %cst = arith.constant dense<0.000000e+00> : vector<16x32xf32>
    %2 = tpu.matmul %0, %1, %cst {dimension_numbers = #tpu.dot_dimension_numbers<[1], [0], [0], [1], [0, 0, 1, 1], [], []>} : vector<16x108xbf16>, vector<108x32xbf16>, vector<16x32xf32> -> vector<16x32xf32>
    %c0_3 = arith.constant 0 : index
    %c0_4 = arith.constant 0 : index
    %3 = vector.load %arg3[%c0_3, %c0_4] : memref<16x1xf32, #tpu.memory_space<vmem>>, vector<16x1xf32>
    %4 = vector.broadcast %3 : vector<16x1xf32> to vector<16x32xf32>
    %5 = arith.addf %2, %4 : vector<16x32xf32>
    %6 = vector.extract_strided_slice %5 {offsets = [0, 0], sizes = [8, 32], strides = [1, 1]} : vector<16x32xf32> to vector<8x32xf32>
    %cst_5 = arith.constant 0.000000e+00 : f32
    %7 = vector.broadcast %cst_5 : f32 to vector<8x32xf32>
    %8 = arith.cmpf oge, %6, %7 : vector<8x32xf32>
    %cst_6 = arith.constant 2.500000e-01 : f32
    %9 = vector.broadcast %cst_6 : f32 to vector<8x32xf32>
    %10 = arith.mulf %9, %6 : vector<8x32xf32>
    %11 = arith.select %8, %6, %10 : vector<8x32xi1>, vector<8x32xf32>
    %12 = vector.extract_strided_slice %5 {offsets = [8, 0], sizes = [8, 32], strides = [1, 1]} : vector<16x32xf32> to vector<8x32xf32>
    %13 = arith.addf %11, %12 : vector<8x32xf32>
    %14 = arith.truncf %13 : vector<8x32xf32> to vector<8x32xbf16>
    %c0_7 = arith.constant 0 : index
    %c0_8 = arith.constant 0 : index
    %15 = vector.load %arg4[%c0_7, %c0_8] : memref<8x32xbf16, #tpu.memory_space<vmem>>, vector<8x32xbf16>
    tpu.vector_store %arg4[%c0_7, %c0_8], %14 {strides = array<i32>} : memref<8x32xbf16, #tpu.memory_space<vmem>>, vector<8x32xbf16>,
    return
  }
  func.func @transform_0(%arg0: i32) -> (i32, i32) {
    %c0_i32 = arith.constant 0 : i32
    %c0_i32_0 = arith.constant 0 : i32
    return %c0_i32, %arg0 : i32, i32
  }
  func.func @transform_1(%arg0: i32) -> (i32, i32) {
    %c0_i32 = arith.constant 0 : i32
    %c0_i32_0 = arith.constant 0 : i32
    %c0_i32_1 = arith.constant 0 : i32
    return %c0_i32, %c0_i32_0 : i32, i32
  }
  func.func @transform_2(%arg0: i32) -> (i32, i32) {
    %c0_i32 = arith.constant 0 : i32
    %c0_i32_0 = arith.constant 0 : i32
    %c0_i32_1 = arith.constant 0 : i32
    return %c0_i32, %c0_i32_0 : i32, i32
  }
  func.func @transform_3(%arg0: i32) -> (i32, i32) {
    %c0_i32 = arith.constant 0 : i32
    %c0_i32_0 = arith.constant 0 : i32
    return %c0_i32, %arg0 : i32, i32
  }
}

module attributes {stable_mosaic.version = 11 : i64} {
  func.func @_conv_center_res_kernel(%arg0: i32, %arg1: memref<216x32xbf16, #tpu.memory_space<vmem>>, %arg2: memref<16x216xbf16, #tpu.memory_space<vmem>>, %arg3: memref<16x1xf32, #tpu.memory_space<vmem>>, %arg4: memref<16x8xbf16, #tpu.memory_space<vmem>>, %arg5: memref<16x1xf32, #tpu.memory_space<vmem>>, %arg6: memref<16x32xbf16, #tpu.memory_space<vmem>>) attributes {dimension_semantics = [#tpu.dimension_semantics<parallel>], iteration_bounds = array<i64: 1>, scalar_prefetch = 0 : i64, scratch_operands = 0 : i64, tpu.core_type = #tpu.core_type<tc>, window_params = [{transform_indices = @transform_0, window_bounds = array<i64: 216, 32>}, {pipeline_mode = #tpu.pipeline_mode<synchronous>, transform_indices = @transform_1, window_bounds = array<i64: 16, 216>}, {pipeline_mode = #tpu.pipeline_mode<synchronous>, transform_indices = @transform_2, window_bounds = array<i64: 16, 1>}, {pipeline_mode = #tpu.pipeline_mode<synchronous>, transform_indices = @transform_3, window_bounds = array<i64: 16, 8>}, {pipeline_mode = #tpu.pipeline_mode<synchronous>, transform_indices = @transform_4, window_bounds = array<i64: 16, 1>}, {transform_indices = @transform_5, window_bounds = array<i64: 16, 32>}]} {
    %c0 = arith.constant 0 : index
    %c0_0 = arith.constant 0 : index
    %0 = vector.load %arg1[%c0, %c0_0] : memref<216x32xbf16, #tpu.memory_space<vmem>>, vector<216x32xbf16>
    %c0_1 = arith.constant 0 : index
    %c0_2 = arith.constant 0 : index
    %1 = vector.load %arg2[%c0_1, %c0_2] : memref<16x216xbf16, #tpu.memory_space<vmem>>, vector<16x216xbf16>
    %cst = arith.constant dense<0.000000e+00> : vector<16x32xf32>
    %2 = tpu.matmul %1, %0, %cst {dimension_numbers = #tpu.dot_dimension_numbers<[1], [0], [0], [1], [0, 0, 1, 1], [], []>} : vector<16x216xbf16>, vector<216x32xbf16>, vector<16x32xf32> -> vector<16x32xf32>
    %c0_3 = arith.constant 0 : index
    %c0_4 = arith.constant 0 : index
    %3 = vector.load %arg3[%c0_3, %c0_4] : memref<16x1xf32, #tpu.memory_space<vmem>>, vector<16x1xf32>
    %4 = vector.broadcast %3 : vector<16x1xf32> to vector<16x32xf32>
    %5 = arith.addf %2, %4 : vector<16x32xf32>
    %cst_5 = arith.constant 0.000000e+00 : f32
    %6 = vector.broadcast %cst_5 : f32 to vector<16x32xf32>
    %7 = arith.cmpf oge, %5, %6 : vector<16x32xf32>
    %cst_6 = arith.constant 2.500000e-01 : f32
    %8 = vector.broadcast %cst_6 : f32 to vector<16x32xf32>
    %9 = arith.mulf %8, %5 : vector<16x32xf32>
    %10 = arith.select %7, %5, %9 : vector<16x32xi1>, vector<16x32xf32>
    %11 = vector.extract_strided_slice %0 {offsets = [104, 0], sizes = [8, 32], strides = [1, 1]} : vector<216x32xbf16> to vector<8x32xbf16>
    %c0_7 = arith.constant 0 : index
    %c0_8 = arith.constant 0 : index
    %12 = vector.load %arg4[%c0_7, %c0_8] : memref<16x8xbf16, #tpu.memory_space<vmem>>, vector<16x8xbf16>
    %cst_9 = arith.constant dense<0.000000e+00> : vector<16x32xf32>
    %13 = tpu.matmul %12, %11, %cst_9 {dimension_numbers = #tpu.dot_dimension_numbers<[1], [0], [0], [1], [0, 0, 1, 1], [], []>} : vector<16x8xbf16>, vector<8x32xbf16>, vector<16x32xf32> -> vector<16x32xf32>
    %c0_10 = arith.constant 0 : index
    %c0_11 = arith.constant 0 : index
    %14 = vector.load %arg5[%c0_10, %c0_11] : memref<16x1xf32, #tpu.memory_space<vmem>>, vector<16x1xf32>
    %15 = vector.broadcast %14 : vector<16x1xf32> to vector<16x32xf32>
    %16 = arith.addf %13, %15 : vector<16x32xf32>
    %17 = arith.addf %10, %16 : vector<16x32xf32>
    %18 = arith.truncf %17 : vector<16x32xf32> to vector<16x32xbf16>
    %c0_12 = arith.constant 0 : index
    %c0_13 = arith.constant 0 : index
    %19 = vector.load %arg6[%c0_12, %c0_13] : memref<16x32xbf16, #tpu.memory_space<vmem>>, vector<16x32xbf16>
    tpu.vector_store %arg6[%c0_12, %c0_13], %18 {strides = array<i32>} : memref<16x32xbf16, #tpu.memory_space<vmem>>, vector<16x32xbf16>,
    return
  }
  func.func @transform_0(%arg0: i32) -> (i32, i32) {
    %c0_i32 = arith.constant 0 : i32
    %c0_i32_0 = arith.constant 0 : i32
    return %c0_i32, %arg0 : i32, i32
  }
  func.func @transform_1(%arg0: i32) -> (i32, i32) {
    %c0_i32 = arith.constant 0 : i32
    %c0_i32_0 = arith.constant 0 : i32
    %c0_i32_1 = arith.constant 0 : i32
    return %c0_i32, %c0_i32_0 : i32, i32
  }
  func.func @transform_2(%arg0: i32) -> (i32, i32) {
    %c0_i32 = arith.constant 0 : i32
    %c0_i32_0 = arith.constant 0 : i32
    %c0_i32_1 = arith.constant 0 : i32
    return %c0_i32, %c0_i32_0 : i32, i32
  }
  func.func @transform_3(%arg0: i32) -> (i32, i32) {
    %c0_i32 = arith.constant 0 : i32
    %c0_i32_0 = arith.constant 0 : i32
    %c0_i32_1 = arith.constant 0 : i32
    return %c0_i32, %c0_i32_0 : i32, i32
  }
  func.func @transform_4(%arg0: i32) -> (i32, i32) {
    %c0_i32 = arith.constant 0 : i32
    %c0_i32_0 = arith.constant 0 : i32
    %c0_i32_1 = arith.constant 0 : i32
    return %c0_i32, %c0_i32_0 : i32, i32
  }
  func.func @transform_5(%arg0: i32) -> (i32, i32) {
    %c0_i32 = arith.constant 0 : i32
    %c0_i32_0 = arith.constant 0 : i32
    return %c0_i32, %arg0 : i32, i32
  }
}

module attributes {stable_mosaic.version = 11 : i64} {
  func.func @_se_kernel(%arg0: memref<32x16xbf16, #tpu.memory_space<vmem>>, %arg1: memref<16x32xbf16, #tpu.memory_space<vmem>>, %arg2: memref<32x16xf32, #tpu.memory_space<vmem>>, %arg3: memref<32x1xf32, #tpu.memory_space<vmem>>, %arg4: memref<16x32xf32, #tpu.memory_space<vmem>>, %arg5: memref<16x1xf32, #tpu.memory_space<vmem>>, %arg6: memref<16x16xbf16, #tpu.memory_space<vmem>>) attributes {dimension_semantics = [], scalar_prefetch = 0 : i64, scratch_operands = 0 : i64, tpu.core_type = #tpu.core_type<tc>} {
    %c0 = arith.constant 0 : index
    %c0_0 = arith.constant 0 : index
    %0 = vector.load %arg1[%c0, %c0_0] : memref<16x32xbf16, #tpu.memory_space<vmem>>, vector<16x32xbf16>
    %c0_1 = arith.constant 0 : index
    %c0_2 = arith.constant 0 : index
    %1 = vector.load %arg0[%c0_1, %c0_2] : memref<32x16xbf16, #tpu.memory_space<vmem>>, vector<32x16xbf16>
    %cst = arith.constant dense<0.000000e+00> : vector<16x16xf32>
    %2 = tpu.matmul %0, %1, %cst {dimension_numbers = #tpu.dot_dimension_numbers<[1], [0], [0], [1], [0, 0, 1, 1], [], []>} : vector<16x32xbf16>, vector<32x16xbf16>, vector<16x16xf32> -> vector<16x16xf32>
    %3 = tpu.iota {dimensions = array<i32: 1>} : vector<16x16xi32>
    %cst_3 = arith.constant 0.000000e+00 : f32
    %4 = vector.broadcast %cst_3 : f32 to vector<16x16xf32>
    %c0_i32 = arith.constant 0 : i32
    %5 = vector.broadcast %c0_i32 : i32 to vector<16x16xi32>
    %6 = arith.cmpi sge, %3, %5 : vector<16x16xi32>
    %c8_i32 = arith.constant 8 : i32
    %7 = vector.broadcast %c8_i32 : i32 to vector<16x16xi32>
    %8 = arith.cmpi slt, %3, %7 : vector<16x16xi32>
    %9 = arith.andi %6, %8 : vector<16x16xi1>
    %cst_4 = arith.constant 0.000000e+00 : f32
    %10 = vector.broadcast %cst_4 : f32 to vector<16x16xf32>
    %11 = arith.select %9, %2, %10 : vector<16x16xi1>, vector<16x16xf32>
    %cst_5 = arith.constant dense<0.000000e+00> : vector<16xf32>
    %12 = vector.multi_reduction <add>, %11, %cst_5 [1] : vector<16x16xf32> to vector<16xf32>
    %13 = vector.shape_cast %12 : vector<16xf32> to vector<16x1xf32>
    %cst_6 = arith.constant 1.250000e-01 : f32
    %14 = vector.broadcast %cst_6 : f32 to vector<16x1xf32>
    %15 = arith.mulf %13, %14 : vector<16x1xf32>
    %c0_7 = arith.constant 0 : index
    %c0_8 = arith.constant 0 : index
    %16 = vector.load %arg2[%c0_7, %c0_8] : memref<32x16xf32, #tpu.memory_space<vmem>>, vector<32x16xf32>
    %cst_9 = arith.constant dense<0.000000e+00> : vector<32x1xf32>
    %17 = tpu.matmul %16, %15, %cst_9 {dimension_numbers = #tpu.dot_dimension_numbers<[1], [0], [0], [1], [0, 0, 1, 1], [], []>} : vector<32x16xf32>, vector<16x1xf32>, vector<32x1xf32> -> vector<32x1xf32>
    %c0_10 = arith.constant 0 : index
    %c0_11 = arith.constant 0 : index
    %18 = vector.load %arg3[%c0_10, %c0_11] : memref<32x1xf32, #tpu.memory_space<vmem>>, vector<32x1xf32>
    %19 = arith.addf %17, %18 : vector<32x1xf32>
    %cst_12 = arith.constant 0.000000e+00 : f32
    %20 = vector.broadcast %cst_12 : f32 to vector<32x1xf32>
    %21 = arith.cmpf oge, %19, %20 : vector<32x1xf32>
    %cst_13 = arith.constant 2.000000e-01 : f32
    %22 = vector.broadcast %cst_13 : f32 to vector<32x1xf32>
    %23 = arith.mulf %22, %19 : vector<32x1xf32>
    %24 = arith.select %21, %19, %23 : vector<32x1xi1>, vector<32x1xf32>
    %c0_14 = arith.constant 0 : index
    %c0_15 = arith.constant 0 : index
    %25 = vector.load %arg4[%c0_14, %c0_15] : memref<16x32xf32, #tpu.memory_space<vmem>>, vector<16x32xf32>
    %cst_16 = arith.constant dense<0.000000e+00> : vector<16x1xf32>
    %26 = tpu.matmul %25, %24, %cst_16 {dimension_numbers = #tpu.dot_dimension_numbers<[1], [0], [0], [1], [0, 0, 1, 1], [], []>} : vector<16x32xf32>, vector<32x1xf32>, vector<16x1xf32> -> vector<16x1xf32>
    %27 = arith.addf %15, %26 : vector<16x1xf32>
    %c0_17 = arith.constant 0 : index
    %c0_18 = arith.constant 0 : index
    %28 = vector.load %arg5[%c0_17, %c0_18] : memref<16x1xf32, #tpu.memory_space<vmem>>, vector<16x1xf32>
    %29 = arith.addf %27, %28 : vector<16x1xf32>
    %30 = arith.negf %29 : vector<16x1xf32>
    %31 = math.exp %30 : vector<16x1xf32>
    %cst_19 = arith.constant 1.000000e+00 : f32
    %32 = vector.broadcast %cst_19 : f32 to vector<16x1xf32>
    %33 = arith.addf %32, %31 : vector<16x1xf32>
    %34 = arith.divf %32, %33 : vector<16x1xf32>
    %35 = vector.shape_cast %34 : vector<16x1xf32> to vector<16x1xf32>
    %36 = vector.broadcast %35 : vector<16x1xf32> to vector<16x16xf32>
    %37 = arith.select %9, %36, %4 : vector<16x16xi1>, vector<16x16xf32>
    %c8_i32_20 = arith.constant 8 : i32
    %38 = vector.broadcast %c8_i32_20 : i32 to vector<16x16xi32>
    %39 = arith.cmpi sge, %3, %38 : vector<16x16xi32>
    %c16_i32 = arith.constant 16 : i32
    %40 = vector.broadcast %c16_i32 : i32 to vector<16x16xi32>
    %41 = arith.cmpi slt, %3, %40 : vector<16x16xi32>
    %42 = arith.andi %39, %41 : vector<16x16xi1>
    %cst_21 = arith.constant 0.000000e+00 : f32
    %43 = vector.broadcast %cst_21 : f32 to vector<16x16xf32>
    %44 = arith.select %42, %2, %43 : vector<16x16xi1>, vector<16x16xf32>
    %cst_22 = arith.constant dense<0.000000e+00> : vector<16xf32>
    %45 = vector.multi_reduction <add>, %44, %cst_22 [1] : vector<16x16xf32> to vector<16xf32>
    %46 = vector.shape_cast %45 : vector<16xf32> to vector<16x1xf32>
    %cst_23 = arith.constant 1.250000e-01 : f32
    %47 = vector.broadcast %cst_23 : f32 to vector<16x1xf32>
    %48 = arith.mulf %46, %47 : vector<16x1xf32>
    %c0_24 = arith.constant 0 : index
    %c0_25 = arith.constant 0 : index
    %49 = vector.load %arg2[%c0_24, %c0_25] : memref<32x16xf32, #tpu.memory_space<vmem>>, vector<32x16xf32>
    %cst_26 = arith.constant dense<0.000000e+00> : vector<32x1xf32>
    %50 = tpu.matmul %49, %48, %cst_26 {dimension_numbers = #tpu.dot_dimension_numbers<[1], [0], [0], [1], [0, 0, 1, 1], [], []>} : vector<32x16xf32>, vector<16x1xf32>, vector<32x1xf32> -> vector<32x1xf32>
    %c0_27 = arith.constant 0 : index
    %c0_28 = arith.constant 0 : index
    %51 = vector.load %arg3[%c0_27, %c0_28] : memref<32x1xf32, #tpu.memory_space<vmem>>, vector<32x1xf32>
    %52 = arith.addf %50, %51 : vector<32x1xf32>
    %cst_29 = arith.constant 0.000000e+00 : f32
    %53 = vector.broadcast %cst_29 : f32 to vector<32x1xf32>
    %54 = arith.cmpf oge, %52, %53 : vector<32x1xf32>
    %cst_30 = arith.constant 2.000000e-01 : f32
    %55 = vector.broadcast %cst_30 : f32 to vector<32x1xf32>
    %56 = arith.mulf %55, %52 : vector<32x1xf32>
    %57 = arith.select %54, %52, %56 : vector<32x1xi1>, vector<32x1xf32>
    %c0_31 = arith.constant 0 : index
    %c0_32 = arith.constant 0 : index
    %58 = vector.load %arg4[%c0_31, %c0_32] : memref<16x32xf32, #tpu.memory_space<vmem>>, vector<16x32xf32>
    %cst_33 = arith.constant dense<0.000000e+00> : vector<16x1xf32>
    %59 = tpu.matmul %58, %57, %cst_33 {dimension_numbers = #tpu.dot_dimension_numbers<[1], [0], [0], [1], [0, 0, 1, 1], [], []>} : vector<16x32xf32>, vector<32x1xf32>, vector<16x1xf32> -> vector<16x1xf32>
    %60 = arith.addf %48, %59 : vector<16x1xf32>
    %c0_34 = arith.constant 0 : index
    %c0_35 = arith.constant 0 : index
    %61 = vector.load %arg5[%c0_34, %c0_35] : memref<16x1xf32, #tpu.memory_space<vmem>>, vector<16x1xf32>
    %62 = arith.addf %60, %61 : vector<16x1xf32>
    %63 = arith.negf %62 : vector<16x1xf32>
    %64 = math.exp %63 : vector<16x1xf32>
    %cst_36 = arith.constant 1.000000e+00 : f32
    %65 = vector.broadcast %cst_36 : f32 to vector<16x1xf32>
    %66 = arith.addf %65, %64 : vector<16x1xf32>
    %67 = arith.divf %65, %66 : vector<16x1xf32>
    %68 = vector.shape_cast %67 : vector<16x1xf32> to vector<16x1xf32>
    %69 = vector.broadcast %68 : vector<16x1xf32> to vector<16x16xf32>
    %70 = arith.select %42, %69, %37 : vector<16x16xi1>, vector<16x16xf32>
    %71 = arith.mulf %2, %70 : vector<16x16xf32>
    %72 = arith.addf %71, %2 : vector<16x16xf32>
    %cst_37 = arith.constant 0.000000e+00 : f32
    %73 = vector.broadcast %cst_37 : f32 to vector<16x16xf32>
    %74 = arith.cmpf oge, %72, %73 : vector<16x16xf32>
    %cst_38 = arith.constant 2.000000e-01 : f32
    %75 = vector.broadcast %cst_38 : f32 to vector<16x16xf32>
    %76 = arith.mulf %75, %72 : vector<16x16xf32>
    %77 = arith.select %74, %72, %76 : vector<16x16xi1>, vector<16x16xf32>
    %78 = arith.truncf %77 : vector<16x16xf32> to vector<16x16xbf16>
    %c0_39 = arith.constant 0 : index
    %c0_40 = arith.constant 0 : index
    %79 = vector.load %arg6[%c0_39, %c0_40] : memref<16x16xbf16, #tpu.memory_space<vmem>>, vector<16x16xbf16>
    tpu.vector_store %arg6[%c0_39, %c0_40], %78 {strides = array<i32>} : memref<16x16xbf16, #tpu.memory_space<vmem>>, vector<16x16xbf16>,
    return
  }
}

module attributes {stable_mosaic.version = 11 : i64} {
  func.func @_se_kernel(%arg0: memref<16x16xbf16, #tpu.memory_space<vmem>>, %arg1: memref<8x16xbf16, #tpu.memory_space<vmem>>, %arg2: memref<16x8xf32, #tpu.memory_space<vmem>>, %arg3: memref<16x1xf32, #tpu.memory_space<vmem>>, %arg4: memref<8x16xf32, #tpu.memory_space<vmem>>, %arg5: memref<8x1xf32, #tpu.memory_space<vmem>>, %arg6: memref<8x16xbf16, #tpu.memory_space<vmem>>) attributes {dimension_semantics = [], scalar_prefetch = 0 : i64, scratch_operands = 0 : i64, tpu.core_type = #tpu.core_type<tc>} {
    %c0 = arith.constant 0 : index
    %c0_0 = arith.constant 0 : index
    %0 = vector.load %arg1[%c0, %c0_0] : memref<8x16xbf16, #tpu.memory_space<vmem>>, vector<8x16xbf16>
    %c0_1 = arith.constant 0 : index
    %c0_2 = arith.constant 0 : index
    %1 = vector.load %arg0[%c0_1, %c0_2] : memref<16x16xbf16, #tpu.memory_space<vmem>>, vector<16x16xbf16>
    %cst = arith.constant dense<0.000000e+00> : vector<8x16xf32>
    %2 = tpu.matmul %0, %1, %cst {dimension_numbers = #tpu.dot_dimension_numbers<[1], [0], [0], [1], [0, 0, 1, 1], [], []>} : vector<8x16xbf16>, vector<16x16xbf16>, vector<8x16xf32> -> vector<8x16xf32>
    %3 = tpu.iota {dimensions = array<i32: 1>} : vector<8x16xi32>
    %cst_3 = arith.constant 0.000000e+00 : f32
    %4 = vector.broadcast %cst_3 : f32 to vector<8x16xf32>
    %c0_i32 = arith.constant 0 : i32
    %5 = vector.broadcast %c0_i32 : i32 to vector<8x16xi32>
    %6 = arith.cmpi sge, %3, %5 : vector<8x16xi32>
    %c8_i32 = arith.constant 8 : i32
    %7 = vector.broadcast %c8_i32 : i32 to vector<8x16xi32>
    %8 = arith.cmpi slt, %3, %7 : vector<8x16xi32>
    %9 = arith.andi %6, %8 : vector<8x16xi1>
    %cst_4 = arith.constant 0.000000e+00 : f32
    %10 = vector.broadcast %cst_4 : f32 to vector<8x16xf32>
    %11 = arith.select %9, %2, %10 : vector<8x16xi1>, vector<8x16xf32>
    %cst_5 = arith.constant dense<0.000000e+00> : vector<8xf32>
    %12 = vector.multi_reduction <add>, %11, %cst_5 [1] : vector<8x16xf32> to vector<8xf32>
    %13 = vector.shape_cast %12 : vector<8xf32> to vector<8x1xf32>
    %cst_6 = arith.constant 1.250000e-01 : f32
    %14 = vector.broadcast %cst_6 : f32 to vector<8x1xf32>
    %15 = arith.mulf %13, %14 : vector<8x1xf32>
    %c0_7 = arith.constant 0 : index
    %c0_8 = arith.constant 0 : index
    %16 = vector.load %arg2[%c0_7, %c0_8] : memref<16x8xf32, #tpu.memory_space<vmem>>, vector<16x8xf32>
    %cst_9 = arith.constant dense<0.000000e+00> : vector<16x1xf32>
    %17 = tpu.matmul %16, %15, %cst_9 {dimension_numbers = #tpu.dot_dimension_numbers<[1], [0], [0], [1], [0, 0, 1, 1], [], []>} : vector<16x8xf32>, vector<8x1xf32>, vector<16x1xf32> -> vector<16x1xf32>
    %c0_10 = arith.constant 0 : index
    %c0_11 = arith.constant 0 : index
    %18 = vector.load %arg3[%c0_10, %c0_11] : memref<16x1xf32, #tpu.memory_space<vmem>>, vector<16x1xf32>
    %19 = arith.addf %17, %18 : vector<16x1xf32>
    %cst_12 = arith.constant 0.000000e+00 : f32
    %20 = vector.broadcast %cst_12 : f32 to vector<16x1xf32>
    %21 = arith.cmpf oge, %19, %20 : vector<16x1xf32>
    %cst_13 = arith.constant 2.000000e-01 : f32
    %22 = vector.broadcast %cst_13 : f32 to vector<16x1xf32>
    %23 = arith.mulf %22, %19 : vector<16x1xf32>
    %24 = arith.select %21, %19, %23 : vector<16x1xi1>, vector<16x1xf32>
    %c0_14 = arith.constant 0 : index
    %c0_15 = arith.constant 0 : index
    %25 = vector.load %arg4[%c0_14, %c0_15] : memref<8x16xf32, #tpu.memory_space<vmem>>, vector<8x16xf32>
    %cst_16 = arith.constant dense<0.000000e+00> : vector<8x1xf32>
    %26 = tpu.matmul %25, %24, %cst_16 {dimension_numbers = #tpu.dot_dimension_numbers<[1], [0], [0], [1], [0, 0, 1, 1], [], []>} : vector<8x16xf32>, vector<16x1xf32>, vector<8x1xf32> -> vector<8x1xf32>
    %27 = arith.addf %15, %26 : vector<8x1xf32>
    %c0_17 = arith.constant 0 : index
    %c0_18 = arith.constant 0 : index
    %28 = vector.load %arg5[%c0_17, %c0_18] : memref<8x1xf32, #tpu.memory_space<vmem>>, vector<8x1xf32>
    %29 = arith.addf %27, %28 : vector<8x1xf32>
    %30 = arith.negf %29 : vector<8x1xf32>
    %31 = math.exp %30 : vector<8x1xf32>
    %cst_19 = arith.constant 1.000000e+00 : f32
    %32 = vector.broadcast %cst_19 : f32 to vector<8x1xf32>
    %33 = arith.addf %32, %31 : vector<8x1xf32>
    %34 = arith.divf %32, %33 : vector<8x1xf32>
    %35 = vector.shape_cast %34 : vector<8x1xf32> to vector<8x1xf32>
    %36 = vector.broadcast %35 : vector<8x1xf32> to vector<8x16xf32>
    %37 = arith.select %9, %36, %4 : vector<8x16xi1>, vector<8x16xf32>
    %c8_i32_20 = arith.constant 8 : i32
    %38 = vector.broadcast %c8_i32_20 : i32 to vector<8x16xi32>
    %39 = arith.cmpi sge, %3, %38 : vector<8x16xi32>
    %c16_i32 = arith.constant 16 : i32
    %40 = vector.broadcast %c16_i32 : i32 to vector<8x16xi32>
    %41 = arith.cmpi slt, %3, %40 : vector<8x16xi32>
    %42 = arith.andi %39, %41 : vector<8x16xi1>
    %cst_21 = arith.constant 0.000000e+00 : f32
    %43 = vector.broadcast %cst_21 : f32 to vector<8x16xf32>
    %44 = arith.select %42, %2, %43 : vector<8x16xi1>, vector<8x16xf32>
    %cst_22 = arith.constant dense<0.000000e+00> : vector<8xf32>
    %45 = vector.multi_reduction <add>, %44, %cst_22 [1] : vector<8x16xf32> to vector<8xf32>
    %46 = vector.shape_cast %45 : vector<8xf32> to vector<8x1xf32>
    %cst_23 = arith.constant 1.250000e-01 : f32
    %47 = vector.broadcast %cst_23 : f32 to vector<8x1xf32>
    %48 = arith.mulf %46, %47 : vector<8x1xf32>
    %c0_24 = arith.constant 0 : index
    %c0_25 = arith.constant 0 : index
    %49 = vector.load %arg2[%c0_24, %c0_25] : memref<16x8xf32, #tpu.memory_space<vmem>>, vector<16x8xf32>
    %cst_26 = arith.constant dense<0.000000e+00> : vector<16x1xf32>
    %50 = tpu.matmul %49, %48, %cst_26 {dimension_numbers = #tpu.dot_dimension_numbers<[1], [0], [0], [1], [0, 0, 1, 1], [], []>} : vector<16x8xf32>, vector<8x1xf32>, vector<16x1xf32> -> vector<16x1xf32>
    %c0_27 = arith.constant 0 : index
    %c0_28 = arith.constant 0 : index
    %51 = vector.load %arg3[%c0_27, %c0_28] : memref<16x1xf32, #tpu.memory_space<vmem>>, vector<16x1xf32>
    %52 = arith.addf %50, %51 : vector<16x1xf32>
    %cst_29 = arith.constant 0.000000e+00 : f32
    %53 = vector.broadcast %cst_29 : f32 to vector<16x1xf32>
    %54 = arith.cmpf oge, %52, %53 : vector<16x1xf32>
    %cst_30 = arith.constant 2.000000e-01 : f32
    %55 = vector.broadcast %cst_30 : f32 to vector<16x1xf32>
    %56 = arith.mulf %55, %52 : vector<16x1xf32>
    %57 = arith.select %54, %52, %56 : vector<16x1xi1>, vector<16x1xf32>
    %c0_31 = arith.constant 0 : index
    %c0_32 = arith.constant 0 : index
    %58 = vector.load %arg4[%c0_31, %c0_32] : memref<8x16xf32, #tpu.memory_space<vmem>>, vector<8x16xf32>
    %cst_33 = arith.constant dense<0.000000e+00> : vector<8x1xf32>
    %59 = tpu.matmul %58, %57, %cst_33 {dimension_numbers = #tpu.dot_dimension_numbers<[1], [0], [0], [1], [0, 0, 1, 1], [], []>} : vector<8x16xf32>, vector<16x1xf32>, vector<8x1xf32> -> vector<8x1xf32>
    %60 = arith.addf %48, %59 : vector<8x1xf32>
    %c0_34 = arith.constant 0 : index
    %c0_35 = arith.constant 0 : index
    %61 = vector.load %arg5[%c0_34, %c0_35] : memref<8x1xf32, #tpu.memory_space<vmem>>, vector<8x1xf32>
    %62 = arith.addf %60, %61 : vector<8x1xf32>
    %63 = arith.negf %62 : vector<8x1xf32>
    %64 = math.exp %63 : vector<8x1xf32>
    %cst_36 = arith.constant 1.000000e+00 : f32
    %65 = vector.broadcast %cst_36 : f32 to vector<8x1xf32>
    %66 = arith.addf %65, %64 : vector<8x1xf32>
    %67 = arith.divf %65, %66 : vector<8x1xf32>
    %68 = vector.shape_cast %67 : vector<8x1xf32> to vector<8x1xf32>
    %69 = vector.broadcast %68 : vector<8x1xf32> to vector<8x16xf32>
    %70 = arith.select %42, %69, %37 : vector<8x16xi1>, vector<8x16xf32>
    %71 = arith.mulf %2, %70 : vector<8x16xf32>
    %72 = arith.addf %71, %2 : vector<8x16xf32>
    %cst_37 = arith.constant 0.000000e+00 : f32
    %73 = vector.broadcast %cst_37 : f32 to vector<8x16xf32>
    %74 = arith.cmpf oge, %72, %73 : vector<8x16xf32>
    %cst_38 = arith.constant 2.000000e-01 : f32
    %75 = vector.broadcast %cst_38 : f32 to vector<8x16xf32>
    %76 = arith.mulf %75, %72 : vector<8x16xf32>
    %77 = arith.select %74, %72, %76 : vector<8x16xi1>, vector<8x16xf32>
    %78 = arith.truncf %77 : vector<8x16xf32> to vector<8x16xbf16>
    %c0_39 = arith.constant 0 : index
    %c0_40 = arith.constant 0 : index
    %79 = vector.load %arg6[%c0_39, %c0_40] : memref<8x16xbf16, #tpu.memory_space<vmem>>, vector<8x16xbf16>
    tpu.vector_store %arg6[%c0_39, %c0_40], %78 {strides = array<i32>} : memref<8x16xbf16, #tpu.memory_space<vmem>>, vector<8x16xbf16>,
    return
  }
}

module attributes {stable_mosaic.version = 11 : i64} {
  func.func @_conv_kernel(%arg0: i32, %arg1: memref<192x16xbf16, #tpu.memory_space<vmem>>, %arg2: memref<32x192xbf16, #tpu.memory_space<vmem>>, %arg3: memref<32x1xf32, #tpu.memory_space<vmem>>, %arg4: memref<32x16xbf16, #tpu.memory_space<vmem>>) attributes {dimension_semantics = [#tpu.dimension_semantics<parallel>], iteration_bounds = array<i64: 1>, scalar_prefetch = 0 : i64, scratch_operands = 0 : i64, tpu.core_type = #tpu.core_type<tc>, window_params = [{transform_indices = @transform_0, window_bounds = array<i64: 192, 16>}, {pipeline_mode = #tpu.pipeline_mode<synchronous>, transform_indices = @transform_1, window_bounds = array<i64: 32, 192>}, {pipeline_mode = #tpu.pipeline_mode<synchronous>, transform_indices = @transform_2, window_bounds = array<i64: 32, 1>}, {transform_indices = @transform_3, window_bounds = array<i64: 32, 16>}]} {
    %c0 = arith.constant 0 : index
    %c0_0 = arith.constant 0 : index
    %0 = vector.load %arg2[%c0, %c0_0] : memref<32x192xbf16, #tpu.memory_space<vmem>>, vector<32x192xbf16>
    %c0_1 = arith.constant 0 : index
    %c0_2 = arith.constant 0 : index
    %1 = vector.load %arg1[%c0_1, %c0_2] : memref<192x16xbf16, #tpu.memory_space<vmem>>, vector<192x16xbf16>
    %cst = arith.constant dense<0.000000e+00> : vector<32x16xf32>
    %2 = tpu.matmul %0, %1, %cst {dimension_numbers = #tpu.dot_dimension_numbers<[1], [0], [0], [1], [0, 0, 1, 1], [], []>} : vector<32x192xbf16>, vector<192x16xbf16>, vector<32x16xf32> -> vector<32x16xf32>
    %c0_3 = arith.constant 0 : index
    %c0_4 = arith.constant 0 : index
    %3 = vector.load %arg3[%c0_3, %c0_4] : memref<32x1xf32, #tpu.memory_space<vmem>>, vector<32x1xf32>
    %4 = vector.broadcast %3 : vector<32x1xf32> to vector<32x16xf32>
    %5 = arith.addf %2, %4 : vector<32x16xf32>
    %cst_5 = arith.constant 0.000000e+00 : f32
    %6 = vector.broadcast %cst_5 : f32 to vector<32x16xf32>
    %7 = arith.cmpf oge, %5, %6 : vector<32x16xf32>
    %cst_6 = arith.constant 2.500000e-01 : f32
    %8 = vector.broadcast %cst_6 : f32 to vector<32x16xf32>
    %9 = arith.mulf %8, %5 : vector<32x16xf32>
    %10 = arith.select %7, %5, %9 : vector<32x16xi1>, vector<32x16xf32>
    %11 = arith.truncf %10 : vector<32x16xf32> to vector<32x16xbf16>
    %c0_7 = arith.constant 0 : index
    %c0_8 = arith.constant 0 : index
    %12 = vector.load %arg4[%c0_7, %c0_8] : memref<32x16xbf16, #tpu.memory_space<vmem>>, vector<32x16xbf16>
    tpu.vector_store %arg4[%c0_7, %c0_8], %11 {strides = array<i32>} : memref<32x16xbf16, #tpu.memory_space<vmem>>, vector<32x16xbf16>,
    return
  }
  func.func @transform_0(%arg0: i32) -> (i32, i32) {
    %c0_i32 = arith.constant 0 : i32
    %c0_i32_0 = arith.constant 0 : i32
    return %c0_i32, %arg0 : i32, i32
  }
  func.func @transform_1(%arg0: i32) -> (i32, i32) {
    %c0_i32 = arith.constant 0 : i32
    %c0_i32_0 = arith.constant 0 : i32
    %c0_i32_1 = arith.constant 0 : i32
    return %c0_i32, %c0_i32_0 : i32, i32
  }
  func.func @transform_2(%arg0: i32) -> (i32, i32) {
    %c0_i32 = arith.constant 0 : i32
    %c0_i32_0 = arith.constant 0 : i32
    %c0_i32_1 = arith.constant 0 : i32
    return %c0_i32, %c0_i32_0 : i32, i32
  }
  func.func @transform_3(%arg0: i32) -> (i32, i32) {
    %c0_i32 = arith.constant 0 : i32
    %c0_i32_0 = arith.constant 0 : i32
    return %c0_i32, %arg0 : i32, i32
  }
}

module attributes {stable_mosaic.version = 11 : i64} {
  func.func @_conv_resadd_kernel(%arg0: i32, %arg1: memref<108x128xbf16, #tpu.memory_space<vmem>>, %arg2: memref<4x108xbf16, #tpu.memory_space<vmem>>, %arg3: memref<4x1xf32, #tpu.memory_space<vmem>>, %arg4: memref<4x128xbf16, #tpu.memory_space<vmem>>, %arg5: memref<4x128xbf16, #tpu.memory_space<vmem>>) attributes {dimension_semantics = [#tpu.dimension_semantics<parallel>], iteration_bounds = array<i64: 1>, scalar_prefetch = 0 : i64, scratch_operands = 0 : i64, tpu.core_type = #tpu.core_type<tc>, window_params = [{transform_indices = @transform_0, window_bounds = array<i64: 108, 128>}, {pipeline_mode = #tpu.pipeline_mode<synchronous>, transform_indices = @transform_1, window_bounds = array<i64: 4, 108>}, {pipeline_mode = #tpu.pipeline_mode<synchronous>, transform_indices = @transform_2, window_bounds = array<i64: 4, 1>}, {transform_indices = @transform_3, window_bounds = array<i64: 4, 128>}, {transform_indices = @transform_4, window_bounds = array<i64: 4, 128>}]} {
    %c0 = arith.constant 0 : index
    %c0_0 = arith.constant 0 : index
    %0 = vector.load %arg2[%c0, %c0_0] : memref<4x108xbf16, #tpu.memory_space<vmem>>, vector<4x108xbf16>
    %c0_1 = arith.constant 0 : index
    %c0_2 = arith.constant 0 : index
    %1 = vector.load %arg1[%c0_1, %c0_2] : memref<108x128xbf16, #tpu.memory_space<vmem>>, vector<108x128xbf16>
    %cst = arith.constant dense<0.000000e+00> : vector<4x128xf32>
    %2 = tpu.matmul %0, %1, %cst {dimension_numbers = #tpu.dot_dimension_numbers<[1], [0], [0], [1], [0, 0, 1, 1], [], []>} : vector<4x108xbf16>, vector<108x128xbf16>, vector<4x128xf32> -> vector<4x128xf32>
    %c0_3 = arith.constant 0 : index
    %c0_4 = arith.constant 0 : index
    %3 = vector.load %arg3[%c0_3, %c0_4] : memref<4x1xf32, #tpu.memory_space<vmem>>, vector<4x1xf32>
    %4 = vector.broadcast %3 : vector<4x1xf32> to vector<4x128xf32>
    %5 = arith.addf %2, %4 : vector<4x128xf32>
    %cst_5 = arith.constant 0.000000e+00 : f32
    %6 = vector.broadcast %cst_5 : f32 to vector<4x128xf32>
    %7 = arith.cmpf oge, %5, %6 : vector<4x128xf32>
    %cst_6 = arith.constant 2.500000e-01 : f32
    %8 = vector.broadcast %cst_6 : f32 to vector<4x128xf32>
    %9 = arith.mulf %8, %5 : vector<4x128xf32>
    %10 = arith.select %7, %5, %9 : vector<4x128xi1>, vector<4x128xf32>
    %c0_7 = arith.constant 0 : index
    %c0_8 = arith.constant 0 : index
    %11 = vector.load %arg4[%c0_7, %c0_8] : memref<4x128xbf16, #tpu.memory_space<vmem>>, vector<4x128xbf16>
    %12 = arith.extf %11 : vector<4x128xbf16> to vector<4x128xf32>
    %13 = arith.addf %10, %12 : vector<4x128xf32>
    %14 = arith.truncf %13 : vector<4x128xf32> to vector<4x128xbf16>
    %c0_9 = arith.constant 0 : index
    %c0_10 = arith.constant 0 : index
    %15 = vector.load %arg5[%c0_9, %c0_10] : memref<4x128xbf16, #tpu.memory_space<vmem>>, vector<4x128xbf16>
    tpu.vector_store %arg5[%c0_9, %c0_10], %14 {strides = array<i32>} : memref<4x128xbf16, #tpu.memory_space<vmem>>, vector<4x128xbf16>,
    return
  }
  func.func @transform_0(%arg0: i32) -> (i32, i32) {
    %c0_i32 = arith.constant 0 : i32
    %c0_i32_0 = arith.constant 0 : i32
    return %c0_i32, %arg0 : i32, i32
  }
  func.func @transform_1(%arg0: i32) -> (i32, i32) {
    %c0_i32 = arith.constant 0 : i32
    %c0_i32_0 = arith.constant 0 : i32
    %c0_i32_1 = arith.constant 0 : i32
    return %c0_i32, %c0_i32_0 : i32, i32
  }
  func.func @transform_2(%arg0: i32) -> (i32, i32) {
    %c0_i32 = arith.constant 0 : i32
    %c0_i32_0 = arith.constant 0 : i32
    %c0_i32_1 = arith.constant 0 : i32
    return %c0_i32, %c0_i32_0 : i32, i32
  }
  func.func @transform_3(%arg0: i32) -> (i32, i32) {
    %c0_i32 = arith.constant 0 : i32
    %c0_i32_0 = arith.constant 0 : i32
    return %c0_i32, %arg0 : i32, i32
  }
  func.func @transform_4(%arg0: i32) -> (i32, i32) {
    %c0_i32 = arith.constant 0 : i32
    %c0_i32_0 = arith.constant 0 : i32
    return %c0_i32, %arg0 : i32, i32
  }
}

module attributes {stable_mosaic.version = 11 : i64} {
  func.func @_se_kernel(%arg0: memref<8x128xbf16, #tpu.memory_space<vmem>>, %arg1: memref<4x8xbf16, #tpu.memory_space<vmem>>, %arg2: memref<8x4xf32, #tpu.memory_space<vmem>>, %arg3: memref<8x1xf32, #tpu.memory_space<vmem>>, %arg4: memref<4x8xf32, #tpu.memory_space<vmem>>, %arg5: memref<4x1xf32, #tpu.memory_space<vmem>>, %arg6: memref<4x128xbf16, #tpu.memory_space<vmem>>) attributes {dimension_semantics = [], scalar_prefetch = 0 : i64, scratch_operands = 0 : i64, tpu.core_type = #tpu.core_type<tc>} {
    %c0 = arith.constant 0 : index
    %c0_0 = arith.constant 0 : index
    %0 = vector.load %arg1[%c0, %c0_0] : memref<4x8xbf16, #tpu.memory_space<vmem>>, vector<4x8xbf16>
    %c0_1 = arith.constant 0 : index
    %c0_2 = arith.constant 0 : index
    %1 = vector.load %arg0[%c0_1, %c0_2] : memref<8x128xbf16, #tpu.memory_space<vmem>>, vector<8x128xbf16>
    %cst = arith.constant dense<0.000000e+00> : vector<4x128xf32>
    %2 = tpu.matmul %0, %1, %cst {dimension_numbers = #tpu.dot_dimension_numbers<[1], [0], [0], [1], [0, 0, 1, 1], [], []>} : vector<4x8xbf16>, vector<8x128xbf16>, vector<4x128xf32> -> vector<4x128xf32>
    %3 = tpu.iota {dimensions = array<i32: 1>} : vector<4x128xi32>
    %cst_3 = arith.constant 0.000000e+00 : f32
    %4 = vector.broadcast %cst_3 : f32 to vector<4x128xf32>
    %c0_i32 = arith.constant 0 : i32
    %5 = vector.broadcast %c0_i32 : i32 to vector<4x128xi32>
    %6 = arith.cmpi sge, %3, %5 : vector<4x128xi32>
    %c64_i32 = arith.constant 64 : i32
    %7 = vector.broadcast %c64_i32 : i32 to vector<4x128xi32>
    %8 = arith.cmpi slt, %3, %7 : vector<4x128xi32>
    %9 = arith.andi %6, %8 : vector<4x128xi1>
    %cst_4 = arith.constant 0.000000e+00 : f32
    %10 = vector.broadcast %cst_4 : f32 to vector<4x128xf32>
    %11 = arith.select %9, %2, %10 : vector<4x128xi1>, vector<4x128xf32>
    %cst_5 = arith.constant dense<0.000000e+00> : vector<4xf32>
    %12 = vector.multi_reduction <add>, %11, %cst_5 [1] : vector<4x128xf32> to vector<4xf32>
    %13 = vector.shape_cast %12 : vector<4xf32> to vector<4x1xf32>
    %cst_6 = arith.constant 1.562500e-02 : f32
    %14 = vector.broadcast %cst_6 : f32 to vector<4x1xf32>
    %15 = arith.mulf %13, %14 : vector<4x1xf32>
    %c0_7 = arith.constant 0 : index
    %c0_8 = arith.constant 0 : index
    %16 = vector.load %arg2[%c0_7, %c0_8] : memref<8x4xf32, #tpu.memory_space<vmem>>, vector<8x4xf32>
    %cst_9 = arith.constant dense<0.000000e+00> : vector<8x1xf32>
    %17 = tpu.matmul %16, %15, %cst_9 {dimension_numbers = #tpu.dot_dimension_numbers<[1], [0], [0], [1], [0, 0, 1, 1], [], []>} : vector<8x4xf32>, vector<4x1xf32>, vector<8x1xf32> -> vector<8x1xf32>
    %c0_10 = arith.constant 0 : index
    %c0_11 = arith.constant 0 : index
    %18 = vector.load %arg3[%c0_10, %c0_11] : memref<8x1xf32, #tpu.memory_space<vmem>>, vector<8x1xf32>
    %19 = arith.addf %17, %18 : vector<8x1xf32>
    %cst_12 = arith.constant 0.000000e+00 : f32
    %20 = vector.broadcast %cst_12 : f32 to vector<8x1xf32>
    %21 = arith.cmpf oge, %19, %20 : vector<8x1xf32>
    %cst_13 = arith.constant 2.000000e-01 : f32
    %22 = vector.broadcast %cst_13 : f32 to vector<8x1xf32>
    %23 = arith.mulf %22, %19 : vector<8x1xf32>
    %24 = arith.select %21, %19, %23 : vector<8x1xi1>, vector<8x1xf32>
    %c0_14 = arith.constant 0 : index
    %c0_15 = arith.constant 0 : index
    %25 = vector.load %arg4[%c0_14, %c0_15] : memref<4x8xf32, #tpu.memory_space<vmem>>, vector<4x8xf32>
    %cst_16 = arith.constant dense<0.000000e+00> : vector<4x1xf32>
    %26 = tpu.matmul %25, %24, %cst_16 {dimension_numbers = #tpu.dot_dimension_numbers<[1], [0], [0], [1], [0, 0, 1, 1], [], []>} : vector<4x8xf32>, vector<8x1xf32>, vector<4x1xf32> -> vector<4x1xf32>
    %27 = arith.addf %15, %26 : vector<4x1xf32>
    %c0_17 = arith.constant 0 : index
    %c0_18 = arith.constant 0 : index
    %28 = vector.load %arg5[%c0_17, %c0_18] : memref<4x1xf32, #tpu.memory_space<vmem>>, vector<4x1xf32>
    %29 = arith.addf %27, %28 : vector<4x1xf32>
    %30 = arith.negf %29 : vector<4x1xf32>
    %31 = math.exp %30 : vector<4x1xf32>
    %cst_19 = arith.constant 1.000000e+00 : f32
    %32 = vector.broadcast %cst_19 : f32 to vector<4x1xf32>
    %33 = arith.addf %32, %31 : vector<4x1xf32>
    %34 = arith.divf %32, %33 : vector<4x1xf32>
    %35 = vector.shape_cast %34 : vector<4x1xf32> to vector<4x1xf32>
    %36 = vector.broadcast %35 : vector<4x1xf32> to vector<4x128xf32>
    %37 = arith.select %9, %36, %4 : vector<4x128xi1>, vector<4x128xf32>
    %c64_i32_20 = arith.constant 64 : i32
    %38 = vector.broadcast %c64_i32_20 : i32 to vector<4x128xi32>
    %39 = arith.cmpi sge, %3, %38 : vector<4x128xi32>
    %c128_i32 = arith.constant 128 : i32
    %40 = vector.broadcast %c128_i32 : i32 to vector<4x128xi32>
    %41 = arith.cmpi slt, %3, %40 : vector<4x128xi32>
    %42 = arith.andi %39, %41 : vector<4x128xi1>
    %cst_21 = arith.constant 0.000000e+00 : f32
    %43 = vector.broadcast %cst_21 : f32 to vector<4x128xf32>
    %44 = arith.select %42, %2, %43 : vector<4x128xi1>, vector<4x128xf32>
    %cst_22 = arith.constant dense<0.000000e+00> : vector<4xf32>
    %45 = vector.multi_reduction <add>, %44, %cst_22 [1] : vector<4x128xf32> to vector<4xf32>
    %46 = vector.shape_cast %45 : vector<4xf32> to vector<4x1xf32>
    %cst_23 = arith.constant 1.562500e-02 : f32
    %47 = vector.broadcast %cst_23 : f32 to vector<4x1xf32>
    %48 = arith.mulf %46, %47 : vector<4x1xf32>
    %c0_24 = arith.constant 0 : index
    %c0_25 = arith.constant 0 : index
    %49 = vector.load %arg2[%c0_24, %c0_25] : memref<8x4xf32, #tpu.memory_space<vmem>>, vector<8x4xf32>
    %cst_26 = arith.constant dense<0.000000e+00> : vector<8x1xf32>
    %50 = tpu.matmul %49, %48, %cst_26 {dimension_numbers = #tpu.dot_dimension_numbers<[1], [0], [0], [1], [0, 0, 1, 1], [], []>} : vector<8x4xf32>, vector<4x1xf32>, vector<8x1xf32> -> vector<8x1xf32>
    %c0_27 = arith.constant 0 : index
    %c0_28 = arith.constant 0 : index
    %51 = vector.load %arg3[%c0_27, %c0_28] : memref<8x1xf32, #tpu.memory_space<vmem>>, vector<8x1xf32>
    %52 = arith.addf %50, %51 : vector<8x1xf32>
    %cst_29 = arith.constant 0.000000e+00 : f32
    %53 = vector.broadcast %cst_29 : f32 to vector<8x1xf32>
    %54 = arith.cmpf oge, %52, %53 : vector<8x1xf32>
    %cst_30 = arith.constant 2.000000e-01 : f32
    %55 = vector.broadcast %cst_30 : f32 to vector<8x1xf32>
    %56 = arith.mulf %55, %52 : vector<8x1xf32>
    %57 = arith.select %54, %52, %56 : vector<8x1xi1>, vector<8x1xf32>
    %c0_31 = arith.constant 0 : index
    %c0_32 = arith.constant 0 : index
    %58 = vector.load %arg4[%c0_31, %c0_32] : memref<4x8xf32, #tpu.memory_space<vmem>>, vector<4x8xf32>
    %cst_33 = arith.constant dense<0.000000e+00> : vector<4x1xf32>
    %59 = tpu.matmul %58, %57, %cst_33 {dimension_numbers = #tpu.dot_dimension_numbers<[1], [0], [0], [1], [0, 0, 1, 1], [], []>} : vector<4x8xf32>, vector<8x1xf32>, vector<4x1xf32> -> vector<4x1xf32>
    %60 = arith.addf %48, %59 : vector<4x1xf32>
    %c0_34 = arith.constant 0 : index
    %c0_35 = arith.constant 0 : index
    %61 = vector.load %arg5[%c0_34, %c0_35] : memref<4x1xf32, #tpu.memory_space<vmem>>, vector<4x1xf32>
    %62 = arith.addf %60, %61 : vector<4x1xf32>
    %63 = arith.negf %62 : vector<4x1xf32>
    %64 = math.exp %63 : vector<4x1xf32>
    %cst_36 = arith.constant 1.000000e+00 : f32
    %65 = vector.broadcast %cst_36 : f32 to vector<4x1xf32>
    %66 = arith.addf %65, %64 : vector<4x1xf32>
    %67 = arith.divf %65, %66 : vector<4x1xf32>
    %68 = vector.shape_cast %67 : vector<4x1xf32> to vector<4x1xf32>
    %69 = vector.broadcast %68 : vector<4x1xf32> to vector<4x128xf32>
    %70 = arith.select %42, %69, %37 : vector<4x128xi1>, vector<4x128xf32>
    %71 = arith.mulf %2, %70 : vector<4x128xf32>
    %72 = arith.addf %71, %2 : vector<4x128xf32>
    %cst_37 = arith.constant 0.000000e+00 : f32
    %73 = vector.broadcast %cst_37 : f32 to vector<4x128xf32>
    %74 = arith.cmpf oge, %72, %73 : vector<4x128xf32>
    %cst_38 = arith.constant 2.000000e-01 : f32
    %75 = vector.broadcast %cst_38 : f32 to vector<4x128xf32>
    %76 = arith.mulf %75, %72 : vector<4x128xf32>
    %77 = arith.select %74, %72, %76 : vector<4x128xi1>, vector<4x128xf32>
    %78 = arith.truncf %77 : vector<4x128xf32> to vector<4x128xbf16>
    %c0_39 = arith.constant 0 : index
    %c0_40 = arith.constant 0 : index
    %79 = vector.load %arg6[%c0_39, %c0_40] : memref<4x128xbf16, #tpu.memory_space<vmem>>, vector<4x128xbf16>
    tpu.vector_store %arg6[%c0_39, %c0_40], %78 {strides = array<i32>} : memref<4x128xbf16, #tpu.memory_space<vmem>>, vector<4x128xbf16>,
    return
  }
}

module attributes {stable_mosaic.version = 11 : i64} {
  func.func @_conv_kernel(%arg0: i32, %arg1: memref<64x128xbf16, #tpu.memory_space<vmem>>, %arg2: memref<32x64xbf16, #tpu.memory_space<vmem>>, %arg3: memref<32x1xf32, #tpu.memory_space<vmem>>, %arg4: memref<32x128xbf16, #tpu.memory_space<vmem>>) attributes {dimension_semantics = [#tpu.dimension_semantics<parallel>], iteration_bounds = array<i64: 1>, scalar_prefetch = 0 : i64, scratch_operands = 0 : i64, tpu.core_type = #tpu.core_type<tc>, window_params = [{transform_indices = @transform_0, window_bounds = array<i64: 64, 128>}, {pipeline_mode = #tpu.pipeline_mode<synchronous>, transform_indices = @transform_1, window_bounds = array<i64: 32, 64>}, {pipeline_mode = #tpu.pipeline_mode<synchronous>, transform_indices = @transform_2, window_bounds = array<i64: 32, 1>}, {transform_indices = @transform_3, window_bounds = array<i64: 32, 128>}]} {
    %c0 = arith.constant 0 : index
    %c0_0 = arith.constant 0 : index
    %0 = vector.load %arg2[%c0, %c0_0] : memref<32x64xbf16, #tpu.memory_space<vmem>>, vector<32x64xbf16>
    %c0_1 = arith.constant 0 : index
    %c0_2 = arith.constant 0 : index
    %1 = vector.load %arg1[%c0_1, %c0_2] : memref<64x128xbf16, #tpu.memory_space<vmem>>, vector<64x128xbf16>
    %cst = arith.constant dense<0.000000e+00> : vector<32x128xf32>
    %2 = tpu.matmul %0, %1, %cst {dimension_numbers = #tpu.dot_dimension_numbers<[1], [0], [0], [1], [0, 0, 1, 1], [], []>} : vector<32x64xbf16>, vector<64x128xbf16>, vector<32x128xf32> -> vector<32x128xf32>
    %c0_3 = arith.constant 0 : index
    %c0_4 = arith.constant 0 : index
    %3 = vector.load %arg3[%c0_3, %c0_4] : memref<32x1xf32, #tpu.memory_space<vmem>>, vector<32x1xf32>
    %4 = vector.broadcast %3 : vector<32x1xf32> to vector<32x128xf32>
    %5 = arith.addf %2, %4 : vector<32x128xf32>
    %cst_5 = arith.constant 0.000000e+00 : f32
    %6 = vector.broadcast %cst_5 : f32 to vector<32x128xf32>
    %7 = arith.cmpf oge, %5, %6 : vector<32x128xf32>
    %cst_6 = arith.constant 2.500000e-01 : f32
    %8 = vector.broadcast %cst_6 : f32 to vector<32x128xf32>
    %9 = arith.mulf %8, %5 : vector<32x128xf32>
    %10 = arith.select %7, %5, %9 : vector<32x128xi1>, vector<32x128xf32>
    %11 = arith.truncf %10 : vector<32x128xf32> to vector<32x128xbf16>
    %c0_7 = arith.constant 0 : index
    %c0_8 = arith.constant 0 : index
    %12 = vector.load %arg4[%c0_7, %c0_8] : memref<32x128xbf16, #tpu.memory_space<vmem>>, vector<32x128xbf16>
    tpu.vector_store %arg4[%c0_7, %c0_8], %11 {strides = array<i32>} : memref<32x128xbf16, #tpu.memory_space<vmem>>, vector<32x128xbf16>,
    return
  }
  func.func @transform_0(%arg0: i32) -> (i32, i32) {
    %c0_i32 = arith.constant 0 : i32
    %c0_i32_0 = arith.constant 0 : i32
    return %c0_i32, %arg0 : i32, i32
  }
  func.func @transform_1(%arg0: i32) -> (i32, i32) {
    %c0_i32 = arith.constant 0 : i32
    %c0_i32_0 = arith.constant 0 : i32
    %c0_i32_1 = arith.constant 0 : i32
    return %c0_i32, %c0_i32_0 : i32, i32
  }
  func.func @transform_2(%arg0: i32) -> (i32, i32) {
    %c0_i32 = arith.constant 0 : i32
    %c0_i32_0 = arith.constant 0 : i32
    %c0_i32_1 = arith.constant 0 : i32
    return %c0_i32, %c0_i32_0 : i32, i32
  }
  func.func @transform_3(%arg0: i32) -> (i32, i32) {
    %c0_i32 = arith.constant 0 : i32
    %c0_i32_0 = arith.constant 0 : i32
    return %c0_i32, %arg0 : i32, i32
  }
}

module attributes {stable_mosaic.version = 11 : i64} {
  func.func @_conv_resadd_final_kernel(%arg0: i32, %arg1: memref<108x512xbf16, #tpu.memory_space<vmem>>, %arg2: memref<4x108xbf16, #tpu.memory_space<vmem>>, %arg3: memref<4x1xf32, #tpu.memory_space<vmem>>, %arg4: memref<4x512xbf16, #tpu.memory_space<vmem>>, %arg5: memref<1x4xbf16, #tpu.memory_space<vmem>>, %arg6: memref<1x512xf32, #tpu.memory_space<vmem>>) attributes {dimension_semantics = [#tpu.dimension_semantics<parallel>], iteration_bounds = array<i64: 2>, scalar_prefetch = 0 : i64, scratch_operands = 0 : i64, tpu.core_type = #tpu.core_type<tc>, window_params = [{transform_indices = @transform_0, window_bounds = array<i64: 108, 512>}, {pipeline_mode = #tpu.pipeline_mode<synchronous>, transform_indices = @transform_1, window_bounds = array<i64: 4, 108>}, {pipeline_mode = #tpu.pipeline_mode<synchronous>, transform_indices = @transform_2, window_bounds = array<i64: 4, 1>}, {transform_indices = @transform_3, window_bounds = array<i64: 4, 512>}, {pipeline_mode = #tpu.pipeline_mode<synchronous>, transform_indices = @transform_4, window_bounds = array<i64: 1, 4>}, {transform_indices = @transform_5, window_bounds = array<i64: 1, 512>}]} {
    %c0 = arith.constant 0 : index
    %c0_0 = arith.constant 0 : index
    %0 = vector.load %arg2[%c0, %c0_0] : memref<4x108xbf16, #tpu.memory_space<vmem>>, vector<4x108xbf16>
    %c0_1 = arith.constant 0 : index
    %c0_2 = arith.constant 0 : index
    %1 = vector.load %arg1[%c0_1, %c0_2] : memref<108x512xbf16, #tpu.memory_space<vmem>>, vector<108x512xbf16>
    %cst = arith.constant dense<0.000000e+00> : vector<4x512xf32>
    %2 = tpu.matmul %0, %1, %cst {dimension_numbers = #tpu.dot_dimension_numbers<[1], [0], [0], [1], [0, 0, 1, 1], [], []>} : vector<4x108xbf16>, vector<108x512xbf16>, vector<4x512xf32> -> vector<4x512xf32>
    %c0_3 = arith.constant 0 : index
    %c0_4 = arith.constant 0 : index
    %3 = vector.load %arg3[%c0_3, %c0_4] : memref<4x1xf32, #tpu.memory_space<vmem>>, vector<4x1xf32>
    %4 = vector.broadcast %3 : vector<4x1xf32> to vector<4x512xf32>
    %5 = arith.addf %2, %4 : vector<4x512xf32>
    %cst_5 = arith.constant 0.000000e+00 : f32
    %6 = vector.broadcast %cst_5 : f32 to vector<4x512xf32>
    %7 = arith.cmpf oge, %5, %6 : vector<4x512xf32>
    %cst_6 = arith.constant 2.500000e-01 : f32
    %8 = vector.broadcast %cst_6 : f32 to vector<4x512xf32>
    %9 = arith.mulf %8, %5 : vector<4x512xf32>
    %10 = arith.select %7, %5, %9 : vector<4x512xi1>, vector<4x512xf32>
    %c0_7 = arith.constant 0 : index
    %c0_8 = arith.constant 0 : index
    %11 = vector.load %arg4[%c0_7, %c0_8] : memref<4x512xbf16, #tpu.memory_space<vmem>>, vector<4x512xbf16>
    %12 = arith.extf %11 : vector<4x512xbf16> to vector<4x512xf32>
    %13 = arith.addf %10, %12 : vector<4x512xf32>
    %c0_9 = arith.constant 0 : index
    %c0_10 = arith.constant 0 : index
    %14 = vector.load %arg5[%c0_9, %c0_10] : memref<1x4xbf16, #tpu.memory_space<vmem>>, vector<1x4xbf16>
    %15 = arith.truncf %13 : vector<4x512xf32> to vector<4x512xbf16>
    %cst_11 = arith.constant dense<0.000000e+00> : vector<1x512xf32>
    %16 = tpu.matmul %14, %15, %cst_11 {dimension_numbers = #tpu.dot_dimension_numbers<[1], [0], [0], [1], [0, 0, 1, 1], [], []>} : vector<1x4xbf16>, vector<4x512xbf16>, vector<1x512xf32> -> vector<1x512xf32>
    %c0_12 = arith.constant 0 : index
    %c0_13 = arith.constant 0 : index
    %17 = vector.load %arg6[%c0_12, %c0_13] : memref<1x512xf32, #tpu.memory_space<vmem>>, vector<1x512xf32>
    tpu.vector_store %arg6[%c0_12, %c0_13], %16 {strides = array<i32>} : memref<1x512xf32, #tpu.memory_space<vmem>>, vector<1x512xf32>,
    return
  }
  func.func @transform_0(%arg0: i32) -> (i32, i32) {
    %c0_i32 = arith.constant 0 : i32
    %c0_i32_0 = arith.constant 0 : i32
    return %c0_i32, %arg0 : i32, i32
  }
  func.func @transform_1(%arg0: i32) -> (i32, i32) {
    %c0_i32 = arith.constant 0 : i32
    %c0_i32_0 = arith.constant 0 : i32
    %c0_i32_1 = arith.constant 0 : i32
    return %c0_i32, %c0_i32_0 : i32, i32
  }
  func.func @transform_2(%arg0: i32) -> (i32, i32) {
    %c0_i32 = arith.constant 0 : i32
    %c0_i32_0 = arith.constant 0 : i32
    %c0_i32_1 = arith.constant 0 : i32
    return %c0_i32, %c0_i32_0 : i32, i32
  }
  func.func @transform_3(%arg0: i32) -> (i32, i32) {
    %c0_i32 = arith.constant 0 : i32
    %c0_i32_0 = arith.constant 0 : i32
    return %c0_i32, %arg0 : i32, i32
  }
  func.func @transform_4(%arg0: i32) -> (i32, i32) {
    %c0_i32 = arith.constant 0 : i32
    %c0_i32_0 = arith.constant 0 : i32
    %c0_i32_1 = arith.constant 0 : i32
    return %c0_i32, %c0_i32_0 : i32, i32
  }
  func.func @transform_5(%arg0: i32) -> (i32, i32) {
    %c0_i32 = arith.constant 0 : i32
    %c0_i32_0 = arith.constant 0 : i32
    return %c0_i32, %arg0 : i32, i32
  }
}

</mosaic_0001>

<llo_original>
// kernel: unet3d_forward.10
$region0: #{unet3d_forward.10}
  #allocation0 [shape = 'u32[]', space=smem, size = 0x4, offset = 0x4, fixed_abs, tag = 'smem constant byte address 0x4 - core index']
  #allocation1 [shape = 'u32[72,128]{1,0:T(1,128)}', space=vmem, size = 0x9000, scoped, tag = 'internal scratch']
  %s0 = inlined_call_operand.vmem [shape: bf16[27,256], index: 0, kind: input, shape index: {}]
  %s1 = inlined_call_operand.vmem [shape: bf16[8,27], index: 1, kind: input, shape index: {}]
  %s2 = inlined_call_operand.vmem [shape: f32[8,1], index: 2, kind: input, shape index: {}]
  %s3 = inlined_call_operand.vmem [shape: bf16[4,256], index: 3, kind: output, shape index: {}]
  %s4 = sld [smem:[#allocation0]]
  $region86: #{unet3d_forward.10} parent=0
    _
  %s6 = ssub.s32 1, %s4
  %s7 = scalar_select 0, %s6, %s4
  $region1: #{unet3d_forward.10} parent=0
    #allocation2 [shape = 'u8[16384]{0}', space=vmem, size = 0x4000, scoped, tag = 'input window, operand 0']
    loop: start=0, step=1, limit=4
    $region2: #{unet3d_forward.10} parent=1 // loop_pre_header
      _
    $region3: #{unet3d_forward.10} parent=1 // loop_header
      %s9 = sphi 0, %s13
      %p10 = scmp.ge.s32.totalorder %s9, 4
      %s19 = sphi 0, %s21
      %s22 = sphi 0, %s19
      %s23 = sphi 0, %s22
      %s39 = sphi 0, %s23
      %s43 = sphi 0, %s43
      %s45 = sphi 0, %s43
      %s46 = sphi 0, %s45
      %s60 = sphi 0, %s46
      %s64 = sphi 0, %s64
      %s66 = sphi 0, %s64
      %s67 = sphi 0, %s66
      %s81 = sphi 0, %s67
      %s87 = sphi 0, %s89
      %s90 = sphi 0, %s87
      %s91 = sphi 0, %s90
      %s107 = sphi 0, %s91
    $region4: #{unet3d_forward.10} parent=1 // loop_header_branch
      %12 = sbr.rel (%p10) target = $region8
    $region5: #{unet3d_forward.10} parent=1 // loop_body
      %s14 = ssub.s32 %s9, 1
      %s15 = ssub.s32 %s9, 2
      %s16 = sadd.s32 %s9, 1
      %s17 = ssub.s32 %s9, %s16
      %p18 = scmp.eq.s32.totalorder %s17, 0
      %s20 = sadd.s32 %s19, 1
      %s21 = scalar_select %p18, %s19, %s20
      %p24 = pneg %p18
      %p25 = scmp.eq.s32.totalorder %s9, 1
      %p26 = por %p24, %p25
      %p27 = scmp.ne.s32.totalorder %s19, %s22
      %p28 = scmp.eq.s32.totalorder %s9, 0
      %p29 = por %p27, %p28
      %p30 = scmp.ne.s32.totalorder %s19, %s22
      %p31 = scmp.eq.s32.totalorder %s14, 1
      %p32 = por %p30, %p31
      %p33 = scmp.ne.s32.totalorder %s22, %s23
      %p34 = scmp.eq.s32.totalorder %s14, 0
      %p35 = por %p33, %p34
      %p36 = scmp.ne.s32.totalorder %s22, %s23
      %p37 = scmp.eq.s32.totalorder %s15, 1
      %p38 = por %p36, %p37
      %p40 = scmp.ne.s32.totalorder %s23, %s39
      %p41 = scmp.eq.s32.totalorder %s15, 0
      %p42 = por %p40, %p41
      %s44 = sadd.s32 %s43, 1
      %p47 = scmp.eq.s32.totalorder %s9, 1
      %p48 = scmp.ne.s32.totalorder %s43, %s45
      %p49 = scmp.eq.s32.totalorder %s9, 0
      %p50 = por %p48, %p49
      %p51 = scmp.ne.s32.totalorder %s43, %s45
      %p52 = scmp.eq.s32.totalorder %s14, 1
      %p53 = por %p51, %p52
      %p54 = scmp.ne.s32.totalorder %s45, %s46
      %p55 = scmp.eq.s32.totalorder %s14, 0
      %p56 = por %p54, %p55
      %p57 = scmp.ne.s32.totalorder %s45, %s46
      %p58 = scmp.eq.s32.totalorder %s15, 1
      %p59 = por %p57, %p58
      %p61 = scmp.ne.s32.totalorder %s46, %s60
      %p62 = scmp.eq.s32.totalorder %s15, 0
      %p63 = por %p61, %p62
      %s65 = sadd.s32 %s64, 1
      %p68 = scmp.eq.s32.totalorder %s9, 1
      %p69 = scmp.ne.s32.totalorder %s64, %s66
      %p70 = scmp.eq.s32.totalorder %s9, 0
      %p71 = por %p69, %p70
      %p72 = scmp.ne.s32.totalorder %s64, %s66
      %p73 = scmp.eq.s32.totalorder %s14, 1
      %p74 = por %p72, %p73
      %p75 = scmp.ne.s32.totalorder %s66, %s67
      %p76 = scmp.eq.s32.totalorder %s14, 0
      %p77 = por %p75, %p76
      %p78 = scmp.ne.s32.totalorder %s66, %s67
      %p79 = scmp.eq.s32.totalorder %s15, 1
      %p80 = por %p78, %p79
      %p82 = scmp.ne.s32.totalorder %s67, %s81
      %p83 = scmp.eq.s32.totalorder %s15, 0
      %p84 = por %p82, %p83
      %s85 = ssub.s32 %s9, %s16
      %p86 = scmp.eq.s32.totalorder %s85, 0
      %s88 = sadd.s32 %s87, 1
      %s89 = scalar_select %p86, %s87, %s88
      %p92 = pneg %p86
      %p93 = scmp.eq.s32.totalorder %s9, 1
      %p94 = por %p92, %p93
      %p95 = scmp.ne.s32.totalorder %s87, %s90
      %p96 = scmp.eq.s32.totalorder %s9, 0
      %p97 = por %p95, %p96
      %p98 = scmp.ne.s32.totalorder %s87, %s90
      %p99 = scmp.eq.s32.totalorder %s14, 1
      %p100 = por %p98, %p99
      %p101 = scmp.ne.s32.totalorder %s90, %s91
      %p102 = scmp.eq.s32.totalorder %s14, 0
      %p103 = por %p101, %p102
      %p104 = scmp.ne.s32.totalorder %s90, %s91
      %p105 = scmp.eq.s32.totalorder %s15, 1
      %p106 = por %p104, %p105
      %p108 = scmp.ne.s32.totalorder %s91, %s107
      %p109 = scmp.eq.s32.totalorder %s15, 0
      %p110 = por %p108, %p109
      %p111 = scmp.le.s32.totalorder 1, %s9
      %p112 = scmp.lt.s32.totalorder %s9, 3
      %p113 = pnand %p111, %p112
      %p114 = pneg %p113
      // Predicated region
      $region9: #{unet3d_forward.10} parent=5 // pred_check
        _
      $region10: #{unet3d_forward.10} parent=5 // pred_check_branch
        %116 = sbr.rel (%p113) target = $region12
      $region11: #{unet3d_forward.10} parent=5 // pred_region
        %s117 = ssub.s32 %s9, 1
        // Predicated region
        $region13: #{unet3d_forward.10} parent=11 // pred_check
          %p118 = pneg %p56
        $region14: #{unet3d_forward.10} parent=11 // pred_check_branch
          %120 = sbr.rel (%p118) target = $region16
        $region15: #{unet3d_forward.10} parent=11 // pred_region
          _
        $region16: #{unet3d_forward.10} parent=11 // pred_fallthru
          _
        // Predicated region
        $region17: #{unet3d_forward.10} parent=11 // pred_check
          %p121 = pneg %p77
        $region18: #{unet3d_forward.10} parent=11 // pred_check_branch
          %123 = sbr.rel (%p121) target = $region20
        $region19: #{unet3d_forward.10} parent=11 // pred_region
          _
        $region20: #{unet3d_forward.10} parent=11 // pred_fallthru
          _
      $region12: #{unet3d_forward.10} parent=5 // pred_fallthru
        _
      %p124 = scmp.lt.s32.totalorder %s9, 2
      // Predicated region
      $region21: #{unet3d_forward.10} parent=5 // pred_check
        %p125 = pneg %p124
      $region22: #{unet3d_forward.10} parent=5 // pred_check_branch
        %127 = sbr.rel (%p125) target = $region24
      $region23: #{unet3d_forward.10} parent=5 // pred_region
        // Predicated region
        $region25: #{unet3d_forward.10} parent=23 // pred_check
          %p128 = pneg %p29
        $region26: #{unet3d_forward.10} parent=23 // pred_check_branch
          %130 = sbr.rel (%p128) target = $region28
        $region27: #{unet3d_forward.10} parent=23 // pred_region
          %s131 = sand.u32 %s19, 1
          %s132 = sand.u32 %s19, 1
          %s133 = smul.addr %s132, 16
          %s134 = scalar_lea.vmem [#allocation2], %s133
          %s135 = smul.addr %s9, 4
          %s136 = scalar_lea.vmem %s0, %s135
          // Predicated region
          $region29: #{unet3d_forward.10} parent=27 // pred_check
            _
          $region30: #{unet3d_forward.10} parent=27 // pred_check_branch
            %138 = sbr.rel (0) target = $region32
          $region31: #{unet3d_forward.10} parent=27 // pred_region
            // Predicated region
            $region33: #{unet3d_forward.10} parent=31 // pred_check
              _
            $region34: #{unet3d_forward.10} parent=31 // pred_check_branch
              %140 = sbr.rel target = $region36
            $region35: #{unet3d_forward.10} parent=31 // pred_region
              // Predicated region
              $region48: #{unet3d_forward.10} parent=35 // pred_check
                _
              $region49: #{unet3d_forward.10} parent=35 // pred_check_branch
                %162 = sbr.rel (0) target = $region51
              $region50: #{unet3d_forward.10} parent=35 // pred_region
                loop: start=0, step=1, limit=1
                $region52: #{unet3d_forward.10} parent=50 // loop_pre_header
                  _
                $region53: #{unet3d_forward.10} parent=50 // loop_header
                  %s164 = sphi 0, %s168
                  %p165 = scmp.ge.s32.totalorder %s164, 1
                  %s169 = sphi %s136, %s136
                  %s170 = sphi %s134, %s134
                $region54: #{unet3d_forward.10} parent=50 // loop_header_branch
                  %167 = sbr.rel (%p165) target = $region58
                $region55: #{unet3d_forward.10} parent=50 // loop_body
                  _
                $region56: #{unet3d_forward.10} parent=50 // loop_footer
                  %s168 = sadd.s32 1, %s164
                $region57: #{unet3d_forward.10} parent=50 // loop_footer_branch
                  %163 = sbr.rel target = $region53
                $region58: #{unet3d_forward.10} parent=50 // loop_exit
                  _
                %s172 = ssub.s32 16, 1
                loop: start=0, step=1, limit=1
                $region59: #{unet3d_forward.10} parent=50 // loop_pre_header
                  _
                $region60: #{unet3d_forward.10} parent=50 // loop_header
                  %s174 = sphi 0, %s178
                  %p175 = scmp.ge.s32.totalorder %s174, 1
                  %s179 = sphi %s136, %s136
                  %s180 = sphi %s134, %s134
                $region61: #{unet3d_forward.10} parent=50 // loop_header_branch
                  %177 = sbr.rel (%p175) target = $region65
                $region62: #{unet3d_forward.10} parent=50 // loop_body
                  %v181 = vld [vmem:[%s179] sm:%s172]
                  %182 = vst [vmem:[%s180] sm:%s172] %v181
                  %v183 = vld [vmem:[%s179 + $0x8] sm:%s172]
                  %184 = vst [vmem:[%s180 + $0x4] sm:%s172] %v183
                  %v185 = vld [vmem:[%s179 + $0x10] sm:%s172]
                  %186 = vst [vmem:[%s180 + $0x8] sm:%s172] %v185
                  %v187 = vld [vmem:[%s179 + $0x18] sm:%s172]
                  %188 = vst [vmem:[%s180 + $0xc] sm:%s172] %v187
                $region63: #{unet3d_forward.10} parent=50 // loop_footer
                  %s178 = sadd.s32 1, %s174
                $region64: #{unet3d_forward.10} parent=50 // loop_footer_branch
                  %173 = sbr.rel target = $region60
                $region65: #{unet3d_forward.10} parent=50 // loop_exit
                  _
              $region51: #{unet3d_forward.10} parent=35 // pred_fallthru
                _
            $region36: #{unet3d_forward.10} parent=31 // pred_fallthru
              _
            // Predicated region
            $region37: #{unet3d_forward.10} parent=31 // pred_check
              _
            $region38: #{unet3d_forward.10} parent=31 // pred_check_branch
              %142 = sbr.rel (0) target = $region40
            $region39: #{unet3d_forward.10} parent=31 // pred_region
              %s144 = ssub.s32 16, 1
              loop: start=0, step=1, limit=1
              $region41: #{unet3d_forward.10} parent=39 // loop_pre_header
                _
              $region42: #{unet3d_forward.10} parent=39 // loop_header
                %s146 = sphi 0, %s150
                %p147 = scmp.ge.s32.totalorder %s146, 1
                %s151 = sphi %s136, %s136
                %s152 = sphi %s134, %s134
              $region43: #{unet3d_forward.10} parent=39 // loop_header_branch
                %149 = sbr.rel (%p147) target = $region47
              $region44: #{unet3d_forward.10} parent=39 // loop_body
                %v153 = vld [vmem:[%s151] sm:%s144]
                %154 = vst [vmem:[%s152] sm:%s144] %v153
                %v155 = vld [vmem:[%s151 + $0x8] sm:%s144]
                %156 = vst [vmem:[%s152 + $0x4] sm:%s144] %v155
                %v157 = vld [vmem:[%s151 + $0x10] sm:%s144]
                %158 = vst [vmem:[%s152 + $0x8] sm:%s144] %v157
                %v159 = vld [vmem:[%s151 + $0x18] sm:%s144]
                %160 = vst [vmem:[%s152 + $0xc] sm:%s144] %v159
              $region45: #{unet3d_forward.10} parent=39 // loop_footer
                %s150 = sadd.s32 1, %s146
              $region46: #{unet3d_forward.10} parent=39 // loop_footer_branch
                %145 = sbr.rel target = $region42
              $region47: #{unet3d_forward.10} parent=39 // loop_exit
                _
            $region40: #{unet3d_forward.10} parent=31 // pred_fallthru
              _
          $region32: #{unet3d_forward.10} parent=27 // pred_fallthru
            _
          %189 = vnop
        $region28: #{unet3d_forward.10} parent=23 // pred_fallthru
          _
      $region24: #{unet3d_forward.10} parent=5 // pred_fallthru
        _
      %p190 = scmp.le.s32.totalorder 1, %s9
      %p191 = scmp.lt.s32.totalorder %s9, 3
      %p192 = pnand %p190, %p191
      %p193 = pneg %p192
      // Predicated region
      $region66: #{unet3d_forward.10} parent=5 // pred_check
        _
      $region67: #{unet3d_forward.10} parent=5 // pred_check_branch
        %195 = sbr.rel (%p192) target = $region69
      $region68: #{unet3d_forward.10} parent=5 // pred_region
        %s196 = ssub.s32 %s9, 1
        %s197 = sand.u32 %s22, 1
        %s198 = sand.u32 %s22, 1
        %s199 = smul.addr %s198, 16
        %s200 = scalar_lea.vmem [#allocation2], %s199
        // Predicated region
        $region70: #{unet3d_forward.10} parent=68 // pred_check
          %p201 = pneg %p35
        $region71: #{unet3d_forward.10} parent=68 // pred_check_branch
          %203 = sbr.rel (%p201) target = $region73
        $region72: #{unet3d_forward.10} parent=68 // pred_region
          _
        $region73: #{unet3d_forward.10} parent=68 // pred_fallthru
          _
        %s204 = sand.u32 %s22, 1
        %s205 = sand.u32 %s22, 1
        %s206 = smul.addr %s205, 16
        %s207 = scalar_lea.vmem [#allocation2], %s206
        %p208 = pneg %p35
        %p209 = pneg %p32
        %p210 = pneg %p56
        %p211 = pneg %p53
        %p212 = pneg %p77
        %p213 = pneg %p74
        %p214 = pneg %p103
        %p215 = pneg %p100
        %p216 = scmp.lt.s32.totalorder %s14, 1
        %s217 = scalar_select %p216, %s14, 1
        %s218 = smul.addr %s217, 2
        %s219 = scalar_lea.vmem %s3, %s218
        %p220 = scmp.lt.s32.totalorder %s14, 1
        %s221 = scalar_select %p220, %s14, 1
        %s222 = smul.addr %s221, 2
        %s223 = scalar_lea.vmem %s3, %s222
        %v225 = vld [vmem:[%s1] sm:$0xf]
        %v226 = vld [vmem:[%s200] sm:$0xf]
        %v227 = vld [vmem:[%s200 + $0x4] sm:$0xf]
        %v228 = vld [vmem:[%s200 + $0x8] sm:$0xf]
        %v229 = vld [vmem:[%s200 + $0xc] sm:$0x3]
        %v230 = vld [vmem:[%s2] sm:$0xff]
        %232 = vset.pattern.permute.xlu0 0
        %233 = vperm.xlu0 %232, %v230
        %v234 = vpop.permute.xlu0 %233
        %v240 = vunpack.c.l.b16 %v226
        %v241 = vunpack.c.l.b16 %v227
        %v242 = vunpack.c.l.b16 %v228
        %v243 = vunpack.c.l.b16 %v229
        %v244 = vpack.c.b16 %v241, %v240
        %v245 = vpack.c.b16 %v243, %v242
        %vm247 = vcmask 220160
        %v249 = vsel %vm247, %v225, 0
        %vm251 = vcmask 1044480
        %vm252 = vcmask 1045504
        %v253 = vsel %vm251, 4294967295, 65535
        %v254 = vsel %vm252, %v253, 0
        %v256 = vand.u32 %v245, %v254
        %258 = vmatpush.bf16.msra.mxu0 0
        %259 = vmatpush.bf16.msra.mxu0 0
        %260 = vmatpush.bf16.msra.mxu0 0
        %261 = vmatpush.bf16.msra.mxu0 0
        %262 = vmatpush.bf16.msra.mxu0 0
        %263 = vmatpush.bf16.msra.mxu0 0
        %264 = vmatpush.bf16.msra.mxu0 %v256
        %265 = vmatpush.bf16.msra.mxu0 %v244
        %266 = vmatmul.bf16.gmra.mxu0 %v249
        %v267 = vpop.f32.mrf.mxu0
        %v268 = vadd.f32 %v234, %v267
        %v269 = vpop.f32.mrf.mxu0
        %270 = vdwg.mxu0
        %vm271 = vcmp.ge.f32.partialorder %v268, 0.0
        %v272 = vmul.f32 %v268, 0.25
        %v273 = vsel %vm271, %v268, %v272
        %v275 = vrot.slane %v268, 4
        %v277 = vadd.f32 %v273, %v275
        %v278 = vpack.c.bf16 %v277, %v277
        %279 = vst [vmem:[%s223] sm:$0x3] %v278
        %p280 = scmp.lt.s32.totalorder %s14, 1
        %s281 = scalar_select %p280, %s14, 1
        %s282 = smul.addr %s281, 2
        %s283 = scalar_lea.vmem %s3, %s282
        // Predicated region
        $region74: #{unet3d_forward.10} parent=68 // pred_check
          %p284 = pneg %p100
        $region75: #{unet3d_forward.10} parent=68 // pred_check_branch
          %286 = sbr.rel (%p284) target = $region77
        $region76: #{unet3d_forward.10} parent=68 // pred_region
          _
        $region77: #{unet3d_forward.10} parent=68 // pred_fallthru
          _
      $region69: #{unet3d_forward.10} parent=5 // pred_fallthru
        _
      %p287 = scmp.le.s32.totalorder 2, %s9
      // Predicated region
      $region78: #{unet3d_forward.10} parent=5 // pred_check
        %p288 = pneg %p287
      $region79: #{unet3d_forward.10} parent=5 // pred_check_branch
        %290 = sbr.rel (%p288) target = $region81
      $region80: #{unet3d_forward.10} parent=5 // pred_region
        %s291 = ssub.s32 %s9, 2
        // Predicated region
        $region82: #{unet3d_forward.10} parent=80 // pred_check
          %p292 = pneg %p106
        $region83: #{unet3d_forward.10} parent=80 // pred_check_branch
          %294 = sbr.rel (%p292) target = $region85
        $region84: #{unet3d_forward.10} parent=80 // pred_region
          %p295 = scmp.lt.s32.totalorder %s15, 1
          %s296 = scalar_select %p295, %s15, 1
          %s297 = smul.addr %s296, 2
          %s298 = scalar_lea.vmem %s3, %s297
        $region85: #{unet3d_forward.10} parent=80 // pred_fallthru
          _
      $region81: #{unet3d_forward.10} parent=5 // pred_fallthru
        _
    $region6: #{unet3d_forward.10} parent=1 // loop_footer
      %s13 = sadd.s32 1, %s9
    $region7: #{unet3d_forward.10} parent=1 // loop_footer_branch
      %8 = sbr.rel target = $region3
    $region8: #{unet3d_forward.10} parent=1 // loop_exit
      _

// kernel: unet3d_forward.11
$region0: #{unet3d_forward.11}
  #allocation0 [shape = 'u32[]', space=smem, size = 0x4, offset = 0x4, fixed_abs, tag = 'smem constant byte address 0x4 - core index']
  #allocation1 [shape = 'u32[72,128]{1,0:T(1,128)}', space=vmem, size = 0x9000, scoped, tag = 'internal scratch']
  %s0 = inlined_call_operand.vmem [shape: bf16[108,32], index: 0, kind: input, shape index: {}]
  %s1 = inlined_call_operand.vmem [shape: bf16[16,108], index: 1, kind: input, shape index: {}]
  %s2 = inlined_call_operand.vmem [shape: f32[16,1], index: 2, kind: input, shape index: {}]
  %s3 = inlined_call_operand.vmem [shape: bf16[8,32], index: 3, kind: output, shape index: {}]
  %s4 = sld [smem:[#allocation0]]
  $region22: #{unet3d_forward.11} parent=0
    _
  %s6 = ssub.s32 1, %s4
  %s7 = scalar_select 0, %s6, %s4
  // Predicated region
  $region2: #{unet3d_forward.11} parent=0 // pred_check
    _
  $region3: #{unet3d_forward.11} parent=0 // pred_check_branch
    %9 = sbr.rel (0) target = $region5
  $region4: #{unet3d_forward.11} parent=0 // pred_region
    _
  $region5: #{unet3d_forward.11} parent=0 // pred_fallthru
    _
  // Predicated region
  $region6: #{unet3d_forward.11} parent=0 // pred_check
    _
  $region7: #{unet3d_forward.11} parent=0 // pred_check_branch
    %11 = sbr.rel (0) target = $region9
  $region8: #{unet3d_forward.11} parent=0 // pred_region
    _
  $region9: #{unet3d_forward.11} parent=0 // pred_fallthru
    _
  // Predicated region
  $region10: #{unet3d_forward.11} parent=0 // pred_check
    _
  $region11: #{unet3d_forward.11} parent=0 // pred_check_branch
    %13 = sbr.rel (0) target = $region13
  $region12: #{unet3d_forward.11} parent=0 // pred_region
    _
  $region13: #{unet3d_forward.11} parent=0 // pred_fallthru
    _
  %v15 = vld [vmem:[%s1] sm:$0xf]
  %v16 = vld [vmem:[%s1 + $0x4] sm:$0xf]
  %v17 = vld [vmem:[%s0] sm:$0xf]
  %v18 = vld [vmem:[%s0 + $0x4] sm:$0xf]
  %v19 = vld [vmem:[%s0 + $0x8] sm:$0xf]
  %v20 = vld [vmem:[%s0 + $0xc] sm:$0xf]
  %v21 = vld [vmem:[%s0 + $0x10] sm:$0xf]
  %v22 = vld [vmem:[%s0 + $0x14] sm:$0xf]
  %v23 = vld [vmem:[%s0 + $0x18] sm:$0xf]
  %v24 = vld [vmem:[%s0 + $0x1c] sm:$0xf]
  %v25 = vld [vmem:[%s0 + $0x20] sm:$0xf]
  %v26 = vld [vmem:[%s0 + $0x24] sm:$0xf]
  %v27 = vld [vmem:[%s0 + $0x28] sm:$0xf]
  %v28 = vld [vmem:[%s0 + $0x2c] sm:$0xf]
  %v29 = vld [vmem:[%s0 + $0x30] sm:$0xf]
  %v30 = vld [vmem:[%s0 + $0x34] sm:$0x3]
  %v31 = vld [vmem:[%s2] sm:$0xff]
  %v32 = vld [vmem:[%s2 + $0x8] sm:$0xff]
  %34 = vset.pattern.permute.xlu0 0
  %35 = vperm.xlu0 %34, %v31
  %v36 = vpop.permute.xlu0 %35
  %39 = vset.pattern.permute.xlu0 0
  %40 = vperm.xlu0 %39, %v32
  %v41 = vpop.permute.xlu0 %40
  %v45 = vunpack.c.l.b16 %v15
  %v46 = vunpack.c.l.b16 %v16
  %v47 = vpack.c.b16 %v46, %v45
  %v62 = vunpack.c.l.b16 %v17
  %v63 = vunpack.c.l.b16 %v18
  %v64 = vunpack.c.l.b16 %v19
  %v65 = vunpack.c.l.b16 %v20
  %v66 = vunpack.c.l.b16 %v21
  %v67 = vunpack.c.l.b16 %v22
  %v68 = vunpack.c.l.b16 %v23
  %v69 = vunpack.c.l.b16 %v24
  %v70 = vunpack.c.l.b16 %v25
  %v71 = vunpack.c.l.b16 %v26
  %v72 = vunpack.c.l.b16 %v27
  %v73 = vunpack.c.l.b16 %v28
  %v74 = vunpack.c.l.b16 %v29
  %v75 = vunpack.c.l.b16 %v30
  %v76 = vpack.c.b16 %v63, %v62
  %v77 = vpack.c.b16 %v65, %v64
  %v78 = vpack.c.b16 %v67, %v66
  %v79 = vpack.c.b16 %v69, %v68
  %v80 = vpack.c.b16 %v71, %v70
  %v81 = vpack.c.b16 %v73, %v72
  %v82 = vpack.c.b16 %v75, %v74
  %vm89 = vcmask 883712
  %v91 = vsel %vm89, %v47, 0
  %vm93 = vcmask 1045504
  %v95 = vsel %vm93, %v82, 0
  %97 = vmatpush.bf16.msra.mxu0 0
  %98 = vmatpush.bf16.msra.mxu0 %v95
  %99 = vmatpush.bf16.msra.mxu0 %v81
  %100 = vmatpush.bf16.msra.mxu0 %v80
  %101 = vmatpush.bf16.msra.mxu0 %v79
  %102 = vmatpush.bf16.msra.mxu0 %v78
  %103 = vmatpush.bf16.msra.mxu0 %v77
  %104 = vmatpush.bf16.msra.mxu0 %v76
  %105 = vmatmul.bf16.gmra.mxu0 %v91
  %v106 = vpop.f32.mrf.mxu0
  %v107 = vadd.f32 %v36, %v106
  %v108 = vpop.f32.mrf.mxu0
  %v109 = vadd.f32 %v41, %v108
  %110 = vdwg.mxu0
  %vm111 = vcmp.ge.f32.partialorder %v107, 0.0
  %v112 = vmul.f32 %v107, 0.25
  %v113 = vsel %vm111, %v107, %v112
  %v114 = vadd.f32 %v113, %v109
  %v115 = vpack.c.bf16 %v114, %v114
  %vm116 = vcmask 257024
  %117 = vst.msk [vmem:[%s3] sm:$0xf] %vm116, %v115
  // Predicated region
  $region14: #{unet3d_forward.11} parent=0 // pred_check
    _
  $region15: #{unet3d_forward.11} parent=0 // pred_check_branch
    %119 = sbr.rel (0) target = $region17
  $region16: #{unet3d_forward.11} parent=0 // pred_region
    _
  $region17: #{unet3d_forward.11} parent=0 // pred_fallthru
    _
  // Predicated region
  $region18: #{unet3d_forward.11} parent=0 // pred_check
    _
  $region19: #{unet3d_forward.11} parent=0 // pred_check_branch
    %121 = sbr.rel (0) target = $region21
  $region20: #{unet3d_forward.11} parent=0 // pred_region
    _
  $region21: #{unet3d_forward.11} parent=0 // pred_fallthru
    _

// kernel: unet3d_forward.12
$region0: #{unet3d_forward.12}
  #allocation0 [shape = 'u32[]', space=smem, size = 0x4, offset = 0x4, fixed_abs, tag = 'smem constant byte address 0x4 - core index']
  #allocation1 [shape = 'u32[72,128]{1,0:T(1,128)}', space=vmem, size = 0x9000, scoped, tag = 'internal scratch']
  %s0 = inlined_call_operand.vmem [shape: bf16[216,32], index: 0, kind: input, shape index: {}]
  %s1 = inlined_call_operand.vmem [shape: bf16[16,216], index: 1, kind: input, shape index: {}]
  %s2 = inlined_call_operand.vmem [shape: f32[16,1], index: 2, kind: input, shape index: {}]
  %s3 = inlined_call_operand.vmem [shape: bf16[16,8], index: 3, kind: input, shape index: {}]
  %s4 = inlined_call_operand.vmem [shape: f32[16,1], index: 4, kind: input, shape index: {}]
  %s5 = inlined_call_operand.vmem [shape: bf16[16,32], index: 5, kind: output, shape index: {}]
  %s6 = sld [smem:[#allocation0]]
  $region30: #{unet3d_forward.12} parent=0
    _
  %s8 = ssub.s32 1, %s6
  %s9 = scalar_select 0, %s8, %s6
  // Predicated region
  $region2: #{unet3d_forward.12} parent=0 // pred_check
    _
  $region3: #{unet3d_forward.12} parent=0 // pred_check_branch
    %11 = sbr.rel (0) target = $region5
  $region4: #{unet3d_forward.12} parent=0 // pred_region
    _
  $region5: #{unet3d_forward.12} parent=0 // pred_fallthru
    _
  // Predicated region
  $region6: #{unet3d_forward.12} parent=0 // pred_check
    _
  $region7: #{unet3d_forward.12} parent=0 // pred_check_branch
    %13 = sbr.rel (0) target = $region9
  $region8: #{unet3d_forward.12} parent=0 // pred_region
    _
  $region9: #{unet3d_forward.12} parent=0 // pred_fallthru
    _
  // Predicated region
  $region10: #{unet3d_forward.12} parent=0 // pred_check
    _
  $region11: #{unet3d_forward.12} parent=0 // pred_check_branch
    %15 = sbr.rel (0) target = $region13
  $region12: #{unet3d_forward.12} parent=0 // pred_region
    _
  $region13: #{unet3d_forward.12} parent=0 // pred_fallthru
    _
  // Predicated region
  $region14: #{unet3d_forward.12} parent=0 // pred_check
    _
  $region15: #{unet3d_forward.12} parent=0 // pred_check_branch
    %17 = sbr.rel (0) target = $region17
  $region16: #{unet3d_forward.12} parent=0 // pred_region
    _
  $region17: #{unet3d_forward.12} parent=0 // pred_fallthru
    _
  // Predicated region
  $region18: #{unet3d_forward.12} parent=0 // pred_check
    _
  $region19: #{unet3d_forward.12} parent=0 // pred_check_branch
    %19 = sbr.rel (0) target = $region21
  $region20: #{unet3d_forward.12} parent=0 // pred_region
    _
  $region21: #{unet3d_forward.12} parent=0 // pred_fallthru
    _
  %v21 = vld [vmem:[%s0] sm:$0xf]
  %v22 = vld [vmem:[%s0 + $0x4] sm:$0xf]
  %v23 = vld [vmem:[%s0 + $0x8] sm:$0xf]
  %v24 = vld [vmem:[%s0 + $0xc] sm:$0xf]
  %v25 = vld [vmem:[%s0 + $0x10] sm:$0xf]
  %v26 = vld [vmem:[%s0 + $0x14] sm:$0xf]
  %v27 = vld [vmem:[%s0 + $0x18] sm:$0xf]
  %v28 = vld [vmem:[%s0 + $0x1c] sm:$0xf]
  %v29 = vld [vmem:[%s0 + $0x20] sm:$0xf]
  %v30 = vld [vmem:[%s0 + $0x24] sm:$0xf]
  %v31 = vld [vmem:[%s0 + $0x28] sm:$0xf]
  %v32 = vld [vmem:[%s0 + $0x2c] sm:$0xf]
  %v33 = vld [vmem:[%s0 + $0x30] sm:$0xf]
  %v34 = vld [vmem:[%s0 + $0x34] sm:$0xf]
  %v35 = vld [vmem:[%s0 + $0x38] sm:$0xf]
  %v36 = vld [vmem:[%s0 + $0x3c] sm:$0xf]
  %v37 = vld [vmem:[%s0 + $0x40] sm:$0xf]
  %v38 = vld [vmem:[%s0 + $0x44] sm:$0xf]
  %v39 = vld [vmem:[%s0 + $0x48] sm:$0xf]
  %v40 = vld [vmem:[%s0 + $0x4c] sm:$0xf]
  %v41 = vld [vmem:[%s0 + $0x50] sm:$0xf]
  %v42 = vld [vmem:[%s0 + $0x54] sm:$0xf]
  %v43 = vld [vmem:[%s0 + $0x58] sm:$0xf]
  %v44 = vld [vmem:[%s0 + $0x5c] sm:$0xf]
  %v45 = vld [vmem:[%s0 + $0x60] sm:$0xf]
  %v46 = vld [vmem:[%s0 + $0x64] sm:$0xf]
  %v47 = vld [vmem:[%s0 + $0x68] sm:$0xf]
  %v48 = vld [vmem:[%s1] sm:$0xff]
  %v49 = vld [vmem:[%s1 + $0x8] sm:$0xff]
  %v50 = vld [vmem:[%s2] sm:$0xff]
  %v51 = vld [vmem:[%s2 + $0x8] sm:$0xff]
  %53 = vset.pattern.permute.xlu0 0
  %54 = vperm.xlu0 %53, %v50
  %v55 = vpop.permute.xlu0 %54
  %58 = vset.pattern.permute.xlu0 0
  %59 = vperm.xlu0 %58, %v51
  %v60 = vpop.permute.xlu0 %59
  %v64 = vunpack.c.l.b16 %v48
  %v65 = vunpack.c.h.b16 %v48
  %v66 = vunpack.c.l.b16 %v49
  %v67 = vunpack.c.h.b16 %v49
  %v68 = vpack.c.b16 %v66, %v64
  %v69 = vpack.c.b16 %v67, %v65
  %v98 = vunpack.c.l.b16 %v21
  %v99 = vunpack.c.l.b16 %v22
  %v100 = vunpack.c.l.b16 %v23
  %v101 = vunpack.c.l.b16 %v24
  %v102 = vunpack.c.l.b16 %v25
  %v103 = vunpack.c.l.b16 %v26
  %v104 = vunpack.c.l.b16 %v27
  %v105 = vunpack.c.l.b16 %v28
  %v106 = vunpack.c.l.b16 %v29
  %v107 = vunpack.c.l.b16 %v30
  %v108 = vunpack.c.l.b16 %v31
  %v109 = vunpack.c.l.b16 %v32
  %v110 = vunpack.c.l.b16 %v33
  %v111 = vunpack.c.l.b16 %v34
  %v112 = vunpack.c.l.b16 %v35
  %v113 = vunpack.c.l.b16 %v36
  %v114 = vunpack.c.l.b16 %v37
  %v115 = vunpack.c.l.b16 %v38
  %v116 = vunpack.c.l.b16 %v39
  %v117 = vunpack.c.l.b16 %v40
  %v118 = vunpack.c.l.b16 %v41
  %v119 = vunpack.c.l.b16 %v42
  %v120 = vunpack.c.l.b16 %v43
  %v121 = vunpack.c.l.b16 %v44
  %v122 = vunpack.c.l.b16 %v45
  %v123 = vunpack.c.l.b16 %v46
  %v124 = vunpack.c.l.b16 %v47
  %v125 = vpack.c.b16 %v99, %v98
  %v126 = vpack.c.b16 %v101, %v100
  %v127 = vpack.c.b16 %v103, %v102
  %v128 = vpack.c.b16 %v105, %v104
  %v129 = vpack.c.b16 %v107, %v106
  %v130 = vpack.c.b16 %v109, %v108
  %v131 = vpack.c.b16 %v111, %v110
  %v132 = vpack.c.b16 %v113, %v112
  %v133 = vpack.c.b16 %v115, %v114
  %v134 = vpack.c.b16 %v117, %v116
  %v135 = vpack.c.b16 %v119, %v118
  %v136 = vpack.c.b16 %v121, %v120
  %v137 = vpack.c.b16 %v123, %v122
  %v138 = vpack.c.b16 %v124, %v124
  %vm152 = vcmask 719872
  %v154 = vsel %vm152, %v69, 0
  %vm156 = vcmask 1043456
  %v158 = vsel %vm156, %v138, 0
  %160 = vmatpush.bf16.msra.mxu0 %v132
  %161 = vmatpush.bf16.msra.mxu0 %v131
  %162 = vmatpush.bf16.msra.mxu0 %v130
  %163 = vmatpush.bf16.msra.mxu0 %v129
  %164 = vmatpush.bf16.msra.mxu0 %v128
  %165 = vmatpush.bf16.msra.mxu0 %v127
  %166 = vmatpush.bf16.msra.mxu0 %v126
  %167 = vmatpush.bf16.msra.mxu0 %v125
  %168 = vmatmul.bf16.gmra.mxu0 %v68
  %v169 = vpop.f32.mrf.mxu0
  %v170 = vadd.f32 %v55, %v169
  %v171 = vpop.f32.mrf.mxu0
  %v172 = vadd.f32 %v60, %v171
  %173 = vdwg.mxu0
  %174 = vmatpush.bf16.msra.mxu0 0
  %175 = vmatpush.bf16.msra.mxu0 0
  %176 = vmatpush.bf16.msra.mxu0 %v158
  %177 = vmatpush.bf16.msra.mxu0 %v137
  %178 = vmatpush.bf16.msra.mxu0 %v136
  %179 = vmatpush.bf16.msra.mxu0 %v135
  %180 = vmatpush.bf16.msra.mxu0 %v134
  %181 = vmatpush.bf16.msra.mxu0 %v133
  %182 = vmatmul.bf16.gmra.mxu0 %v154
  %v183 = vpop.f32.mrf.mxu0
  %v184 = vadd.f32 %v170, %v183
  %v185 = vpop.f32.mrf.mxu0
  %v186 = vadd.f32 %v172, %v185
  %187 = vdwg.mxu0
  %vm188 = vcmp.ge.f32.partialorder %v184, 0.0
  %vm189 = vcmp.ge.f32.partialorder %v186, 0.0
  %v190 = vmul.f32 %v184, 0.25
  %v191 = vmul.f32 %v186, 0.25
  %v192 = vsel %vm188, %v184, %v190
  %v193 = vsel %vm189, %v186, %v191
  %v194 = vld [vmem:[%s3] sm:$0xf]
  %v195 = vld [vmem:[%s3 + $0x4] sm:$0xf]
  %v196 = vld [vmem:[%s4] sm:$0xff]
  %v197 = vld [vmem:[%s4 + $0x8] sm:$0xff]
  %199 = vset.pattern.permute.xlu0 0
  %200 = vperm.xlu0 %199, %v196
  %v201 = vpop.permute.xlu0 %200
  %204 = vset.pattern.permute.xlu0 0
  %205 = vperm.xlu0 %204, %v197
  %v206 = vpop.permute.xlu0 %205
  %v210 = vunpack.c.l.b16 %v194
  %v211 = vunpack.c.l.b16 %v195
  %v212 = vpack.c.b16 %v211, %v210
  %vm213 = vcmask 64512
  %v215 = vsel %vm213, %v212, 0
  %v218 = vsel %vm156, %v34, 0
  %220 = vmatpush.bf16.msra.mxu0 0
  %221 = vmatpush.bf16.msra.mxu0 0
  %222 = vmatpush.bf16.msra.mxu0 0
  %223 = vmatpush.bf16.msra.mxu0 0
  %224 = vmatpush.bf16.msra.mxu0 0
  %225 = vmatpush.bf16.msra.mxu0 0
  %226 = vmatpush.bf16.msra.mxu0 0
  %227 = vmatpush.bf16.msra.mxu0 %v218
  %228 = vmatmul.bf16.gmra.mxu0 %v215
  %v229 = vpop.f32.mrf.mxu0
  %v230 = vadd.f32 %v201, %v229
  %v231 = vpop.f32.mrf.mxu0
  %v232 = vadd.f32 %v206, %v231
  %233 = vdwg.mxu0
  %v234 = vadd.f32 %v192, %v230
  %v235 = vadd.f32 %v193, %v232
  %v236 = vpack.c.bf16 %v234, %v234
  %v237 = vpack.c.bf16 %v235, %v235
  %vm238 = vcmask 257024
  %239 = vst.msk [vmem:[%s5] sm:$0xf] %vm238, %v236
  %240 = vst.msk [vmem:[%s5 + $0x4] sm:$0xf] %vm238, %v237
  // Predicated region
  $region22: #{unet3d_forward.12} parent=0 // pred_check
    _
  $region23: #{unet3d_forward.12} parent=0 // pred_check_branch
    %242 = sbr.rel (0) target = $region25
  $region24: #{unet3d_forward.12} parent=0 // pred_region
    _
  $region25: #{unet3d_forward.12} parent=0 // pred_fallthru
    _
  // Predicated region
  $region26: #{unet3d_forward.12} parent=0 // pred_check
    _
  $region27: #{unet3d_forward.12} parent=0 // pred_check_branch
    %244 = sbr.rel (0) target = $region29
  $region28: #{unet3d_forward.12} parent=0 // pred_region
    _
  $region29: #{unet3d_forward.12} parent=0 // pred_fallthru
    _

// kernel: unet3d_forward.13
$region0: #{unet3d_forward.13}
  #allocation0 [shape = 'u32[]', space=smem, size = 0x4, offset = 0x4, fixed_abs, tag = 'smem constant byte address 0x4 - core index']
  #allocation1 [shape = 'u32[72,128]{1,0:T(1,128)}', space=vmem, size = 0x9000, scoped, tag = 'internal scratch']
  %s0 = inlined_call_operand.vmem [shape: bf16[32,16], index: 0, kind: input, shape index: {}]
  %s1 = inlined_call_operand.vmem [shape: bf16[16,32], index: 1, kind: input, shape index: {}]
  %s2 = inlined_call_operand.vmem [shape: f32[32,16], index: 2, kind: input, shape index: {}]
  %s3 = inlined_call_operand.vmem [shape: f32[32,1], index: 3, kind: input, shape index: {}]
  %s4 = inlined_call_operand.vmem [shape: f32[16,32], index: 4, kind: input, shape index: {}]
  %s5 = inlined_call_operand.vmem [shape: f32[16,1], index: 5, kind: input, shape index: {}]
  %s6 = inlined_call_operand.vmem [shape: bf16[16,16], index: 6, kind: output, shape index: {}]
  %s7 = sld [smem:[#allocation0]]
  $region34: #{unet3d_forward.13} parent=0
    _
  %s9 = ssub.s32 1, %s7
  %s10 = scalar_select 0, %s9, %s7
  // Predicated region
  $region2: #{unet3d_forward.13} parent=0 // pred_check
    _
  $region3: #{unet3d_forward.13} parent=0 // pred_check_branch
    %12 = sbr.rel (0) target = $region5
  $region4: #{unet3d_forward.13} parent=0 // pred_region
    _
  $region5: #{unet3d_forward.13} parent=0 // pred_fallthru
    _
  // Predicated region
  $region6: #{unet3d_forward.13} parent=0 // pred_check
    _
  $region7: #{unet3d_forward.13} parent=0 // pred_check_branch
    %14 = sbr.rel (0) target = $region9
  $region8: #{unet3d_forward.13} parent=0 // pred_region
    _
  $region9: #{unet3d_forward.13} parent=0 // pred_fallthru
    _
  // Predicated region
  $region10: #{unet3d_forward.13} parent=0 // pred_check
    _
  $region11: #{unet3d_forward.13} parent=0 // pred_check_branch
    %16 = sbr.rel (0) target = $region13
  $region12: #{unet3d_forward.13} parent=0 // pred_region
    _
  $region13: #{unet3d_forward.13} parent=0 // pred_fallthru
    _
  // Predicated region
  $region14: #{unet3d_forward.13} parent=0 // pred_check
    _
  $region15: #{unet3d_forward.13} parent=0 // pred_check_branch
    %18 = sbr.rel (0) target = $region17
  $region16: #{unet3d_forward.13} parent=0 // pred_region
    _
  $region17: #{unet3d_forward.13} parent=0 // pred_fallthru
    _
  // Predicated region
  $region18: #{unet3d_forward.13} parent=0 // pred_check
    _
  $region19: #{unet3d_forward.13} parent=0 // pred_check_branch
    %20 = sbr.rel (0) target = $region21
  $region20: #{unet3d_forward.13} parent=0 // pred_region
    _
  $region21: #{unet3d_forward.13} parent=0 // pred_fallthru
    _
  // Predicated region
  $region22: #{unet3d_forward.13} parent=0 // pred_check
    _
  $region23: #{unet3d_forward.13} parent=0 // pred_check_branch
    %22 = sbr.rel (0) target = $region25
  $region24: #{unet3d_forward.13} parent=0 // pred_region
    _
  $region25: #{unet3d_forward.13} parent=0 // pred_fallthru
    _
  %v24 = vld [vmem:[%s1] sm:$0xf]
  %v25 = vld [vmem:[%s1 + $0x4] sm:$0xf]
  %v26 = vld [vmem:[%s0] sm:$0xf]
  %v27 = vld [vmem:[%s0 + $0x4] sm:$0xf]
  %v28 = vld [vmem:[%s0 + $0x8] sm:$0xf]
  %v29 = vld [vmem:[%s0 + $0xc] sm:$0xf]
  %v32 = vunpack.c.l.b16 %v24
  %v33 = vunpack.c.l.b16 %v25
  %v34 = vpack.c.b16 %v33, %v32
  %v39 = vunpack.c.l.b16 %v26
  %v40 = vunpack.c.l.b16 %v27
  %v41 = vunpack.c.l.b16 %v28
  %v42 = vunpack.c.l.b16 %v29
  %v43 = vpack.c.b16 %v40, %v39
  %v44 = vpack.c.b16 %v42, %v41
  %vm47 = vcmask 261120
  %v49 = vsel %vm47, %v34, 0
  %51 = vmatpush.bf16.msra.mxu0 0
  %52 = vmatpush.bf16.msra.mxu0 0
  %53 = vmatpush.bf16.msra.mxu0 0
  %54 = vmatpush.bf16.msra.mxu0 0
  %55 = vmatpush.bf16.msra.mxu0 0
  %56 = vmatpush.bf16.msra.mxu0 0
  %57 = vmatpush.bf16.msra.mxu0 %v44
  %58 = vmatpush.bf16.msra.mxu0 %v43
  %59 = vmatmul.bf16.gmra.mxu0 %v49
  %v60 = vpop.f32.mrf.mxu0
  %v61 = vadd.f32 0.0, %v60
  %v62 = vpop.f32.mrf.mxu0
  %v63 = vadd.f32 0.0, %v62
  %64 = vdwg.mxu0
  %v65 = vlaneseq
  %v66 = vand.u32 %v65, 127
  %vm67 = vcmp.ge.s32.totalorder %v66, 0
  %vm68 = vcmp.lt.s32.totalorder %v66, 8
  %vm69 = vmand %vm67, %vm68
  %v70 = vsel %vm69, %v61, 0.0
  %v71 = vsel %vm69, %v63, 0.0
  %vm72 = vcmask 130048
  %v73 = vsel %vm72, %v70, 0.0
  %74 = vadd.xlane.f32.xlu0 %v73
  %v75 = vpop.xlane.xlu0 %74
  %v76 = vsel %vm72, %v71, 0.0
  %77 = vadd.xlane.f32.xlu0 %v76
  %v78 = vpop.xlane.xlu0 %77
  %v79 = vmul.f32 %v75, 0.125
  %v80 = vmul.f32 %v78, 0.125
  %v81 = vld [vmem:[%s2] sm:$0xff]
  %v82 = vld [vmem:[%s2 + $0x8] sm:$0xff]
  %v83 = vld [vmem:[%s2 + $0x10] sm:$0xff]
  %v84 = vld [vmem:[%s2 + $0x18] sm:$0xff]
  %v85 = vld [vmem:[%s3] sm:$0xff]
  %v86 = vld [vmem:[%s3 + $0x8] sm:$0xff]
  %v87 = vld [vmem:[%s3 + $0x10] sm:$0xff]
  %v88 = vld [vmem:[%s3 + $0x18] sm:$0xff]
  %v90 = vsel %vm72, %v81, 0
  %v93 = vsel %vm72, %v82, 0
  %v96 = vsel %vm72, %v83, 0
  %v99 = vsel %vm72, %v84, 0
  %101 = vmatpush.msra.mxu0 0.0
  %102 = vmatpush.msra.mxu0 0.0
  %103 = vmatpush.msra.mxu0 0.0
  %104 = vmatpush.msra.mxu0 0.0
  %105 = vmatpush.msra.mxu0 0.0
  %106 = vmatpush.msra.mxu0 0.0
  %107 = vmatpush.msra.mxu0 0.0
  %108 = vmatpush.msra.mxu0 0.0
  %109 = vmatpush.msra.mxu0 0.0
  %110 = vmatpush.msra.mxu0 0.0
  %111 = vmatpush.msra.mxu0 0.0
  %112 = vmatpush.msra.mxu0 0.0
  %113 = vmatpush.msra.mxu0 0.0
  %114 = vmatpush.msra.mxu0 0.0
  %115 = vmatpush.msra.mxu0 %v80
  %116 = vmatpush.msra.mxu0 %v79
  %117 = vmatmul.f32.gmra.mxu0 %v90
  %v118 = vpop.f32.mrf.mxu0
  %v119 = vadd.f32 %v85, %v118
  %120 = vmatmul.f32.gmra.mxu0 %v93
  %v121 = vpop.f32.mrf.mxu0
  %v122 = vadd.f32 %v86, %v121
  %123 = vmatmul.f32.gmra.mxu0 %v96
  %v124 = vpop.f32.mrf.mxu0
  %v125 = vadd.f32 %v87, %v124
  %126 = vmatmul.f32.gmra.mxu0 %v99
  %v127 = vpop.f32.mrf.mxu0
  %v128 = vadd.f32 %v88, %v127
  %129 = vdwg.mxu0
  %vm130 = vcmp.ge.f32.partialorder %v119, 0.0
  %vm131 = vcmp.ge.f32.partialorder %v122, 0.0
  %vm132 = vcmp.ge.f32.partialorder %v125, 0.0
  %vm133 = vcmp.ge.f32.partialorder %v128, 0.0
  %v134 = vmul.f32 %v119, 0.2
  %v135 = vmul.f32 %v122, 0.2
  %v136 = vmul.f32 %v125, 0.2
  %v137 = vmul.f32 %v128, 0.2
  %v138 = vsel %vm130, %v119, %v134
  %v139 = vsel %vm131, %v122, %v135
  %v140 = vsel %vm132, %v125, %v136
  %v141 = vsel %vm133, %v128, %v137
  %v142 = vld [vmem:[%s4] sm:$0xff]
  %v143 = vld [vmem:[%s4 + $0x8] sm:$0xff]
  %v145 = vsel %vm47, %v142, 0
  %v148 = vsel %vm47, %v143, 0
  %150 = vmatpush.msra.mxu0 0.0
  %151 = vmatpush.msra.mxu0 0.0
  %152 = vmatpush.msra.mxu0 0.0
  %153 = vmatpush.msra.mxu0 0.0
  %154 = vmatpush.msra.mxu0 0.0
  %155 = vmatpush.msra.mxu0 0.0
  %156 = vmatpush.msra.mxu0 0.0
  %157 = vmatpush.msra.mxu0 0.0
  %158 = vmatpush.msra.mxu0 0.0
  %159 = vmatpush.msra.mxu0 0.0
  %160 = vmatpush.msra.mxu0 0.0
  %161 = vmatpush.msra.mxu0 0.0
  %162 = vmatpush.msra.mxu0 %v141
  %163 = vmatpush.msra.mxu0 %v140
  %164 = vmatpush.msra.mxu0 %v139
  %165 = vmatpush.msra.mxu0 %v138
  %166 = vmatmul.f32.gmra.mxu0 %v145
  %v167 = vpop.f32.mrf.mxu0
  %v168 = vadd.f32 0.0, %v167
  %169 = vmatmul.f32.gmra.mxu0 %v148
  %v170 = vpop.f32.mrf.mxu0
  %v171 = vadd.f32 0.0, %v170
  %172 = vdwg.mxu0
  %v173 = vadd.f32 %v79, %v168
  %v174 = vadd.f32 %v80, %v171
  %v175 = vld [vmem:[%s5] sm:$0xff]
  %v176 = vld [vmem:[%s5 + $0x8] sm:$0xff]
  %v177 = vadd.f32 %v173, %v175
  %v178 = vadd.f32 %v174, %v176
  %v179 = vxor.u32 %v177, 2147483648
  %v180 = vxor.u32 %v178, 2147483648
  %v181 = vmul.f32 %v179, 1.442695
  %v182 = vpow.pop %v181
  %v183 = vmul.f32 %v180, 1.442695
  %v184 = vpow.pop %v183
  %v185 = vadd.f32 %v182, 1.0
  %v186 = vadd.f32 %v184, 1.0
  %v187 = vrcp.pop %v185
  %v188 = vmul.f32 %v185, %v187
  %v189 = vsub.f32 1.0, %v188
  %v190 = vmul.f32 %v187, %v189
  %v191 = vadd.f32 %v187, %v190
  %vm192 = vweird.f32 %v185
  %vm193 = vweird.f32 %v187
  %vm194 = vmor %vm192, %vm193
  %v195 = vsel %vm194, %v187, %v191
  %v196 = vand.u32 2147483647, %v185
  %vm197 = vcmp.eq.f32.partialorder %v196, 8.507059e+37
  %v198 = vand.u32 %v185, 2147483648
  %v199 = vor.u32 1.1754944e-38, %v198
  %v200 = vsel %vm197, %v199, %v195
  %v201 = vmul.f32 1.0, %v200
  %v202 = vrcp.pop %v186
  %v203 = vmul.f32 %v186, %v202
  %v204 = vsub.f32 1.0, %v203
  %v205 = vmul.f32 %v202, %v204
  %v206 = vadd.f32 %v202, %v205
  %vm207 = vweird.f32 %v186
  %vm208 = vweird.f32 %v202
  %vm209 = vmor %vm207, %vm208
  %v210 = vsel %vm209, %v202, %v206
  %v211 = vand.u32 2147483647, %v186
  %vm212 = vcmp.eq.f32.partialorder %v211, 8.507059e+37
  %v213 = vand.u32 %v186, 2147483648
  %v214 = vor.u32 1.1754944e-38, %v213
  %v215 = vsel %vm212, %v214, %v210
  %v216 = vmul.f32 1.0, %v215
  %218 = vset.pattern.permute.xlu0 0
  %219 = vperm.xlu0 %218, %v201
  %v220 = vpop.permute.xlu0 %219
  %223 = vset.pattern.permute.xlu0 0
  %224 = vperm.xlu0 %223, %v216
  %v225 = vpop.permute.xlu0 %224
  %v227 = vsel %vm69, %v220, 0.0
  %v228 = vsel %vm69, %v225, 0.0
  %vm229 = vcmp.ge.s32.totalorder %v66, 8
  %vm230 = vcmp.lt.s32.totalorder %v66, 16
  %vm231 = vmand %vm229, %vm230
  %v232 = vsel %vm231, %v61, 0.0
  %v233 = vsel %vm231, %v63, 0.0
  %v234 = vsel %vm72, %v232, 0.0
  %235 = vadd.xlane.f32.xlu0 %v234
  %v236 = vpop.xlane.xlu0 %235
  %v237 = vsel %vm72, %v233, 0.0
  %238 = vadd.xlane.f32.xlu0 %v237
  %v239 = vpop.xlane.xlu0 %238
  %v240 = vmul.f32 %v236, 0.125
  %v241 = vmul.f32 %v239, 0.125
  %242 = vmatpush.msra.mxu0 0.0
  %243 = vmatpush.msra.mxu0 0.0
  %244 = vmatpush.msra.mxu0 0.0
  %245 = vmatpush.msra.mxu0 0.0
  %246 = vmatpush.msra.mxu0 0.0
  %247 = vmatpush.msra.mxu0 0.0
  %248 = vmatpush.msra.mxu0 0.0
  %249 = vmatpush.msra.mxu0 0.0
  %250 = vmatpush.msra.mxu0 0.0
  %251 = vmatpush.msra.mxu0 0.0
  %252 = vmatpush.msra.mxu0 0.0
  %253 = vmatpush.msra.mxu0 0.0
  %254 = vmatpush.msra.mxu0 0.0
  %255 = vmatpush.msra.mxu0 0.0
  %256 = vmatpush.msra.mxu0 %v241
  %257 = vmatpush.msra.mxu0 %v240
  %258 = vmatmul.f32.gmra.mxu0 %v90
  %v259 = vpop.f32.mrf.mxu0
  %v260 = vadd.f32 %v85, %v259
  %261 = vmatmul.f32.gmra.mxu0 %v93
  %v262 = vpop.f32.mrf.mxu0
  %v263 = vadd.f32 %v86, %v262
  %264 = vmatmul.f32.gmra.mxu0 %v96
  %v265 = vpop.f32.mrf.mxu0
  %v266 = vadd.f32 %v87, %v265
  %267 = vmatmul.f32.gmra.mxu0 %v99
  %v268 = vpop.f32.mrf.mxu0
  %v269 = vadd.f32 %v88, %v268
  %270 = vdwg.mxu0
  %vm271 = vcmp.ge.f32.partialorder %v260, 0.0
  %vm272 = vcmp.ge.f32.partialorder %v263, 0.0
  %vm273 = vcmp.ge.f32.partialorder %v266, 0.0
  %vm274 = vcmp.ge.f32.partialorder %v269, 0.0
  %v275 = vmul.f32 %v260, 0.2
  %v276 = vmul.f32 %v263, 0.2
  %v277 = vmul.f32 %v266, 0.2
  %v278 = vmul.f32 %v269, 0.2
  %v279 = vsel %vm271, %v260, %v275
  %v280 = vsel %vm272, %v263, %v276
  %v281 = vsel %vm273, %v266, %v277
  %v282 = vsel %vm274, %v269, %v278
  %283 = vmatpush.msra.mxu0 0.0
  %284 = vmatpush.msra.mxu0 0.0
  %285 = vmatpush.msra.mxu0 0.0
  %286 = vmatpush.msra.mxu0 0.0
  %287 = vmatpush.msra.mxu0 0.0
  %288 = vmatpush.msra.mxu0 0.0
  %289 = vmatpush.msra.mxu0 0.0
  %290 = vmatpush.msra.mxu0 0.0
  %291 = vmatpush.msra.mxu0 0.0
  %292 = vmatpush.msra.mxu0 0.0
  %293 = vmatpush.msra.mxu0 0.0
  %294 = vmatpush.msra.mxu0 0.0
  %295 = vmatpush.msra.mxu0 %v282
  %296 = vmatpush.msra.mxu0 %v281
  %297 = vmatpush.msra.mxu0 %v280
  %298 = vmatpush.msra.mxu0 %v279
  %299 = vmatmul.f32.gmra.mxu0 %v145
  %v300 = vpop.f32.mrf.mxu0
  %v301 = vadd.f32 0.0, %v300
  %302 = vmatmul.f32.gmra.mxu0 %v148
  %v303 = vpop.f32.mrf.mxu0
  %v304 = vadd.f32 0.0, %v303
  %305 = vdwg.mxu0
  %v306 = vadd.f32 %v240, %v301
  %v307 = vadd.f32 %v241, %v304
  %v308 = vadd.f32 %v306, %v175
  %v309 = vadd.f32 %v307, %v176
  %v310 = vxor.u32 %v308, 2147483648
  %v311 = vxor.u32 %v309, 2147483648
  %v312 = vmul.f32 %v310, 1.442695
  %v313 = vpow.pop %v312
  %v314 = vmul.f32 %v311, 1.442695
  %v315 = vpow.pop %v314
  %v316 = vadd.f32 %v313, 1.0
  %v317 = vadd.f32 %v315, 1.0
  %v318 = vrcp.pop %v316
  %v319 = vmul.f32 %v316, %v318
  %v320 = vsub.f32 1.0, %v319
  %v321 = vmul.f32 %v318, %v320
  %v322 = vadd.f32 %v318, %v321
  %vm323 = vweird.f32 %v316
  %vm324 = vweird.f32 %v318
  %vm325 = vmor %vm323, %vm324
  %v326 = vsel %vm325, %v318, %v322
  %v327 = vand.u32 2147483647, %v316
  %vm328 = vcmp.eq.f32.partialorder %v327, 8.507059e+37
  %v329 = vand.u32 %v316, 2147483648
  %v330 = vor.u32 1.1754944e-38, %v329
  %v331 = vsel %vm328, %v330, %v326
  %v332 = vmul.f32 1.0, %v331
  %v333 = vrcp.pop %v317
  %v334 = vmul.f32 %v317, %v333
  %v335 = vsub.f32 1.0, %v334
  %v336 = vmul.f32 %v333, %v335
  %v337 = vadd.f32 %v333, %v336
  %vm338 = vweird.f32 %v317
  %vm339 = vweird.f32 %v333
  %vm340 = vmor %vm338, %vm339
  %v341 = vsel %vm340, %v333, %v337
  %v342 = vand.u32 2147483647, %v317
  %vm343 = vcmp.eq.f32.partialorder %v342, 8.507059e+37
  %v344 = vand.u32 %v317, 2147483648
  %v345 = vor.u32 1.1754944e-38, %v344
  %v346 = vsel %vm343, %v345, %v341
  %v347 = vmul.f32 1.0, %v346
  %349 = vset.pattern.permute.xlu0 0
  %350 = vperm.xlu0 %349, %v332
  %v351 = vpop.permute.xlu0 %350
  %354 = vset.pattern.permute.xlu0 0
  %355 = vperm.xlu0 %354, %v347
  %v356 = vpop.permute.xlu0 %355
  %v358 = vsel %vm231, %v351, %v227
  %v359 = vsel %vm231, %v356, %v228
  %v360 = vmul.f32 %v61, %v358
  %v361 = vmul.f32 %v63, %v359
  %v362 = vadd.f32 %v360, %v61
  %v363 = vadd.f32 %v361, %v63
  %vm364 = vcmp.ge.f32.partialorder %v362, 0.0
  %vm365 = vcmp.ge.f32.partialorder %v363, 0.0
  %v366 = vmul.f32 %v362, 0.2
  %v367 = vmul.f32 %v363, 0.2
  %v368 = vsel %vm364, %v362, %v366
  %v369 = vsel %vm365, %v363, %v367
  %v370 = vpack.c.bf16 %v368, %v368
  %v371 = vpack.c.bf16 %v369, %v369
  %vm372 = vcmask 125952
  %373 = vst.msk [vmem:[%s6] sm:$0xf] %vm372, %v370
  %374 = vst.msk [vmem:[%s6 + $0x4] sm:$0xf] %vm372, %v371
  // Predicated region
  $region26: #{unet3d_forward.13} parent=0 // pred_check
    _
  $region27: #{unet3d_forward.13} parent=0 // pred_check_branch
    %376 = sbr.rel (0) target = $region29
  $region28: #{unet3d_forward.13} parent=0 // pred_region
    _
  $region29: #{unet3d_forward.13} parent=0 // pred_fallthru
    _
  // Predicated region
  $region30: #{unet3d_forward.13} parent=0 // pred_check
    _
  $region31: #{unet3d_forward.13} parent=0 // pred_check_branch
    %378 = sbr.rel (0) target = $region33
  $region32: #{unet3d_forward.13} parent=0 // pred_region
    _
  $region33: #{unet3d_forward.13} parent=0 // pred_fallthru
    _

// kernel: unet3d_forward.14
$region0: #{unet3d_forward.14}
  #allocation0 [shape = 'u32[]', space=smem, size = 0x4, offset = 0x4, fixed_abs, tag = 'smem constant byte address 0x4 - core index']
  #allocation1 [shape = 'u32[72,128]{1,0:T(1,128)}', space=vmem, size = 0x9000, scoped, tag = 'internal scratch']
  %s0 = inlined_call_operand.vmem [shape: bf16[16,16], index: 0, kind: input, shape index: {}]
  %s1 = inlined_call_operand.vmem [shape: bf16[8,16], index: 1, kind: input, shape index: {}]
  %s2 = inlined_call_operand.vmem [shape: f32[16,8], index: 2, kind: input, shape index: {}]
  %s3 = inlined_call_operand.vmem [shape: f32[16,1], index: 3, kind: input, shape index: {}]
  %s4 = inlined_call_operand.vmem [shape: f32[8,16], index: 4, kind: input, shape index: {}]
  %s5 = inlined_call_operand.vmem [shape: f32[8,1], index: 5, kind: input, shape index: {}]
  %s6 = inlined_call_operand.vmem [shape: bf16[8,16], index: 6, kind: output, shape index: {}]
  %s7 = sld [smem:[#allocation0]]
  $region34: #{unet3d_forward.14} parent=0
    _
  %s9 = ssub.s32 1, %s7
  %s10 = scalar_select 0, %s9, %s7
  // Predicated region
  $region2: #{unet3d_forward.14} parent=0 // pred_check
    _
  $region3: #{unet3d_forward.14} parent=0 // pred_check_branch
    %12 = sbr.rel (0) target = $region5
  $region4: #{unet3d_forward.14} parent=0 // pred_region
    _
  $region5: #{unet3d_forward.14} parent=0 // pred_fallthru
    _
  // Predicated region
  $region6: #{unet3d_forward.14} parent=0 // pred_check
    _
  $region7: #{unet3d_forward.14} parent=0 // pred_check_branch
    %14 = sbr.rel (0) target = $region9
  $region8: #{unet3d_forward.14} parent=0 // pred_region
    _
  $region9: #{unet3d_forward.14} parent=0 // pred_fallthru
    _
  // Predicated region
  $region10: #{unet3d_forward.14} parent=0 // pred_check
    _
  $region11: #{unet3d_forward.14} parent=0 // pred_check_branch
    %16 = sbr.rel (0) target = $region13
  $region12: #{unet3d_forward.14} parent=0 // pred_region
    _
  $region13: #{unet3d_forward.14} parent=0 // pred_fallthru
    _
  // Predicated region
  $region14: #{unet3d_forward.14} parent=0 // pred_check
    _
  $region15: #{unet3d_forward.14} parent=0 // pred_check_branch
    %18 = sbr.rel (0) target = $region17
  $region16: #{unet3d_forward.14} parent=0 // pred_region
    _
  $region17: #{unet3d_forward.14} parent=0 // pred_fallthru
    _
  // Predicated region
  $region18: #{unet3d_forward.14} parent=0 // pred_check
    _
  $region19: #{unet3d_forward.14} parent=0 // pred_check_branch
    %20 = sbr.rel (0) target = $region21
  $region20: #{unet3d_forward.14} parent=0 // pred_region
    _
  $region21: #{unet3d_forward.14} parent=0 // pred_fallthru
    _
  // Predicated region
  $region22: #{unet3d_forward.14} parent=0 // pred_check
    _
  $region23: #{unet3d_forward.14} parent=0 // pred_check_branch
    %22 = sbr.rel (0) target = $region25
  $region24: #{unet3d_forward.14} parent=0 // pred_region
    _
  $region25: #{unet3d_forward.14} parent=0 // pred_fallthru
    _
  %v24 = vld [vmem:[%s1] sm:$0xf]
  %v25 = vld [vmem:[%s0] sm:$0xf]
  %v26 = vld [vmem:[%s0 + $0x4] sm:$0xf]
  %v29 = vunpack.c.l.b16 %v25
  %v30 = vunpack.c.l.b16 %v26
  %v31 = vpack.c.b16 %v30, %v29
  %vm33 = vcmask 130048
  %v35 = vsel %vm33, %v24, 0
  %37 = vmatpush.bf16.msra.mxu0 0
  %38 = vmatpush.bf16.msra.mxu0 0
  %39 = vmatpush.bf16.msra.mxu0 0
  %40 = vmatpush.bf16.msra.mxu0 0
  %41 = vmatpush.bf16.msra.mxu0 0
  %42 = vmatpush.bf16.msra.mxu0 0
  %43 = vmatpush.bf16.msra.mxu0 0
  %44 = vmatpush.bf16.msra.mxu0 %v31
  %45 = vmatmul.bf16.gmra.mxu0 %v35
  %v46 = vpop.f32.mrf.mxu0
  %v47 = vadd.f32 0.0, %v46
  %v48 = vpop.f32.mrf.mxu0
  %49 = vdwg.mxu0
  %v50 = vlaneseq
  %v51 = vand.u32 %v50, 127
  %vm52 = vcmp.ge.s32.totalorder %v51, 0
  %vm53 = vcmp.lt.s32.totalorder %v51, 8
  %vm54 = vmand %vm52, %vm53
  %v55 = vsel %vm54, %v47, 0.0
  %v56 = vsel %vm33, %v55, 0.0
  %57 = vadd.xlane.f32.xlu0 %v56
  %v58 = vpop.xlane.xlu0 %57
  %v59 = vmul.f32 %v58, 0.125
  %v60 = vld [vmem:[%s2] sm:$0xff]
  %v61 = vld [vmem:[%s2 + $0x8] sm:$0xff]
  %v62 = vld [vmem:[%s3] sm:$0xff]
  %v63 = vld [vmem:[%s3 + $0x8] sm:$0xff]
  %vm64 = vcmask 64512
  %v66 = vsel %vm64, %v60, 0
  %v69 = vsel %vm64, %v61, 0
  %71 = vmatpush.msra.mxu0 0.0
  %72 = vmatpush.msra.mxu0 0.0
  %73 = vmatpush.msra.mxu0 0.0
  %74 = vmatpush.msra.mxu0 0.0
  %75 = vmatpush.msra.mxu0 0.0
  %76 = vmatpush.msra.mxu0 0.0
  %77 = vmatpush.msra.mxu0 0.0
  %78 = vmatpush.msra.mxu0 0.0
  %79 = vmatpush.msra.mxu0 0.0
  %80 = vmatpush.msra.mxu0 0.0
  %81 = vmatpush.msra.mxu0 0.0
  %82 = vmatpush.msra.mxu0 0.0
  %83 = vmatpush.msra.mxu0 0.0
  %84 = vmatpush.msra.mxu0 0.0
  %85 = vmatpush.msra.mxu0 0.0
  %86 = vmatpush.msra.mxu0 %v59
  %87 = vmatmul.f32.gmra.mxu0 %v66
  %v88 = vpop.f32.mrf.mxu0
  %v89 = vadd.f32 %v62, %v88
  %90 = vmatmul.f32.gmra.mxu0 %v69
  %v91 = vpop.f32.mrf.mxu0
  %v92 = vadd.f32 %v63, %v91
  %93 = vdwg.mxu0
  %vm94 = vcmp.ge.f32.partialorder %v89, 0.0
  %vm95 = vcmp.ge.f32.partialorder %v92, 0.0
  %v96 = vmul.f32 %v89, 0.2
  %v97 = vmul.f32 %v92, 0.2
  %v98 = vsel %vm94, %v89, %v96
  %v99 = vsel %vm95, %v92, %v97
  %v100 = vld [vmem:[%s4] sm:$0xff]
  %v102 = vsel %vm33, %v100, 0
  %104 = vmatpush.msra.mxu0 0.0
  %105 = vmatpush.msra.mxu0 0.0
  %106 = vmatpush.msra.mxu0 0.0
  %107 = vmatpush.msra.mxu0 0.0
  %108 = vmatpush.msra.mxu0 0.0
  %109 = vmatpush.msra.mxu0 0.0
  %110 = vmatpush.msra.mxu0 0.0
  %111 = vmatpush.msra.mxu0 0.0
  %112 = vmatpush.msra.mxu0 0.0
  %113 = vmatpush.msra.mxu0 0.0
  %114 = vmatpush.msra.mxu0 0.0
  %115 = vmatpush.msra.mxu0 0.0
  %116 = vmatpush.msra.mxu0 0.0
  %117 = vmatpush.msra.mxu0 0.0
  %118 = vmatpush.msra.mxu0 %v99
  %119 = vmatpush.msra.mxu0 %v98
  %120 = vmatmul.f32.gmra.mxu0 %v102
  %v121 = vpop.f32.mrf.mxu0
  %v122 = vadd.f32 0.0, %v121
  %123 = vdwg.mxu0
  %v124 = vadd.f32 %v59, %v122
  %v125 = vld [vmem:[%s5] sm:$0xff]
  %v126 = vadd.f32 %v124, %v125
  %v127 = vxor.u32 %v126, 2147483648
  %v128 = vmul.f32 %v127, 1.442695
  %v129 = vpow.pop %v128
  %v130 = vadd.f32 %v129, 1.0
  %v131 = vrcp.pop %v130
  %v132 = vmul.f32 %v130, %v131
  %v133 = vsub.f32 1.0, %v132
  %v134 = vmul.f32 %v131, %v133
  %v135 = vadd.f32 %v131, %v134
  %vm136 = vweird.f32 %v130
  %vm137 = vweird.f32 %v131
  %vm138 = vmor %vm136, %vm137
  %v139 = vsel %vm138, %v131, %v135
  %v140 = vand.u32 2147483647, %v130
  %vm141 = vcmp.eq.f32.partialorder %v140, 8.507059e+37
  %v142 = vand.u32 %v130, 2147483648
  %v143 = vor.u32 1.1754944e-38, %v142
  %v144 = vsel %vm141, %v143, %v139
  %v145 = vmul.f32 1.0, %v144
  %147 = vset.pattern.permute.xlu0 0
  %148 = vperm.xlu0 %147, %v145
  %v149 = vpop.permute.xlu0 %148
  %v151 = vsel %vm54, %v149, 0.0
  %vm152 = vcmp.ge.s32.totalorder %v51, 8
  %vm153 = vcmp.lt.s32.totalorder %v51, 16
  %vm154 = vmand %vm152, %vm153
  %v155 = vsel %vm154, %v47, 0.0
  %v156 = vsel %vm33, %v155, 0.0
  %157 = vadd.xlane.f32.xlu0 %v156
  %v158 = vpop.xlane.xlu0 %157
  %v159 = vmul.f32 %v158, 0.125
  %160 = vmatpush.msra.mxu0 0.0
  %161 = vmatpush.msra.mxu0 0.0
  %162 = vmatpush.msra.mxu0 0.0
  %163 = vmatpush.msra.mxu0 0.0
  %164 = vmatpush.msra.mxu0 0.0
  %165 = vmatpush.msra.mxu0 0.0
  %166 = vmatpush.msra.mxu0 0.0
  %167 = vmatpush.msra.mxu0 0.0
  %168 = vmatpush.msra.mxu0 0.0
  %169 = vmatpush.msra.mxu0 0.0
  %170 = vmatpush.msra.mxu0 0.0
  %171 = vmatpush.msra.mxu0 0.0
  %172 = vmatpush.msra.mxu0 0.0
  %173 = vmatpush.msra.mxu0 0.0
  %174 = vmatpush.msra.mxu0 0.0
  %175 = vmatpush.msra.mxu0 %v159
  %176 = vmatmul.f32.gmra.mxu0 %v66
  %v177 = vpop.f32.mrf.mxu0
  %v178 = vadd.f32 %v62, %v177
  %179 = vmatmul.f32.gmra.mxu0 %v69
  %v180 = vpop.f32.mrf.mxu0
  %v181 = vadd.f32 %v63, %v180
  %182 = vdwg.mxu0
  %vm183 = vcmp.ge.f32.partialorder %v178, 0.0
  %vm184 = vcmp.ge.f32.partialorder %v181, 0.0
  %v185 = vmul.f32 %v178, 0.2
  %v186 = vmul.f32 %v181, 0.2
  %v187 = vsel %vm183, %v178, %v185
  %v188 = vsel %vm184, %v181, %v186
  %189 = vmatpush.msra.mxu0 0.0
  %190 = vmatpush.msra.mxu0 0.0
  %191 = vmatpush.msra.mxu0 0.0
  %192 = vmatpush.msra.mxu0 0.0
  %193 = vmatpush.msra.mxu0 0.0
  %194 = vmatpush.msra.mxu0 0.0
  %195 = vmatpush.msra.mxu0 0.0
  %196 = vmatpush.msra.mxu0 0.0
  %197 = vmatpush.msra.mxu0 0.0
  %198 = vmatpush.msra.mxu0 0.0
  %199 = vmatpush.msra.mxu0 0.0
  %200 = vmatpush.msra.mxu0 0.0
  %201 = vmatpush.msra.mxu0 0.0
  %202 = vmatpush.msra.mxu0 0.0
  %203 = vmatpush.msra.mxu0 %v188
  %204 = vmatpush.msra.mxu0 %v187
  %205 = vmatmul.f32.gmra.mxu0 %v102
  %v206 = vpop.f32.mrf.mxu0
  %v207 = vadd.f32 0.0, %v206
  %208 = vdwg.mxu0
  %v209 = vadd.f32 %v159, %v207
  %v210 = vadd.f32 %v209, %v125
  %v211 = vxor.u32 %v210, 2147483648
  %v212 = vmul.f32 %v211, 1.442695
  %v213 = vpow.pop %v212
  %v214 = vadd.f32 %v213, 1.0
  %v215 = vrcp.pop %v214
  %v216 = vmul.f32 %v214, %v215
  %v217 = vsub.f32 1.0, %v216
  %v218 = vmul.f32 %v215, %v217
  %v219 = vadd.f32 %v215, %v218
  %vm220 = vweird.f32 %v214
  %vm221 = vweird.f32 %v215
  %vm222 = vmor %vm220, %vm221
  %v223 = vsel %vm222, %v215, %v219
  %v224 = vand.u32 2147483647, %v214
  %vm225 = vcmp.eq.f32.partialorder %v224, 8.507059e+37
  %v226 = vand.u32 %v214, 2147483648
  %v227 = vor.u32 1.1754944e-38, %v226
  %v228 = vsel %vm225, %v227, %v223
  %v229 = vmul.f32 1.0, %v228
  %231 = vset.pattern.permute.xlu0 0
  %232 = vperm.xlu0 %231, %v229
  %v233 = vpop.permute.xlu0 %232
  %v235 = vsel %vm154, %v233, %v151
  %v236 = vmul.f32 %v47, %v235
  %v237 = vadd.f32 %v236, %v47
  %vm238 = vcmp.ge.f32.partialorder %v237, 0.0
  %v239 = vmul.f32 %v237, 0.2
  %v240 = vsel %vm238, %v237, %v239
  %v241 = vpack.c.bf16 %v240, %v240
  %vm242 = vcmask 125952
  %243 = vst.msk [vmem:[%s6] sm:$0xf] %vm242, %v241
  // Predicated region
  $region26: #{unet3d_forward.14} parent=0 // pred_check
    _
  $region27: #{unet3d_forward.14} parent=0 // pred_check_branch
    %245 = sbr.rel (0) target = $region29
  $region28: #{unet3d_forward.14} parent=0 // pred_region
    _
  $region29: #{unet3d_forward.14} parent=0 // pred_fallthru
    _
  // Predicated region
  $region30: #{unet3d_forward.14} parent=0 // pred_check
    _
  $region31: #{unet3d_forward.14} parent=0 // pred_check_branch
    %247 = sbr.rel (0) target = $region33
  $region32: #{unet3d_forward.14} parent=0 // pred_region
    _
  $region33: #{unet3d_forward.14} parent=0 // pred_fallthru
    _

// kernel: unet3d_forward.16
$region0: #{unet3d_forward.16}
  #allocation0 [shape = 'u32[]', space=smem, size = 0x4, offset = 0x4, fixed_abs, tag = 'smem constant byte address 0x4 - core index']
  #allocation1 [shape = 'u32[72,128]{1,0:T(1,128)}', space=vmem, size = 0x9000, scoped, tag = 'internal scratch']
  %s0 = inlined_call_operand.vmem [shape: bf16[192,16], index: 0, kind: input, shape index: {}]
  %s1 = inlined_call_operand.vmem [shape: bf16[32,192], index: 1, kind: input, shape index: {}]
  %s2 = inlined_call_operand.vmem [shape: f32[32,1], index: 2, kind: input, shape index: {}]
  %s3 = inlined_call_operand.vmem [shape: bf16[32,16], index: 3, kind: output, shape index: {}]
  %s4 = sld [smem:[#allocation0]]
  $region22: #{unet3d_forward.16} parent=0
    _
  %s6 = ssub.s32 1, %s4
  %s7 = scalar_select 0, %s6, %s4
  // Predicated region
  $region2: #{unet3d_forward.16} parent=0 // pred_check
    _
  $region3: #{unet3d_forward.16} parent=0 // pred_check_branch
    %9 = sbr.rel (0) target = $region5
  $region4: #{unet3d_forward.16} parent=0 // pred_region
    _
  $region5: #{unet3d_forward.16} parent=0 // pred_fallthru
    _
  // Predicated region
  $region6: #{unet3d_forward.16} parent=0 // pred_check
    _
  $region7: #{unet3d_forward.16} parent=0 // pred_check_branch
    %11 = sbr.rel (0) target = $region9
  $region8: #{unet3d_forward.16} parent=0 // pred_region
    _
  $region9: #{unet3d_forward.16} parent=0 // pred_fallthru
    _
  // Predicated region
  $region10: #{unet3d_forward.16} parent=0 // pred_check
    _
  $region11: #{unet3d_forward.16} parent=0 // pred_check_branch
    %13 = sbr.rel (0) target = $region13
  $region12: #{unet3d_forward.16} parent=0 // pred_region
    _
  $region13: #{unet3d_forward.16} parent=0 // pred_fallthru
    _
  %v15 = vld [vmem:[%s1] sm:$0xff]
  %v16 = vld [vmem:[%s1 + $0x8] sm:$0xff]
  %v17 = vld [vmem:[%s1 + $0x10] sm:$0xff]
  %v18 = vld [vmem:[%s1 + $0x18] sm:$0xff]
  %v19 = vld [vmem:[%s0] sm:$0xf]
  %v20 = vld [vmem:[%s0 + $0x4] sm:$0xf]
  %v21 = vld [vmem:[%s0 + $0x8] sm:$0xf]
  %v22 = vld [vmem:[%s0 + $0xc] sm:$0xf]
  %v23 = vld [vmem:[%s0 + $0x10] sm:$0xf]
  %v24 = vld [vmem:[%s0 + $0x14] sm:$0xf]
  %v25 = vld [vmem:[%s0 + $0x18] sm:$0xf]
  %v26 = vld [vmem:[%s0 + $0x1c] sm:$0xf]
  %v27 = vld [vmem:[%s0 + $0x20] sm:$0xf]
  %v28 = vld [vmem:[%s0 + $0x24] sm:$0xf]
  %v29 = vld [vmem:[%s0 + $0x28] sm:$0xf]
  %v30 = vld [vmem:[%s0 + $0x2c] sm:$0xf]
  %v31 = vld [vmem:[%s0 + $0x30] sm:$0xf]
  %v32 = vld [vmem:[%s0 + $0x34] sm:$0xf]
  %v33 = vld [vmem:[%s0 + $0x38] sm:$0xf]
  %v34 = vld [vmem:[%s0 + $0x3c] sm:$0xf]
  %v35 = vld [vmem:[%s0 + $0x40] sm:$0xf]
  %v36 = vld [vmem:[%s0 + $0x44] sm:$0xf]
  %v37 = vld [vmem:[%s0 + $0x48] sm:$0xf]
  %v38 = vld [vmem:[%s0 + $0x4c] sm:$0xf]
  %v39 = vld [vmem:[%s0 + $0x50] sm:$0xf]
  %v40 = vld [vmem:[%s0 + $0x54] sm:$0xf]
  %v41 = vld [vmem:[%s0 + $0x58] sm:$0xf]
  %v42 = vld [vmem:[%s0 + $0x5c] sm:$0xf]
  %v43 = vld [vmem:[%s2] sm:$0xff]
  %v44 = vld [vmem:[%s2 + $0x8] sm:$0xff]
  %v45 = vld [vmem:[%s2 + $0x10] sm:$0xff]
  %v46 = vld [vmem:[%s2 + $0x18] sm:$0xff]
  %48 = vset.pattern.permute.xlu0 0
  %49 = vperm.xlu0 %48, %v43
  %v50 = vpop.permute.xlu0 %49
  %53 = vset.pattern.permute.xlu0 0
  %54 = vperm.xlu0 %53, %v44
  %v55 = vpop.permute.xlu0 %54
  %58 = vset.pattern.permute.xlu0 0
  %59 = vperm.xlu0 %58, %v45
  %v60 = vpop.permute.xlu0 %59
  %63 = vset.pattern.permute.xlu0 0
  %64 = vperm.xlu0 %63, %v46
  %v65 = vpop.permute.xlu0 %64
  %v71 = vunpack.c.l.b16 %v15
  %v72 = vunpack.c.h.b16 %v15
  %v73 = vunpack.c.l.b16 %v16
  %v74 = vunpack.c.h.b16 %v16
  %v75 = vunpack.c.l.b16 %v17
  %v76 = vunpack.c.h.b16 %v17
  %v77 = vunpack.c.l.b16 %v18
  %v78 = vunpack.c.h.b16 %v18
  %v79 = vpack.c.b16 %v73, %v71
  %v80 = vpack.c.b16 %v74, %v72
  %v81 = vpack.c.b16 %v77, %v75
  %v82 = vpack.c.b16 %v78, %v76
  %v109 = vunpack.c.l.b16 %v19
  %v110 = vunpack.c.l.b16 %v20
  %v111 = vunpack.c.l.b16 %v21
  %v112 = vunpack.c.l.b16 %v22
  %v113 = vunpack.c.l.b16 %v23
  %v114 = vunpack.c.l.b16 %v24
  %v115 = vunpack.c.l.b16 %v25
  %v116 = vunpack.c.l.b16 %v26
  %v117 = vunpack.c.l.b16 %v27
  %v118 = vunpack.c.l.b16 %v28
  %v119 = vunpack.c.l.b16 %v29
  %v120 = vunpack.c.l.b16 %v30
  %v121 = vunpack.c.l.b16 %v31
  %v122 = vunpack.c.l.b16 %v32
  %v123 = vunpack.c.l.b16 %v33
  %v124 = vunpack.c.l.b16 %v34
  %v125 = vunpack.c.l.b16 %v35
  %v126 = vunpack.c.l.b16 %v36
  %v127 = vunpack.c.l.b16 %v37
  %v128 = vunpack.c.l.b16 %v38
  %v129 = vunpack.c.l.b16 %v39
  %v130 = vunpack.c.l.b16 %v40
  %v131 = vunpack.c.l.b16 %v41
  %v132 = vunpack.c.l.b16 %v42
  %v133 = vpack.c.b16 %v110, %v109
  %v134 = vpack.c.b16 %v112, %v111
  %v135 = vpack.c.b16 %v114, %v113
  %v136 = vpack.c.b16 %v116, %v115
  %v137 = vpack.c.b16 %v118, %v117
  %v138 = vpack.c.b16 %v120, %v119
  %v139 = vpack.c.b16 %v122, %v121
  %v140 = vpack.c.b16 %v124, %v123
  %v141 = vpack.c.b16 %v126, %v125
  %v142 = vpack.c.b16 %v128, %v127
  %v143 = vpack.c.b16 %v130, %v129
  %v144 = vpack.c.b16 %v132, %v131
  %vm157 = vcmask 523264
  %v159 = vsel %vm157, %v80, 0
  %v162 = vsel %vm157, %v82, 0
  %164 = vmatpush.bf16.msra.mxu0 %v140
  %165 = vmatpush.bf16.msra.mxu0 %v139
  %166 = vmatpush.bf16.msra.mxu0 %v138
  %167 = vmatpush.bf16.msra.mxu0 %v137
  %168 = vmatpush.bf16.msra.mxu0 %v136
  %169 = vmatpush.bf16.msra.mxu0 %v135
  %170 = vmatpush.bf16.msra.mxu0 %v134
  %171 = vmatpush.bf16.msra.mxu0 %v133
  %172 = vmatmul.bf16.gmra.mxu0 %v79
  %v173 = vpop.f32.mrf.mxu0
  %v174 = vadd.f32 %v50, %v173
  %v175 = vpop.f32.mrf.mxu0
  %v176 = vadd.f32 %v55, %v175
  %177 = vmatmul.bf16.gmra.mxu0 %v81
  %v178 = vpop.f32.mrf.mxu0
  %v179 = vadd.f32 %v60, %v178
  %v180 = vpop.f32.mrf.mxu0
  %v181 = vadd.f32 %v65, %v180
  %182 = vdwg.mxu0
  %183 = vmatpush.bf16.msra.mxu0 0
  %184 = vmatpush.bf16.msra.mxu0 0
  %185 = vmatpush.bf16.msra.mxu0 0
  %186 = vmatpush.bf16.msra.mxu0 0
  %187 = vmatpush.bf16.msra.mxu0 %v144
  %188 = vmatpush.bf16.msra.mxu0 %v143
  %189 = vmatpush.bf16.msra.mxu0 %v142
  %190 = vmatpush.bf16.msra.mxu0 %v141
  %191 = vmatmul.bf16.gmra.mxu0 %v159
  %v192 = vpop.f32.mrf.mxu0
  %v193 = vadd.f32 %v174, %v192
  %v194 = vpop.f32.mrf.mxu0
  %v195 = vadd.f32 %v176, %v194
  %196 = vmatmul.bf16.gmra.mxu0 %v162
  %v197 = vpop.f32.mrf.mxu0
  %v198 = vadd.f32 %v179, %v197
  %v199 = vpop.f32.mrf.mxu0
  %v200 = vadd.f32 %v181, %v199
  %201 = vdwg.mxu0
  %vm202 = vcmp.ge.f32.partialorder %v193, 0.0
  %vm203 = vcmp.ge.f32.partialorder %v195, 0.0
  %vm204 = vcmp.ge.f32.partialorder %v198, 0.0
  %vm205 = vcmp.ge.f32.partialorder %v200, 0.0
  %v206 = vmul.f32 %v193, 0.25
  %v207 = vmul.f32 %v195, 0.25
  %v208 = vmul.f32 %v198, 0.25
  %v209 = vmul.f32 %v200, 0.25
  %v210 = vsel %vm202, %v193, %v206
  %v211 = vsel %vm203, %v195, %v207
  %v212 = vsel %vm204, %v198, %v208
  %v213 = vsel %vm205, %v200, %v209
  %v214 = vpack.c.bf16 %v210, %v210
  %v215 = vpack.c.bf16 %v211, %v211
  %v216 = vpack.c.bf16 %v212, %v212
  %v217 = vpack.c.bf16 %v213, %v213
  %vm218 = vcmask 125952
  %219 = vst.msk [vmem:[%s3] sm:$0xf] %vm218, %v214
  %220 = vst.msk [vmem:[%s3 + $0x4] sm:$0xf] %vm218, %v215
  %221 = vst.msk [vmem:[%s3 + $0x8] sm:$0xf] %vm218, %v216
  %222 = vst.msk [vmem:[%s3 + $0xc] sm:$0xf] %vm218, %v217
  // Predicated region
  $region14: #{unet3d_forward.16} parent=0 // pred_check
    _
  $region15: #{unet3d_forward.16} parent=0 // pred_check_branch
    %224 = sbr.rel (0) target = $region17
  $region16: #{unet3d_forward.16} parent=0 // pred_region
    _
  $region17: #{unet3d_forward.16} parent=0 // pred_fallthru
    _
  // Predicated region
  $region18: #{unet3d_forward.16} parent=0 // pred_check
    _
  $region19: #{unet3d_forward.16} parent=0 // pred_check_branch
    %226 = sbr.rel (0) target = $region21
  $region20: #{unet3d_forward.16} parent=0 // pred_region
    _
  $region21: #{unet3d_forward.16} parent=0 // pred_fallthru
    _

// kernel: unet3d_forward.17
$region0: #{unet3d_forward.17}
  #allocation0 [shape = 'u32[]', space=smem, size = 0x4, offset = 0x4, fixed_abs, tag = 'smem constant byte address 0x4 - core index']
  #allocation1 [shape = 'u32[72,128]{1,0:T(1,128)}', space=vmem, size = 0x9000, scoped, tag = 'internal scratch']
  %s0 = inlined_call_operand.vmem [shape: bf16[108,128], index: 0, kind: input, shape index: {}]
  %s1 = inlined_call_operand.vmem [shape: bf16[4,108], index: 1, kind: input, shape index: {}]
  %s2 = inlined_call_operand.vmem [shape: f32[4,1], index: 2, kind: input, shape index: {}]
  %s3 = inlined_call_operand.vmem [shape: bf16[4,128], index: 3, kind: input, shape index: {}]
  %s4 = inlined_call_operand.vmem [shape: bf16[4,128], index: 4, kind: output, shape index: {}]
  %s5 = sld [smem:[#allocation0]]
  $region26: #{unet3d_forward.17} parent=0
    _
  %s7 = ssub.s32 1, %s5
  %s8 = scalar_select 0, %s7, %s5
  // Predicated region
  $region2: #{unet3d_forward.17} parent=0 // pred_check
    _
  $region3: #{unet3d_forward.17} parent=0 // pred_check_branch
    %10 = sbr.rel (0) target = $region5
  $region4: #{unet3d_forward.17} parent=0 // pred_region
    _
  $region5: #{unet3d_forward.17} parent=0 // pred_fallthru
    _
  // Predicated region
  $region6: #{unet3d_forward.17} parent=0 // pred_check
    _
  $region7: #{unet3d_forward.17} parent=0 // pred_check_branch
    %12 = sbr.rel (0) target = $region9
  $region8: #{unet3d_forward.17} parent=0 // pred_region
    _
  $region9: #{unet3d_forward.17} parent=0 // pred_fallthru
    _
  // Predicated region
  $region10: #{unet3d_forward.17} parent=0 // pred_check
    _
  $region11: #{unet3d_forward.17} parent=0 // pred_check_branch
    %14 = sbr.rel (0) target = $region13
  $region12: #{unet3d_forward.17} parent=0 // pred_region
    _
  $region13: #{unet3d_forward.17} parent=0 // pred_fallthru
    _
  // Predicated region
  $region14: #{unet3d_forward.17} parent=0 // pred_check
    _
  $region15: #{unet3d_forward.17} parent=0 // pred_check_branch
    %16 = sbr.rel (0) target = $region17
  $region16: #{unet3d_forward.17} parent=0 // pred_region
    _
  $region17: #{unet3d_forward.17} parent=0 // pred_fallthru
    _
  %v18 = vld [vmem:[%s1] sm:$0x3]
  %v19 = vld [vmem:[%s0] sm:$0xf]
  %v20 = vld [vmem:[%s0 + $0x4] sm:$0xf]
  %v21 = vld [vmem:[%s0 + $0x8] sm:$0xf]
  %v22 = vld [vmem:[%s0 + $0xc] sm:$0xf]
  %v23 = vld [vmem:[%s0 + $0x10] sm:$0xf]
  %v24 = vld [vmem:[%s0 + $0x14] sm:$0xf]
  %v25 = vld [vmem:[%s0 + $0x18] sm:$0xf]
  %v26 = vld [vmem:[%s0 + $0x1c] sm:$0xf]
  %v27 = vld [vmem:[%s0 + $0x20] sm:$0xf]
  %v28 = vld [vmem:[%s0 + $0x24] sm:$0xf]
  %v29 = vld [vmem:[%s0 + $0x28] sm:$0xf]
  %v30 = vld [vmem:[%s0 + $0x2c] sm:$0xf]
  %v31 = vld [vmem:[%s0 + $0x30] sm:$0xf]
  %v32 = vld [vmem:[%s0 + $0x34] sm:$0x3]
  %v33 = vld [vmem:[%s2] sm:$0xf]
  %35 = vset.pattern.permute.xlu0 0
  %36 = vperm.xlu0 %35, %v33
  %v37 = vpop.permute.xlu0 %36
  %v53 = vunpack.c.l.b16 %v19
  %v54 = vunpack.c.l.b16 %v20
  %v55 = vunpack.c.l.b16 %v21
  %v56 = vunpack.c.l.b16 %v22
  %v57 = vunpack.c.l.b16 %v23
  %v58 = vunpack.c.l.b16 %v24
  %v59 = vunpack.c.l.b16 %v25
  %v60 = vunpack.c.l.b16 %v26
  %v61 = vunpack.c.l.b16 %v27
  %v62 = vunpack.c.l.b16 %v28
  %v63 = vunpack.c.l.b16 %v29
  %v64 = vunpack.c.l.b16 %v30
  %v65 = vunpack.c.l.b16 %v31
  %v66 = vunpack.c.l.b16 %v32
  %v67 = vpack.c.b16 %v54, %v53
  %v68 = vpack.c.b16 %v56, %v55
  %v69 = vpack.c.b16 %v58, %v57
  %v70 = vpack.c.b16 %v60, %v59
  %v71 = vpack.c.b16 %v62, %v61
  %v72 = vpack.c.b16 %v64, %v63
  %v73 = vpack.c.b16 %v66, %v65
  %vm80 = vcmask 883712
  %v82 = vsel %vm80, %v18, 0
  %vm84 = vcmask 1045504
  %v86 = vsel %vm84, %v73, 0
  %88 = vmatpush.bf16.msra.mxu0 0
  %89 = vmatpush.bf16.msra.mxu0 %v86
  %90 = vmatpush.bf16.msra.mxu0 %v72
  %91 = vmatpush.bf16.msra.mxu0 %v71
  %92 = vmatpush.bf16.msra.mxu0 %v70
  %93 = vmatpush.bf16.msra.mxu0 %v69
  %94 = vmatpush.bf16.msra.mxu0 %v68
  %95 = vmatpush.bf16.msra.mxu0 %v67
  %96 = vmatmul.bf16.gmra.mxu0 %v82
  %v97 = vpop.f32.mrf.mxu0
  %v98 = vadd.f32 %v37, %v97
  %v99 = vpop.f32.mrf.mxu0
  %100 = vdwg.mxu0
  %vm101 = vcmp.ge.f32.partialorder %v98, 0.0
  %v102 = vmul.f32 %v98, 0.25
  %v103 = vsel %vm101, %v98, %v102
  %v104 = vld [vmem:[%s3] sm:$0x3]
  %v105 = vunpack.c.l.bf16 %v104
  %v106 = vadd.f32 %v103, %v105
  %v107 = vpack.c.bf16 %v106, %v106
  %108 = vst [vmem:[%s4] sm:$0x3] %v107
  // Predicated region
  $region18: #{unet3d_forward.17} parent=0 // pred_check
    _
  $region19: #{unet3d_forward.17} parent=0 // pred_check_branch
    %110 = sbr.rel (0) target = $region21
  $region20: #{unet3d_forward.17} parent=0 // pred_region
    _
  $region21: #{unet3d_forward.17} parent=0 // pred_fallthru
    _
  // Predicated region
  $region22: #{unet3d_forward.17} parent=0 // pred_check
    _
  $region23: #{unet3d_forward.17} parent=0 // pred_check_branch
    %112 = sbr.rel (0) target = $region25
  $region24: #{unet3d_forward.17} parent=0 // pred_region
    _
  $region25: #{unet3d_forward.17} parent=0 // pred_fallthru
    _

// kernel: unet3d_forward.15
$region0: #{unet3d_forward.15}
  #allocation0 [shape = 'u32[]', space=smem, size = 0x4, offset = 0x4, fixed_abs, tag = 'smem constant byte address 0x4 - core index']
  #allocation1 [shape = 'u32[72,128]{1,0:T(1,128)}', space=vmem, size = 0x9000, scoped, tag = 'internal scratch']
  %s0 = inlined_call_operand.vmem [shape: bf16[8,128], index: 0, kind: input, shape index: {}]
  %s1 = inlined_call_operand.vmem [shape: bf16[4,8], index: 1, kind: input, shape index: {}]
  %s2 = inlined_call_operand.vmem [shape: f32[8,4], index: 2, kind: input, shape index: {}]
  %s3 = inlined_call_operand.vmem [shape: f32[8,1], index: 3, kind: input, shape index: {}]
  %s4 = inlined_call_operand.vmem [shape: f32[4,8], index: 4, kind: input, shape index: {}]
  %s5 = inlined_call_operand.vmem [shape: f32[4,1], index: 5, kind: input, shape index: {}]
  %s6 = inlined_call_operand.vmem [shape: bf16[4,128], index: 6, kind: output, shape index: {}]
  %s7 = sld [smem:[#allocation0]]
  $region34: #{unet3d_forward.15} parent=0
    _
  %s9 = ssub.s32 1, %s7
  %s10 = scalar_select 0, %s9, %s7
  // Predicated region
  $region2: #{unet3d_forward.15} parent=0 // pred_check
    _
  $region3: #{unet3d_forward.15} parent=0 // pred_check_branch
    %12 = sbr.rel (0) target = $region5
  $region4: #{unet3d_forward.15} parent=0 // pred_region
    _
  $region5: #{unet3d_forward.15} parent=0 // pred_fallthru
    _
  // Predicated region
  $region6: #{unet3d_forward.15} parent=0 // pred_check
    _
  $region7: #{unet3d_forward.15} parent=0 // pred_check_branch
    %14 = sbr.rel (0) target = $region9
  $region8: #{unet3d_forward.15} parent=0 // pred_region
    _
  $region9: #{unet3d_forward.15} parent=0 // pred_fallthru
    _
  // Predicated region
  $region10: #{unet3d_forward.15} parent=0 // pred_check
    _
  $region11: #{unet3d_forward.15} parent=0 // pred_check_branch
    %16 = sbr.rel (0) target = $region13
  $region12: #{unet3d_forward.15} parent=0 // pred_region
    _
  $region13: #{unet3d_forward.15} parent=0 // pred_fallthru
    _
  // Predicated region
  $region14: #{unet3d_forward.15} parent=0 // pred_check
    _
  $region15: #{unet3d_forward.15} parent=0 // pred_check_branch
    %18 = sbr.rel (0) target = $region17
  $region16: #{unet3d_forward.15} parent=0 // pred_region
    _
  $region17: #{unet3d_forward.15} parent=0 // pred_fallthru
    _
  // Predicated region
  $region18: #{unet3d_forward.15} parent=0 // pred_check
    _
  $region19: #{unet3d_forward.15} parent=0 // pred_check_branch
    %20 = sbr.rel (0) target = $region21
  $region20: #{unet3d_forward.15} parent=0 // pred_region
    _
  $region21: #{unet3d_forward.15} parent=0 // pred_fallthru
    _
  // Predicated region
  $region22: #{unet3d_forward.15} parent=0 // pred_check
    _
  $region23: #{unet3d_forward.15} parent=0 // pred_check_branch
    %22 = sbr.rel (0) target = $region25
  $region24: #{unet3d_forward.15} parent=0 // pred_region
    _
  $region25: #{unet3d_forward.15} parent=0 // pred_fallthru
    _
  %v24 = vld [vmem:[%s1] sm:$0x3]
  %v25 = vld [vmem:[%s0] sm:$0xf]
  %vm26 = vcmask 64512
  %v28 = vsel %vm26, %v24, 0
  %vm30 = vcmask 1043456
  %v32 = vsel %vm30, %v25, 0
  %34 = vmatpush.bf16.msra.mxu0 0
  %35 = vmatpush.bf16.msra.mxu0 0
  %36 = vmatpush.bf16.msra.mxu0 0
  %37 = vmatpush.bf16.msra.mxu0 0
  %38 = vmatpush.bf16.msra.mxu0 0
  %39 = vmatpush.bf16.msra.mxu0 0
  %40 = vmatpush.bf16.msra.mxu0 0
  %41 = vmatpush.bf16.msra.mxu0 %v32
  %42 = vmatmul.bf16.gmra.mxu0 %v28
  %v43 = vpop.f32.mrf.mxu0
  %v44 = vadd.f32 0.0, %v43
  %v45 = vpop.f32.mrf.mxu0
  %46 = vdwg.mxu0
  %v47 = vlaneseq
  %v48 = vand.u32 %v47, 127
  %vm49 = vcmp.ge.s32.totalorder %v48, 0
  %vm50 = vcmp.lt.s32.totalorder %v48, 64
  %vm51 = vmand %vm49, %vm50
  %v52 = vsel %vm51, %v44, 0.0
  %v53 = vsel %vm30, %v52, 0.0
  %54 = vadd.xlane.f32.xlu0 %v53
  %v55 = vpop.xlane.xlu0 %54
  %v56 = vmul.f32 %v55, 0.015625
  %v57 = vld [vmem:[%s2] sm:$0xff]
  %v58 = vld [vmem:[%s3] sm:$0xff]
  %vm59 = vcmask 31744
  %v61 = vsel %vm59, %v57, 0
  %v64 = vsel %vm30, %v56, 0
  %66 = vmatpush.msra.mxu0 0.0
  %67 = vmatpush.msra.mxu0 0.0
  %68 = vmatpush.msra.mxu0 0.0
  %69 = vmatpush.msra.mxu0 0.0
  %70 = vmatpush.msra.mxu0 0.0
  %71 = vmatpush.msra.mxu0 0.0
  %72 = vmatpush.msra.mxu0 0.0
  %73 = vmatpush.msra.mxu0 0.0
  %74 = vmatpush.msra.mxu0 0.0
  %75 = vmatpush.msra.mxu0 0.0
  %76 = vmatpush.msra.mxu0 0.0
  %77 = vmatpush.msra.mxu0 0.0
  %78 = vmatpush.msra.mxu0 0.0
  %79 = vmatpush.msra.mxu0 0.0
  %80 = vmatpush.msra.mxu0 0.0
  %81 = vmatpush.msra.mxu0 %v64
  %82 = vmatmul.f32.gmra.mxu0 %v61
  %v83 = vpop.f32.mrf.mxu0
  %v84 = vadd.f32 %v58, %v83
  %85 = vdwg.mxu0
  %vm86 = vcmp.ge.f32.partialorder %v84, 0.0
  %v87 = vmul.f32 %v84, 0.2
  %v88 = vsel %vm86, %v84, %v87
  %v89 = vld [vmem:[%s4] sm:$0xf]
  %v91 = vsel %vm26, %v89, 0
  %93 = vmatpush.msra.mxu0 0.0
  %94 = vmatpush.msra.mxu0 0.0
  %95 = vmatpush.msra.mxu0 0.0
  %96 = vmatpush.msra.mxu0 0.0
  %97 = vmatpush.msra.mxu0 0.0
  %98 = vmatpush.msra.mxu0 0.0
  %99 = vmatpush.msra.mxu0 0.0
  %100 = vmatpush.msra.mxu0 0.0
  %101 = vmatpush.msra.mxu0 0.0
  %102 = vmatpush.msra.mxu0 0.0
  %103 = vmatpush.msra.mxu0 0.0
  %104 = vmatpush.msra.mxu0 0.0
  %105 = vmatpush.msra.mxu0 0.0
  %106 = vmatpush.msra.mxu0 0.0
  %107 = vmatpush.msra.mxu0 0.0
  %108 = vmatpush.msra.mxu0 %v88
  %109 = vmatmul.f32.gmra.mxu0 %v91
  %v110 = vpop.f32.mrf.mxu0
  %v111 = vadd.f32 0.0, %v110
  %112 = vdwg.mxu0
  %v113 = vadd.f32 %v56, %v111
  %v114 = vld [vmem:[%s5] sm:$0xf]
  %v115 = vadd.f32 %v113, %v114
  %v116 = vxor.u32 %v115, 2147483648
  %v117 = vmul.f32 %v116, 1.442695
  %v118 = vpow.pop %v117
  %v119 = vadd.f32 %v118, 1.0
  %v120 = vrcp.pop %v119
  %v121 = vmul.f32 %v119, %v120
  %v122 = vsub.f32 1.0, %v121
  %v123 = vmul.f32 %v120, %v122
  %v124 = vadd.f32 %v120, %v123
  %vm125 = vweird.f32 %v119
  %vm126 = vweird.f32 %v120
  %vm127 = vmor %vm125, %vm126
  %v128 = vsel %vm127, %v120, %v124
  %v129 = vand.u32 2147483647, %v119
  %vm130 = vcmp.eq.f32.partialorder %v129, 8.507059e+37
  %v131 = vand.u32 %v119, 2147483648
  %v132 = vor.u32 1.1754944e-38, %v131
  %v133 = vsel %vm130, %v132, %v128
  %v134 = vmul.f32 1.0, %v133
  %136 = vset.pattern.permute.xlu0 0
  %137 = vperm.xlu0 %136, %v134
  %v138 = vpop.permute.xlu0 %137
  %v140 = vsel %vm51, %v138, 0.0
  %vm141 = vcmp.ge.s32.totalorder %v48, 64
  %vm142 = vcmp.lt.s32.totalorder %v48, 128
  %vm143 = vmand %vm141, %vm142
  %v144 = vsel %vm143, %v44, 0.0
  %v145 = vsel %vm30, %v144, 0.0
  %146 = vadd.xlane.f32.xlu0 %v145
  %v147 = vpop.xlane.xlu0 %146
  %v148 = vmul.f32 %v147, 0.015625
  %v150 = vsel %vm30, %v148, 0
  %152 = vmatpush.msra.mxu0 0.0
  %153 = vmatpush.msra.mxu0 0.0
  %154 = vmatpush.msra.mxu0 0.0
  %155 = vmatpush.msra.mxu0 0.0
  %156 = vmatpush.msra.mxu0 0.0
  %157 = vmatpush.msra.mxu0 0.0
  %158 = vmatpush.msra.mxu0 0.0
  %159 = vmatpush.msra.mxu0 0.0
  %160 = vmatpush.msra.mxu0 0.0
  %161 = vmatpush.msra.mxu0 0.0
  %162 = vmatpush.msra.mxu0 0.0
  %163 = vmatpush.msra.mxu0 0.0
  %164 = vmatpush.msra.mxu0 0.0
  %165 = vmatpush.msra.mxu0 0.0
  %166 = vmatpush.msra.mxu0 0.0
  %167 = vmatpush.msra.mxu0 %v150
  %168 = vmatmul.f32.gmra.mxu0 %v61
  %v169 = vpop.f32.mrf.mxu0
  %v170 = vadd.f32 %v58, %v169
  %171 = vdwg.mxu0
  %vm172 = vcmp.ge.f32.partialorder %v170, 0.0
  %v173 = vmul.f32 %v170, 0.2
  %v174 = vsel %vm172, %v170, %v173
  %175 = vmatpush.msra.mxu0 0.0
  %176 = vmatpush.msra.mxu0 0.0
  %177 = vmatpush.msra.mxu0 0.0
  %178 = vmatpush.msra.mxu0 0.0
  %179 = vmatpush.msra.mxu0 0.0
  %180 = vmatpush.msra.mxu0 0.0
  %181 = vmatpush.msra.mxu0 0.0
  %182 = vmatpush.msra.mxu0 0.0
  %183 = vmatpush.msra.mxu0 0.0
  %184 = vmatpush.msra.mxu0 0.0
  %185 = vmatpush.msra.mxu0 0.0
  %186 = vmatpush.msra.mxu0 0.0
  %187 = vmatpush.msra.mxu0 0.0
  %188 = vmatpush.msra.mxu0 0.0
  %189 = vmatpush.msra.mxu0 0.0
  %190 = vmatpush.msra.mxu0 %v174
  %191 = vmatmul.f32.gmra.mxu0 %v91
  %v192 = vpop.f32.mrf.mxu0
  %v193 = vadd.f32 0.0, %v192
  %194 = vdwg.mxu0
  %v195 = vadd.f32 %v148, %v193
  %v196 = vadd.f32 %v195, %v114
  %v197 = vxor.u32 %v196, 2147483648
  %v198 = vmul.f32 %v197, 1.442695
  %v199 = vpow.pop %v198
  %v200 = vadd.f32 %v199, 1.0
  %v201 = vrcp.pop %v200
  %v202 = vmul.f32 %v200, %v201
  %v203 = vsub.f32 1.0, %v202
  %v204 = vmul.f32 %v201, %v203
  %v205 = vadd.f32 %v201, %v204
  %vm206 = vweird.f32 %v200
  %vm207 = vweird.f32 %v201
  %vm208 = vmor %vm206, %vm207
  %v209 = vsel %vm208, %v201, %v205
  %v210 = vand.u32 2147483647, %v200
  %vm211 = vcmp.eq.f32.partialorder %v210, 8.507059e+37
  %v212 = vand.u32 %v200, 2147483648
  %v213 = vor.u32 1.1754944e-38, %v212
  %v214 = vsel %vm211, %v213, %v209
  %v215 = vmul.f32 1.0, %v214
  %217 = vset.pattern.permute.xlu0 0
  %218 = vperm.xlu0 %217, %v215
  %v219 = vpop.permute.xlu0 %218
  %v221 = vsel %vm143, %v219, %v140
  %v222 = vmul.f32 %v44, %v221
  %v223 = vadd.f32 %v222, %v44
  %vm224 = vcmp.ge.f32.partialorder %v223, 0.0
  %v225 = vmul.f32 %v223, 0.2
  %v226 = vsel %vm224, %v223, %v225
  %v227 = vpack.c.bf16 %v226, %v226
  %228 = vst [vmem:[%s6] sm:$0x3] %v227
  // Predicated region
  $region26: #{unet3d_forward.15} parent=0 // pred_check
    _
  $region27: #{unet3d_forward.15} parent=0 // pred_check_branch
    %230 = sbr.rel (0) target = $region29
  $region28: #{unet3d_forward.15} parent=0 // pred_region
    _
  $region29: #{unet3d_forward.15} parent=0 // pred_fallthru
    _
  // Predicated region
  $region30: #{unet3d_forward.15} parent=0 // pred_check
    _
  $region31: #{unet3d_forward.15} parent=0 // pred_check_branch
    %232 = sbr.rel (0) target = $region33
  $region32: #{unet3d_forward.15} parent=0 // pred_region
    _
  $region33: #{unet3d_forward.15} parent=0 // pred_fallthru
    _

// kernel: unet3d_forward.18
$region0: #{unet3d_forward.18}
  #allocation0 [shape = 'u32[]', space=smem, size = 0x4, offset = 0x4, fixed_abs, tag = 'smem constant byte address 0x4 - core index']
  #allocation1 [shape = 'u32[72,128]{1,0:T(1,128)}', space=vmem, size = 0x9000, scoped, tag = 'internal scratch']
  %s0 = inlined_call_operand.vmem [shape: bf16[64,128], index: 0, kind: input, shape index: {}]
  %s1 = inlined_call_operand.vmem [shape: bf16[32,64], index: 1, kind: input, shape index: {}]
  %s2 = inlined_call_operand.vmem [shape: f32[32,1], index: 2, kind: input, shape index: {}]
  %s3 = inlined_call_operand.vmem [shape: bf16[32,128], index: 3, kind: output, shape index: {}]
  %s4 = sld [smem:[#allocation0]]
  $region22: #{unet3d_forward.18} parent=0
    _
  %s6 = ssub.s32 1, %s4
  %s7 = scalar_select 0, %s6, %s4
  // Predicated region
  $region2: #{unet3d_forward.18} parent=0 // pred_check
    _
  $region3: #{unet3d_forward.18} parent=0 // pred_check_branch
    %9 = sbr.rel (0) target = $region5
  $region4: #{unet3d_forward.18} parent=0 // pred_region
    _
  $region5: #{unet3d_forward.18} parent=0 // pred_fallthru
    _
  // Predicated region
  $region6: #{unet3d_forward.18} parent=0 // pred_check
    _
  $region7: #{unet3d_forward.18} parent=0 // pred_check_branch
    %11 = sbr.rel (0) target = $region9
  $region8: #{unet3d_forward.18} parent=0 // pred_region
    _
  $region9: #{unet3d_forward.18} parent=0 // pred_fallthru
    _
  // Predicated region
  $region10: #{unet3d_forward.18} parent=0 // pred_check
    _
  $region11: #{unet3d_forward.18} parent=0 // pred_check_branch
    %13 = sbr.rel (0) target = $region13
  $region12: #{unet3d_forward.18} parent=0 // pred_region
    _
  $region13: #{unet3d_forward.18} parent=0 // pred_fallthru
    _
  %v15 = vld [vmem:[%s1] sm:$0xf]
  %v16 = vld [vmem:[%s1 + $0x4] sm:$0xf]
  %v17 = vld [vmem:[%s1 + $0x8] sm:$0xf]
  %v18 = vld [vmem:[%s1 + $0xc] sm:$0xf]
  %v19 = vld [vmem:[%s0] sm:$0xf]
  %v20 = vld [vmem:[%s0 + $0x4] sm:$0xf]
  %v21 = vld [vmem:[%s0 + $0x8] sm:$0xf]
  %v22 = vld [vmem:[%s0 + $0xc] sm:$0xf]
  %v23 = vld [vmem:[%s0 + $0x10] sm:$0xf]
  %v24 = vld [vmem:[%s0 + $0x14] sm:$0xf]
  %v25 = vld [vmem:[%s0 + $0x18] sm:$0xf]
  %v26 = vld [vmem:[%s0 + $0x1c] sm:$0xf]
  %v27 = vld [vmem:[%s2] sm:$0xff]
  %v28 = vld [vmem:[%s2 + $0x8] sm:$0xff]
  %v29 = vld [vmem:[%s2 + $0x10] sm:$0xff]
  %v30 = vld [vmem:[%s2 + $0x18] sm:$0xff]
  %32 = vset.pattern.permute.xlu0 0
  %33 = vperm.xlu0 %32, %v27
  %v34 = vpop.permute.xlu0 %33
  %37 = vset.pattern.permute.xlu0 0
  %38 = vperm.xlu0 %37, %v28
  %v39 = vpop.permute.xlu0 %38
  %42 = vset.pattern.permute.xlu0 0
  %43 = vperm.xlu0 %42, %v29
  %v44 = vpop.permute.xlu0 %43
  %47 = vset.pattern.permute.xlu0 0
  %48 = vperm.xlu0 %47, %v30
  %v49 = vpop.permute.xlu0 %48
  %v55 = vunpack.c.l.b16 %v15
  %v56 = vunpack.c.l.b16 %v16
  %v57 = vunpack.c.l.b16 %v17
  %v58 = vunpack.c.l.b16 %v18
  %v59 = vpack.c.b16 %v56, %v55
  %v60 = vpack.c.b16 %v58, %v57
  %v69 = vunpack.c.l.b16 %v19
  %v70 = vunpack.c.l.b16 %v20
  %v71 = vunpack.c.l.b16 %v21
  %v72 = vunpack.c.l.b16 %v22
  %v73 = vunpack.c.l.b16 %v23
  %v74 = vunpack.c.l.b16 %v24
  %v75 = vunpack.c.l.b16 %v25
  %v76 = vunpack.c.l.b16 %v26
  %v77 = vpack.c.b16 %v70, %v69
  %v78 = vpack.c.b16 %v72, %v71
  %v79 = vpack.c.b16 %v74, %v73
  %v80 = vpack.c.b16 %v76, %v75
  %vm85 = vcmask 523264
  %v87 = vsel %vm85, %v59, 0
  %v90 = vsel %vm85, %v60, 0
  %92 = vmatpush.bf16.msra.mxu0 0
  %93 = vmatpush.bf16.msra.mxu0 0
  %94 = vmatpush.bf16.msra.mxu0 0
  %95 = vmatpush.bf16.msra.mxu0 0
  %96 = vmatpush.bf16.msra.mxu0 %v80
  %97 = vmatpush.bf16.msra.mxu0 %v79
  %98 = vmatpush.bf16.msra.mxu0 %v78
  %99 = vmatpush.bf16.msra.mxu0 %v77
  %100 = vmatmul.bf16.gmra.mxu0 %v87
  %v101 = vpop.f32.mrf.mxu0
  %v102 = vadd.f32 %v34, %v101
  %v103 = vpop.f32.mrf.mxu0
  %v104 = vadd.f32 %v39, %v103
  %105 = vmatmul.bf16.gmra.mxu0 %v90
  %v106 = vpop.f32.mrf.mxu0
  %v107 = vadd.f32 %v44, %v106
  %v108 = vpop.f32.mrf.mxu0
  %v109 = vadd.f32 %v49, %v108
  %110 = vdwg.mxu0
  %vm111 = vcmp.ge.f32.partialorder %v102, 0.0
  %vm112 = vcmp.ge.f32.partialorder %v104, 0.0
  %vm113 = vcmp.ge.f32.partialorder %v107, 0.0
  %vm114 = vcmp.ge.f32.partialorder %v109, 0.0
  %v115 = vmul.f32 %v102, 0.25
  %v116 = vmul.f32 %v104, 0.25
  %v117 = vmul.f32 %v107, 0.25
  %v118 = vmul.f32 %v109, 0.25
  %v119 = vsel %vm111, %v102, %v115
  %v120 = vsel %vm112, %v104, %v116
  %v121 = vsel %vm113, %v107, %v117
  %v122 = vsel %vm114, %v109, %v118
  %v123 = vpack.c.bf16 %v119, %v119
  %v124 = vpack.c.bf16 %v120, %v120
  %v125 = vpack.c.bf16 %v121, %v121
  %v126 = vpack.c.bf16 %v122, %v122
  %127 = vst [vmem:[%s3] sm:$0xf] %v123
  %128 = vst [vmem:[%s3 + $0x4] sm:$0xf] %v124
  %129 = vst [vmem:[%s3 + $0x8] sm:$0xf] %v125
  %130 = vst [vmem:[%s3 + $0xc] sm:$0xf] %v126
  // Predicated region
  $region14: #{unet3d_forward.18} parent=0 // pred_check
    _
  $region15: #{unet3d_forward.18} parent=0 // pred_check_branch
    %132 = sbr.rel (0) target = $region17
  $region16: #{unet3d_forward.18} parent=0 // pred_region
    _
  $region17: #{unet3d_forward.18} parent=0 // pred_fallthru
    _
  // Predicated region
  $region18: #{unet3d_forward.18} parent=0 // pred_check
    _
  $region19: #{unet3d_forward.18} parent=0 // pred_check_branch
    %134 = sbr.rel (0) target = $region21
  $region20: #{unet3d_forward.18} parent=0 // pred_region
    _
  $region21: #{unet3d_forward.18} parent=0 // pred_fallthru
    _

// kernel: unet3d_forward.19
$region0: #{unet3d_forward.19}
  #allocation0 [shape = 'u32[]', space=smem, size = 0x4, offset = 0x4, fixed_abs, tag = 'smem constant byte address 0x4 - core index']
  #allocation1 [shape = 'u32[72,128]{1,0:T(1,128)}', space=vmem, size = 0x9000, scoped, tag = 'internal scratch']
  %s0 = inlined_call_operand.vmem [shape: bf16[108,1024], index: 0, kind: input, shape index: {}]
  %s1 = inlined_call_operand.vmem [shape: bf16[4,108], index: 1, kind: input, shape index: {}]
  %s2 = inlined_call_operand.vmem [shape: f32[4,1], index: 2, kind: input, shape index: {}]
  %s3 = inlined_call_operand.vmem [shape: bf16[4,1024], index: 3, kind: input, shape index: {}]
  %s4 = inlined_call_operand.vmem [shape: bf16[1,4], index: 4, kind: input, shape index: {}]
  %s5 = inlined_call_operand.vmem [shape: f32[1,1024], index: 5, kind: output, shape index: {}]
  %s6 = sld [smem:[#allocation0]]
  $region76: #{unet3d_forward.19} parent=0
    _
  %s8 = ssub.s32 1, %s6
  %s9 = scalar_select 0, %s8, %s6
  $region1: #{unet3d_forward.19} parent=0
    #allocation2 [shape = 'u8[229376]{0}', space=vmem, size = 0x38000, scoped, tag = 'input window, operand 0']
    loop: start=0, step=1, limit=4
    $region2: #{unet3d_forward.19} parent=1 // loop_pre_header
      _
    $region3: #{unet3d_forward.19} parent=1 // loop_header
      %s11 = sphi 0, %s15
      %p12 = scmp.ge.s32.totalorder %s11, 4
      %s21 = sphi 0, %s23
      %s24 = sphi 0, %s21
      %s25 = sphi 0, %s24
      %s41 = sphi 0, %s25
      %s45 = sphi 0, %s45
      %s47 = sphi 0, %s45
      %s48 = sphi 0, %s47
      %s62 = sphi 0, %s48
      %s66 = sphi 0, %s66
      %s68 = sphi 0, %s66
      %s69 = sphi 0, %s68
      %s83 = sphi 0, %s69
      %s89 = sphi 0, %s91
      %s92 = sphi 0, %s89
      %s93 = sphi 0, %s92
      %s109 = sphi 0, %s93
      %s113 = sphi 0, %s113
      %s115 = sphi 0, %s113
      %s116 = sphi 0, %s115
      %s130 = sphi 0, %s116
      %s136 = sphi 0, %s138
      %s139 = sphi 0, %s136
      %s140 = sphi 0, %s139
      %s156 = sphi 0, %s140
    $region4: #{unet3d_forward.19} parent=1 // loop_header_branch
      %14 = sbr.rel (%p12) target = $region8
    $region5: #{unet3d_forward.19} parent=1 // loop_body
      %s16 = ssub.s32 %s11, 1
      %s17 = ssub.s32 %s11, 2
      %s18 = sadd.s32 %s11, 1
      %s19 = ssub.s32 %s11, %s18
      %p20 = scmp.eq.s32.totalorder %s19, 0
      %s22 = sadd.s32 %s21, 1
      %s23 = scalar_select %p20, %s21, %s22
      %p26 = pneg %p20
      %p27 = scmp.eq.s32.totalorder %s11, 1
      %p28 = por %p26, %p27
      %p29 = scmp.ne.s32.totalorder %s21, %s24
      %p30 = scmp.eq.s32.totalorder %s11, 0
      %p31 = por %p29, %p30
      %p32 = scmp.ne.s32.totalorder %s21, %s24
      %p33 = scmp.eq.s32.totalorder %s16, 1
      %p34 = por %p32, %p33
      %p35 = scmp.ne.s32.totalorder %s24, %s25
      %p36 = scmp.eq.s32.totalorder %s16, 0
      %p37 = por %p35, %p36
      %p38 = scmp.ne.s32.totalorder %s24, %s25
      %p39 = scmp.eq.s32.totalorder %s17, 1
      %p40 = por %p38, %p39
      %p42 = scmp.ne.s32.totalorder %s25, %s41
      %p43 = scmp.eq.s32.totalorder %s17, 0
      %p44 = por %p42, %p43
      %s46 = sadd.s32 %s45, 1
      %p49 = scmp.eq.s32.totalorder %s11, 1
      %p50 = scmp.ne.s32.totalorder %s45, %s47
      %p51 = scmp.eq.s32.totalorder %s11, 0
      %p52 = por %p50, %p51
      %p53 = scmp.ne.s32.totalorder %s45, %s47
      %p54 = scmp.eq.s32.totalorder %s16, 1
      %p55 = por %p53, %p54
      %p56 = scmp.ne.s32.totalorder %s47, %s48
      %p57 = scmp.eq.s32.totalorder %s16, 0
      %p58 = por %p56, %p57
      %p59 = scmp.ne.s32.totalorder %s47, %s48
      %p60 = scmp.eq.s32.totalorder %s17, 1
      %p61 = por %p59, %p60
      %p63 = scmp.ne.s32.totalorder %s48, %s62
      %p64 = scmp.eq.s32.totalorder %s17, 0
      %p65 = por %p63, %p64
      %s67 = sadd.s32 %s66, 1
      %p70 = scmp.eq.s32.totalorder %s11, 1
      %p71 = scmp.ne.s32.totalorder %s66, %s68
      %p72 = scmp.eq.s32.totalorder %s11, 0
      %p73 = por %p71, %p72
      %p74 = scmp.ne.s32.totalorder %s66, %s68
      %p75 = scmp.eq.s32.totalorder %s16, 1
      %p76 = por %p74, %p75
      %p77 = scmp.ne.s32.totalorder %s68, %s69
      %p78 = scmp.eq.s32.totalorder %s16, 0
      %p79 = por %p77, %p78
      %p80 = scmp.ne.s32.totalorder %s68, %s69
      %p81 = scmp.eq.s32.totalorder %s17, 1
      %p82 = por %p80, %p81
      %p84 = scmp.ne.s32.totalorder %s69, %s83
      %p85 = scmp.eq.s32.totalorder %s17, 0
      %p86 = por %p84, %p85
      %s87 = ssub.s32 %s11, %s18
      %p88 = scmp.eq.s32.totalorder %s87, 0
      %s90 = sadd.s32 %s89, 1
      %s91 = scalar_select %p88, %s89, %s90
      %p94 = pneg %p88
      %p95 = scmp.eq.s32.totalorder %s11, 1
      %p96 = por %p94, %p95
      %p97 = scmp.ne.s32.totalorder %s89, %s92
      %p98 = scmp.eq.s32.totalorder %s11, 0
      %p99 = por %p97, %p98
      %p100 = scmp.ne.s32.totalorder %s89, %s92
      %p101 = scmp.eq.s32.totalorder %s16, 1
      %p102 = por %p100, %p101
      %p103 = scmp.ne.s32.totalorder %s92, %s93
      %p104 = scmp.eq.s32.totalorder %s16, 0
      %p105 = por %p103, %p104
      %p106 = scmp.ne.s32.totalorder %s92, %s93
      %p107 = scmp.eq.s32.totalorder %s17, 1
      %p108 = por %p106, %p107
      %p110 = scmp.ne.s32.totalorder %s93, %s109
      %p111 = scmp.eq.s32.totalorder %s17, 0
      %p112 = por %p110, %p111
      %s114 = sadd.s32 %s113, 1
      %p117 = scmp.eq.s32.totalorder %s11, 1
      %p118 = scmp.ne.s32.totalorder %s113, %s115
      %p119 = scmp.eq.s32.totalorder %s11, 0
      %p120 = por %p118, %p119
      %p121 = scmp.ne.s32.totalorder %s113, %s115
      %p122 = scmp.eq.s32.totalorder %s16, 1
      %p123 = por %p121, %p122
      %p124 = scmp.ne.s32.totalorder %s115, %s116
      %p125 = scmp.eq.s32.totalorder %s16, 0
      %p126 = por %p124, %p125
      %p127 = scmp.ne.s32.totalorder %s115, %s116
      %p128 = scmp.eq.s32.totalorder %s17, 1
      %p129 = por %p127, %p128
      %p131 = scmp.ne.s32.totalorder %s116, %s130
      %p132 = scmp.eq.s32.totalorder %s17, 0
      %p133 = por %p131, %p132
      %s134 = ssub.s32 %s11, %s18
      %p135 = scmp.eq.s32.totalorder %s134, 0
      %s137 = sadd.s32 %s136, 1
      %s138 = scalar_select %p135, %s136, %s137
      %p141 = pneg %p135
      %p142 = scmp.eq.s32.totalorder %s11, 1
      %p143 = por %p141, %p142
      %p144 = scmp.ne.s32.totalorder %s136, %s139
      %p145 = scmp.eq.s32.totalorder %s11, 0
      %p146 = por %p144, %p145
      %p147 = scmp.ne.s32.totalorder %s136, %s139
      %p148 = scmp.eq.s32.totalorder %s16, 1
      %p149 = por %p147, %p148
      %p150 = scmp.ne.s32.totalorder %s139, %s140
      %p151 = scmp.eq.s32.totalorder %s16, 0
      %p152 = por %p150, %p151
      %p153 = scmp.ne.s32.totalorder %s139, %s140
      %p154 = scmp.eq.s32.totalorder %s17, 1
      %p155 = por %p153, %p154
      %p157 = scmp.ne.s32.totalorder %s140, %s156
      %p158 = scmp.eq.s32.totalorder %s17, 0
      %p159 = por %p157, %p158
      %p160 = scmp.le.s32.totalorder 1, %s11
      %p161 = scmp.lt.s32.totalorder %s11, 3
      %p162 = pnand %p160, %p161
      %p163 = pneg %p162
      // Predicated region
      $region9: #{unet3d_forward.19} parent=5 // pred_check
        _
      $region10: #{unet3d_forward.19} parent=5 // pred_check_branch
        %165 = sbr.rel (%p162) target = $region12
      $region11: #{unet3d_forward.19} parent=5 // pred_region
        %s166 = ssub.s32 %s11, 1
        // Predicated region
        $region13: #{unet3d_forward.19} parent=11 // pred_check
          %p167 = pneg %p58
        $region14: #{unet3d_forward.19} parent=11 // pred_check_branch
          %169 = sbr.rel (%p167) target = $region16
        $region15: #{unet3d_forward.19} parent=11 // pred_region
          _
        $region16: #{unet3d_forward.19} parent=11 // pred_fallthru
          _
        // Predicated region
        $region17: #{unet3d_forward.19} parent=11 // pred_check
          %p170 = pneg %p79
        $region18: #{unet3d_forward.19} parent=11 // pred_check_branch
          %172 = sbr.rel (%p170) target = $region20
        $region19: #{unet3d_forward.19} parent=11 // pred_region
          _
        $region20: #{unet3d_forward.19} parent=11 // pred_fallthru
          _
        // Predicated region
        $region21: #{unet3d_forward.19} parent=11 // pred_check
          %p173 = pneg %p126
        $region22: #{unet3d_forward.19} parent=11 // pred_check_branch
          %175 = sbr.rel (%p173) target = $region24
        $region23: #{unet3d_forward.19} parent=11 // pred_region
          _
        $region24: #{unet3d_forward.19} parent=11 // pred_fallthru
          _
      $region12: #{unet3d_forward.19} parent=5 // pred_fallthru
        _
      %p176 = scmp.lt.s32.totalorder %s11, 2
      // Predicated region
      $region25: #{unet3d_forward.19} parent=5 // pred_check
        %p177 = pneg %p176
      $region26: #{unet3d_forward.19} parent=5 // pred_check_branch
        %179 = sbr.rel (%p177) target = $region28
      $region27: #{unet3d_forward.19} parent=5 // pred_region
        // Predicated region
        $region29: #{unet3d_forward.19} parent=27 // pred_check
          %p180 = pneg %p31
        $region30: #{unet3d_forward.19} parent=27 // pred_check_branch
          %182 = sbr.rel (%p180) target = $region32
        $region31: #{unet3d_forward.19} parent=27 // pred_region
          %s183 = sand.u32 %s21, 1
          %s184 = sand.u32 %s21, 1
          %s185 = smul.addr %s184, 224
          %s186 = scalar_lea.vmem [#allocation2], %s185
          %s187 = smul.u32 4, %s11
          %s188 = smul.addr %s187, 4
          %s189 = scalar_lea.vmem %s0, %s188
          // Predicated region
          $region33: #{unet3d_forward.19} parent=31 // pred_check
            _
          $region34: #{unet3d_forward.19} parent=31 // pred_check_branch
            %191 = sbr.rel (0) target = $region36
          $region35: #{unet3d_forward.19} parent=31 // pred_region
            // Predicated region
            $region37: #{unet3d_forward.19} parent=35 // pred_check
              _
            $region38: #{unet3d_forward.19} parent=35 // pred_check_branch
              %193 = sbr.rel (0) target = $region40
            $region39: #{unet3d_forward.19} parent=35 // pred_region
              loop: start=0, step=1, limit=1
              $region41: #{unet3d_forward.19} parent=39 // loop_pre_header
                _
              $region42: #{unet3d_forward.19} parent=39 // loop_header
                %s195 = sphi 0, %s199
                %p196 = scmp.ge.s32.totalorder %s195, 1
                %s200 = sphi %s189, %s189
                %s201 = sphi %s186, %s186
              $region43: #{unet3d_forward.19} parent=39 // loop_header_branch
                %198 = sbr.rel (%p196) target = $region47
              $region44: #{unet3d_forward.19} parent=39 // loop_body
                %v202 = vld [vmem:[%s200] sm:$0xff]
                %203 = vst [vmem:[%s201] sm:$0xff] %v202
                %v204 = vld [vmem:[%s200 + $0x8] sm:$0xff]
                %205 = vst [vmem:[%s201 + $0x8] sm:$0xff] %v204
                %v206 = vld [vmem:[%s200 + $0x20] sm:$0xff]
                %207 = vst [vmem:[%s201 + $0x10] sm:$0xff] %v206
                %v208 = vld [vmem:[%s200 + $0x28] sm:$0xff]
                %209 = vst [vmem:[%s201 + $0x18] sm:$0xff] %v208
                %v210 = vld [vmem:[%s200 + $0x40] sm:$0xff]
                %211 = vst [vmem:[%s201 + $0x20] sm:$0xff] %v210
                %v212 = vld [vmem:[%s200 + $0x48] sm:$0xff]
                %213 = vst [vmem:[%s201 + $0x28] sm:$0xff] %v212
                %v214 = vld [vmem:[%s200 + $0x60] sm:$0xff]
                %215 = vst [vmem:[%s201 + $0x30] sm:$0xff] %v214
                %v216 = vld [vmem:[%s200 + $0x68] sm:$0xff]
                %217 = vst [vmem:[%s201 + $0x38] sm:$0xff] %v216
                %v218 = vld [vmem:[%s200 + $0x80] sm:$0xff]
                %219 = vst [vmem:[%s201 + $0x40] sm:$0xff] %v218
                %v220 = vld [vmem:[%s200 + $0x88] sm:$0xff]
                %221 = vst [vmem:[%s201 + $0x48] sm:$0xff] %v220
                %v222 = vld [vmem:[%s200 + $0xa0] sm:$0xff]
                %223 = vst [vmem:[%s201 + $0x50] sm:$0xff] %v222
                %v224 = vld [vmem:[%s200 + $0xa8] sm:$0xff]
                %225 = vst [vmem:[%s201 + $0x58] sm:$0xff] %v224
                %v226 = vld [vmem:[%s200 + $0xc0] sm:$0xff]
                %227 = vst [vmem:[%s201 + $0x60] sm:$0xff] %v226
                %v228 = vld [vmem:[%s200 + $0xc8] sm:$0xff]
                %229 = vst [vmem:[%s201 + $0x68] sm:$0xff] %v228
                %v230 = vld [vmem:[%s200 + $0xe0] sm:$0xff]
                %231 = vst [vmem:[%s201 + $0x70] sm:$0xff] %v230
                %v232 = vld [vmem:[%s200 + $0xe8] sm:$0xff]
                %233 = vst [vmem:[%s201 + $0x78] sm:$0xff] %v232
                %v234 = vld [vmem:[%s200 + $0x100] sm:$0xff]
                %235 = vst [vmem:[%s201 + $0x80] sm:$0xff] %v234
                %v236 = vld [vmem:[%s200 + $0x108] sm:$0xff]
                %237 = vst [vmem:[%s201 + $0x88] sm:$0xff] %v236
                %v238 = vld [vmem:[%s200 + $0x120] sm:$0xff]
                %239 = vst [vmem:[%s201 + $0x90] sm:$0xff] %v238
                %v240 = vld [vmem:[%s200 + $0x128] sm:$0xff]
                %241 = vst [vmem:[%s201 + $0x98] sm:$0xff] %v240
                %v242 = vld [vmem:[%s200 + $0x140] sm:$0xff]
                %243 = vst [vmem:[%s201 + $0xa0] sm:$0xff] %v242
                %v244 = vld [vmem:[%s200 + $0x148] sm:$0xff]
                %245 = vst [vmem:[%s201 + $0xa8] sm:$0xff] %v244
                %v246 = vld [vmem:[%s200 + $0x160] sm:$0xff]
                %247 = vst [vmem:[%s201 + $0xb0] sm:$0xff] %v246
                %v248 = vld [vmem:[%s200 + $0x168] sm:$0xff]
                %249 = vst [vmem:[%s201 + $0xb8] sm:$0xff] %v248
                %v250 = vld [vmem:[%s200 + $0x180] sm:$0xff]
                %251 = vst [vmem:[%s201 + $0xc0] sm:$0xff] %v250
                %v252 = vld [vmem:[%s200 + $0x188] sm:$0xff]
                %253 = vst [vmem:[%s201 + $0xc8] sm:$0xff] %v252
                %v254 = vld [vmem:[%s200 + $0x1a0] sm:$0xff]
                %255 = vst [vmem:[%s201 + $0xd0] sm:$0xff] %v254
                %v256 = vld [vmem:[%s200 + $0x1a8] sm:$0xff]
                %257 = vst [vmem:[%s201 + $0xd8] sm:$0xff] %v256
              $region45: #{unet3d_forward.19} parent=39 // loop_footer
                %s199 = sadd.s32 1, %s195
              $region46: #{unet3d_forward.19} parent=39 // loop_footer_branch
                %194 = sbr.rel target = $region42
              $region47: #{unet3d_forward.19} parent=39 // loop_exit
                _
            $region40: #{unet3d_forward.19} parent=35 // pred_fallthru
              _
            // Predicated region
            $region48: #{unet3d_forward.19} parent=35 // pred_check
              _
            $region49: #{unet3d_forward.19} parent=35 // pred_check_branch
              %259 = sbr.rel target = $region51
            $region50: #{unet3d_forward.19} parent=35 // pred_region
              _
            $region51: #{unet3d_forward.19} parent=35 // pred_fallthru
              _
          $region36: #{unet3d_forward.19} parent=31 // pred_fallthru
            _
          %260 = vnop
        $region32: #{unet3d_forward.19} parent=27 // pred_fallthru
          _
        // Predicated region
        $region52: #{unet3d_forward.19} parent=27 // pred_check
          %p261 = pneg %p99
        $region53: #{unet3d_forward.19} parent=27 // pred_check_branch
          %263 = sbr.rel (%p261) target = $region55
        $region54: #{unet3d_forward.19} parent=27 // pred_region
          %s264 = smul.u32 4, %s11
          %p265 = scmp.lt.s32.totalorder %s264, 7
          %s266 = scalar_select %p265, %s264, 7
          %s267 = smul.addr %s266, 2
          %s268 = scalar_lea.vmem %s3, %s267
          %s269 = smul.u32 4, %s11
        $region55: #{unet3d_forward.19} parent=27 // pred_fallthru
          _
      $region28: #{unet3d_forward.19} parent=5 // pred_fallthru
        _
      %p270 = scmp.le.s32.totalorder 1, %s11
      %p271 = scmp.lt.s32.totalorder %s11, 3
      %p272 = pnand %p270, %p271
      %p273 = pneg %p272
      // Predicated region
      $region56: #{unet3d_forward.19} parent=5 // pred_check
        _
      $region57: #{unet3d_forward.19} parent=5 // pred_check_branch
        %275 = sbr.rel (%p272) target = $region59
      $region58: #{unet3d_forward.19} parent=5 // pred_region
        %s276 = ssub.s32 %s11, 1
        %s277 = sand.u32 %s24, 1
        %s278 = sand.u32 %s24, 1
        %s279 = smul.addr %s278, 224
        %s280 = scalar_lea.vmem [#allocation2], %s279
        // Predicated region
        $region60: #{unet3d_forward.19} parent=58 // pred_check
          %p281 = pneg %p37
        $region61: #{unet3d_forward.19} parent=58 // pred_check_branch
          %283 = sbr.rel (%p281) target = $region63
        $region62: #{unet3d_forward.19} parent=58 // pred_region
          _
        $region63: #{unet3d_forward.19} parent=58 // pred_fallthru
          _
        %s284 = sand.u32 %s24, 1
        %s285 = sand.u32 %s24, 1
        %s286 = smul.addr %s285, 224
        %s287 = scalar_lea.vmem [#allocation2], %s286
        %p288 = pneg %p37
        %p289 = pneg %p34
        %p290 = pneg %p58
        %p291 = pneg %p55
        %p292 = pneg %p79
        %p293 = pneg %p76
        %s294 = smul.u32 4, %s16
        %p295 = scmp.lt.s32.totalorder %s294, 7
        %s296 = scalar_select %p295, %s294, 7
        %s297 = smul.addr %s296, 2
        %s298 = scalar_lea.vmem %s3, %s297
        %p299 = pneg %p105
        %p300 = pneg %p102
        %p301 = pneg %p126
        %p302 = pneg %p123
        %p303 = pneg %p152
        %p304 = pneg %p149
        %s305 = smul.u32 4, %s16
        %p306 = scmp.lt.s32.totalorder %s305, 7
        %s307 = scalar_select %p306, %s305, 7
        %s308 = scalar_lea.vmem %s5, %s307
        %s309 = smul.u32 4, %s16
        %s310 = smul.u32 4, %s16
        %p311 = scmp.lt.s32.totalorder %s310, 7
        %s312 = scalar_select %p311, %s310, 7
        %s313 = smul.addr %s312, 2
        %s314 = scalar_lea.vmem %s3, %s313
        %s315 = smul.u32 4, %s16
        %s316 = smul.u32 4, %s16
        %p317 = scmp.lt.s32.totalorder %s316, 7
        %s318 = scalar_select %p317, %s316, 7
        %s319 = scalar_lea.vmem %s5, %s318
        %s320 = smul.u32 4, %s16
        %v322 = vld [vmem:[%s1] sm:$0x3]
        %v323 = vld [vmem:[%s280] sm:$0xff]
        %v324 = vld [vmem:[%s280 + $0x8] sm:$0xff]
        %v325 = vld [vmem:[%s280 + $0x10] sm:$0xff]
        %v326 = vld [vmem:[%s280 + $0x18] sm:$0xff]
        %v327 = vld [vmem:[%s280 + $0x20] sm:$0xff]
        %v328 = vld [vmem:[%s280 + $0x28] sm:$0xff]
        %v329 = vld [vmem:[%s280 + $0x30] sm:$0xff]
        %v330 = vld [vmem:[%s280 + $0x38] sm:$0xff]
        %v331 = vld [vmem:[%s280 + $0x40] sm:$0xff]
        %v332 = vld [vmem:[%s280 + $0x48] sm:$0xff]
        %v333 = vld [vmem:[%s280 + $0x50] sm:$0xff]
        %v334 = vld [vmem:[%s280 + $0x58] sm:$0xff]
        %v335 = vld [vmem:[%s280 + $0x60] sm:$0xff]
        %v336 = vld [vmem:[%s280 + $0x68] sm:$0xff]
        %v337 = vld [vmem:[%s280 + $0x70] sm:$0xff]
        %v338 = vld [vmem:[%s280 + $0x78] sm:$0xff]
        %v339 = vld [vmem:[%s280 + $0x80] sm:$0xff]
        %v340 = vld [vmem:[%s280 + $0x88] sm:$0xff]
        %v341 = vld [vmem:[%s280 + $0x90] sm:$0xff]
        %v342 = vld [vmem:[%s280 + $0x98] sm:$0xff]
        %v343 = vld [vmem:[%s280 + $0xa0] sm:$0xff]
        %v344 = vld [vmem:[%s280 + $0xa8] sm:$0xff]
        %v345 = vld [vmem:[%s280 + $0xb0] sm:$0xff]
        %v346 = vld [vmem:[%s280 + $0xb8] sm:$0xff]
        %v347 = vld [vmem:[%s280 + $0xc0] sm:$0xff]
        %v348 = vld [vmem:[%s280 + $0xc8] sm:$0xff]
        %v349 = vld [vmem:[%s280 + $0xd0] sm:$0x33]
        %v350 = vld [vmem:[%s280 + $0xd8] sm:$0x33]
        %v351 = vld [vmem:[%s2] sm:$0xf]
        %353 = vset.pattern.permute.xlu0 0
        %354 = vperm.xlu0 %353, %v351
        %v355 = vpop.permute.xlu0 %354
        %v385 = vunpack.c.l.b16 %v323
        %v386 = vunpack.c.h.b16 %v323
        %v387 = vunpack.c.l.b16 %v324
        %v388 = vunpack.c.h.b16 %v324
        %v389 = vunpack.c.l.b16 %v325
        %v390 = vunpack.c.h.b16 %v325
        %v391 = vunpack.c.l.b16 %v326
        %v392 = vunpack.c.h.b16 %v326
        %v393 = vunpack.c.l.b16 %v327
        %v394 = vunpack.c.h.b16 %v327
        %v395 = vunpack.c.l.b16 %v328
        %v396 = vunpack.c.h.b16 %v328
        %v397 = vunpack.c.l.b16 %v329
        %v398 = vunpack.c.h.b16 %v329
        %v399 = vunpack.c.l.b16 %v330
        %v400 = vunpack.c.h.b16 %v330
        %v401 = vunpack.c.l.b16 %v331
        %v402 = vunpack.c.h.b16 %v331
        %v403 = vunpack.c.l.b16 %v332
        %v404 = vunpack.c.h.b16 %v332
        %v405 = vunpack.c.l.b16 %v333
        %v406 = vunpack.c.h.b16 %v333
        %v407 = vunpack.c.l.b16 %v334
        %v408 = vunpack.c.h.b16 %v334
        %v409 = vunpack.c.l.b16 %v335
        %v410 = vunpack.c.h.b16 %v335
        %v411 = vunpack.c.l.b16 %v336
        %v412 = vunpack.c.h.b16 %v336
        %v413 = vunpack.c.l.b16 %v337
        %v414 = vunpack.c.h.b16 %v337
        %v415 = vunpack.c.l.b16 %v338
        %v416 = vunpack.c.h.b16 %v338
        %v417 = vunpack.c.l.b16 %v339
        %v418 = vunpack.c.h.b16 %v339
        %v419 = vunpack.c.l.b16 %v340
        %v420 = vunpack.c.h.b16 %v340
        %v421 = vunpack.c.l.b16 %v341
        %v422 = vunpack.c.h.b16 %v341
        %v423 = vunpack.c.l.b16 %v342
        %v424 = vunpack.c.h.b16 %v342
        %v425 = vunpack.c.l.b16 %v343
        %v426 = vunpack.c.h.b16 %v343
        %v427 = vunpack.c.l.b16 %v344
        %v428 = vunpack.c.h.b16 %v344
        %v429 = vunpack.c.l.b16 %v345
        %v430 = vunpack.c.h.b16 %v345
        %v431 = vunpack.c.l.b16 %v346
        %v432 = vunpack.c.h.b16 %v346
        %v433 = vunpack.c.l.b16 %v347
        %v434 = vunpack.c.h.b16 %v347
        %v435 = vunpack.c.l.b16 %v348
        %v436 = vunpack.c.h.b16 %v348
        %v437 = vunpack.c.l.b16 %v349
        %v438 = vunpack.c.h.b16 %v349
        %v439 = vunpack.c.l.b16 %v350
        %v440 = vunpack.c.h.b16 %v350
        %v441 = vpack.c.b16 %v389, %v385
        %v442 = vpack.c.b16 %v390, %v386
        %v443 = vpack.c.b16 %v391, %v387
        %v444 = vpack.c.b16 %v392, %v388
        %v445 = vpack.c.b16 %v397, %v393
        %v446 = vpack.c.b16 %v398, %v394
        %v447 = vpack.c.b16 %v399, %v395
        %v448 = vpack.c.b16 %v400, %v396
        %v449 = vpack.c.b16 %v405, %v401
        %v450 = vpack.c.b16 %v406, %v402
        %v451 = vpack.c.b16 %v407, %v403
        %v452 = vpack.c.b16 %v408, %v404
        %v453 = vpack.c.b16 %v413, %v409
        %v454 = vpack.c.b16 %v414, %v410
        %v455 = vpack.c.b16 %v415, %v411
        %v456 = vpack.c.b16 %v416, %v412
        %v457 = vpack.c.b16 %v421, %v417
        %v458 = vpack.c.b16 %v422, %v418
        %v459 = vpack.c.b16 %v423, %v419
        %v460 = vpack.c.b16 %v424, %v420
        %v461 = vpack.c.b16 %v429, %v425
        %v462 = vpack.c.b16 %v430, %v426
        %v463 = vpack.c.b16 %v431, %v427
        %v464 = vpack.c.b16 %v432, %v428
        %v465 = vpack.c.b16 %v437, %v433
        %v466 = vpack.c.b16 %v438, %v434
        %v467 = vpack.c.b16 %v439, %v435
        %v468 = vpack.c.b16 %v440, %v436
        %vm493 = vcmask 883712
        %v495 = vsel %vm493, %v322, 0
        %vm497 = vcmask 1045504
        %v499 = vsel %vm497, %v465, 0
        %v502 = vsel %vm497, %v466, 0
        %v505 = vsel %vm497, %v467, 0
        %v508 = vsel %vm497, %v468, 0
        %510 = vmatpush.bf16.msra.mxu0 0
        %511 = vmatpush.bf16.msra.mxu0 %v499
        %512 = vmatpush.bf16.msra.mxu0 %v461
        %513 = vmatpush.bf16.msra.mxu0 %v457
        %514 = vmatpush.bf16.msra.mxu0 %v453
        %515 = vmatpush.bf16.msra.mxu0 %v449
        %516 = vmatpush.bf16.msra.mxu0 %v445
        %517 = vmatpush.bf16.msra.mxu0 %v441
        %518 = vmatmul.bf16.gmra.mxu0 %v495
        %v519 = vpop.f32.mrf.mxu0
        %v520 = vadd.f32 %v355, %v519
        %v521 = vpop.f32.mrf.mxu0
        %522 = vdwg.mxu0
        %523 = vmatpush.bf16.msra.mxu0 0
        %524 = vmatpush.bf16.msra.mxu0 %v502
        %525 = vmatpush.bf16.msra.mxu0 %v462
        %526 = vmatpush.bf16.msra.mxu0 %v458
        %527 = vmatpush.bf16.msra.mxu0 %v454
        %528 = vmatpush.bf16.msra.mxu0 %v450
        %529 = vmatpush.bf16.msra.mxu0 %v446
        %530 = vmatpush.bf16.msra.mxu0 %v442
        %531 = vmatmul.bf16.gmra.mxu0 %v495
        %v532 = vpop.f32.mrf.mxu0
        %v533 = vadd.f32 %v355, %v532
        %v534 = vpop.f32.mrf.mxu0
        %535 = vdwg.mxu0
        %536 = vmatpush.bf16.msra.mxu0 0
        %537 = vmatpush.bf16.msra.mxu0 %v505
        %538 = vmatpush.bf16.msra.mxu0 %v463
        %539 = vmatpush.bf16.msra.mxu0 %v459
        %540 = vmatpush.bf16.msra.mxu0 %v455
        %541 = vmatpush.bf16.msra.mxu0 %v451
        %542 = vmatpush.bf16.msra.mxu0 %v447
        %543 = vmatpush.bf16.msra.mxu0 %v443
        %544 = vmatmul.bf16.gmra.mxu0 %v495
        %v545 = vpop.f32.mrf.mxu0
        %v546 = vadd.f32 %v355, %v545
        %v547 = vpop.f32.mrf.mxu0
        %548 = vdwg.mxu0
        %549 = vmatpush.bf16.msra.mxu0 0
        %550 = vmatpush.bf16.msra.mxu0 %v508
        %551 = vmatpush.bf16.msra.mxu0 %v464
        %552 = vmatpush.bf16.msra.mxu0 %v460
        %553 = vmatpush.bf16.msra.mxu0 %v456
        %554 = vmatpush.bf16.msra.mxu0 %v452
        %555 = vmatpush.bf16.msra.mxu0 %v448
        %556 = vmatpush.bf16.msra.mxu0 %v444
        %557 = vmatmul.bf16.gmra.mxu0 %v495
        %v558 = vpop.f32.mrf.mxu0
        %v559 = vadd.f32 %v355, %v558
        %v560 = vpop.f32.mrf.mxu0
        %561 = vdwg.mxu0
        %vm562 = vcmp.ge.f32.partialorder %v520, 0.0
        %vm563 = vcmp.ge.f32.partialorder %v533, 0.0
        %vm564 = vcmp.ge.f32.partialorder %v546, 0.0
        %vm565 = vcmp.ge.f32.partialorder %v559, 0.0
        %v566 = vmul.f32 %v520, 0.25
        %v567 = vmul.f32 %v533, 0.25
        %v568 = vmul.f32 %v546, 0.25
        %v569 = vmul.f32 %v559, 0.25
        %v570 = vsel %vm562, %v520, %v566
        %v571 = vsel %vm563, %v533, %v567
        %v572 = vsel %vm564, %v546, %v568
        %v573 = vsel %vm565, %v559, %v569
        %v574 = vld [vmem:[%s314] sm:$0xff]
        %v575 = vunpack.c.l.bf16 %v574
        %v576 = vunpack.c.h.bf16 %v574
        %579 = vst [vmem:[#allocation1] ss:$2 sm:$0xff] %v575
        %s580 = scalar_lea.vmem [#allocation1], 16
        %581 = vst [vmem:[%s580] ss:$2 sm:$0xff] %v576
        %v582 = vld.sshfl [vmem:[#allocation1] sm:$0xff pattern:$0x75316420]
        %v583 = vld.sshfl [vmem:[#allocation1 + $0x8] sm:$0xff pattern:$0x75316420]
        %v584 = vld.sshfl [vmem:[#allocation1 + $0x10] sm:$0xff pattern:$0x75316420]
        %v585 = vld.sshfl [vmem:[#allocation1 + $0x18] sm:$0xff pattern:$0x75316420]
        %v590 = vadd.f32 %v570, %v582
        %v591 = vadd.f32 %v571, %v583
        %v592 = vadd.f32 %v572, %v584
        %v593 = vadd.f32 %v573, %v585
        %v594 = vld [vmem:[%s4] sm:$0x1]
        %v595 = vpack.c.bf16 %v590, %v590
        %v596 = vpack.c.bf16 %v591, %v591
        %v597 = vpack.c.bf16 %v592, %v592
        %v598 = vpack.c.bf16 %v593, %v593
        %vm599 = vcmask 31744
        %v601 = vsel %vm599, %v594, 0
        %vm603 = vcmask 1041408
        %v605 = vsel %vm603, %v595, 0
        %v608 = vsel %vm603, %v596, 0
        %v611 = vsel %vm603, %v597, 0
        %v614 = vsel %vm603, %v598, 0
        %616 = vmatpush.bf16.msra.mxu0 0
        %617 = vmatpush.bf16.msra.mxu0 0
        %618 = vmatpush.bf16.msra.mxu0 0
        %619 = vmatpush.bf16.msra.mxu0 0
        %620 = vmatpush.bf16.msra.mxu0 0
        %621 = vmatpush.bf16.msra.mxu0 0
        %622 = vmatpush.bf16.msra.mxu0 0
        %623 = vmatpush.bf16.msra.mxu0 %v605
        %624 = vmatmul.bf16.gmra.mxu0 %v601
        %v625 = vpop.f32.mrf.mxu0
        %v626 = vadd.f32 0.0, %v625
        %v627 = vpop.f32.mrf.mxu0
        %628 = vdwg.mxu0
        %629 = vmatpush.bf16.msra.mxu0 0
        %630 = vmatpush.bf16.msra.mxu0 0
        %631 = vmatpush.bf16.msra.mxu0 0
        %632 = vmatpush.bf16.msra.mxu0 0
        %633 = vmatpush.bf16.msra.mxu0 0
        %634 = vmatpush.bf16.msra.mxu0 0
        %635 = vmatpush.bf16.msra.mxu0 0
        %636 = vmatpush.bf16.msra.mxu0 %v608
        %637 = vmatmul.bf16.gmra.mxu0 %v601
        %v638 = vpop.f32.mrf.mxu0
        %v639 = vadd.f32 0.0, %v638
        %v640 = vpop.f32.mrf.mxu0
        %641 = vdwg.mxu0
        %642 = vmatpush.bf16.msra.mxu0 0
        %643 = vmatpush.bf16.msra.mxu0 0
        %644 = vmatpush.bf16.msra.mxu0 0
        %645 = vmatpush.bf16.msra.mxu0 0
        %646 = vmatpush.bf16.msra.mxu0 0
        %647 = vmatpush.bf16.msra.mxu0 0
        %648 = vmatpush.bf16.msra.mxu0 0
        %649 = vmatpush.bf16.msra.mxu0 %v611
        %650 = vmatmul.bf16.gmra.mxu0 %v601
        %v651 = vpop.f32.mrf.mxu0
        %v652 = vadd.f32 0.0, %v651
        %v653 = vpop.f32.mrf.mxu0
        %654 = vdwg.mxu0
        %655 = vmatpush.bf16.msra.mxu0 0
        %656 = vmatpush.bf16.msra.mxu0 0
        %657 = vmatpush.bf16.msra.mxu0 0
        %658 = vmatpush.bf16.msra.mxu0 0
        %659 = vmatpush.bf16.msra.mxu0 0
        %660 = vmatpush.bf16.msra.mxu0 0
        %661 = vmatpush.bf16.msra.mxu0 0
        %662 = vmatpush.bf16.msra.mxu0 %v614
        %663 = vmatmul.bf16.gmra.mxu0 %v601
        %v664 = vpop.f32.mrf.mxu0
        %v665 = vadd.f32 0.0, %v664
        %v666 = vpop.f32.mrf.mxu0
        %667 = vdwg.mxu0
        %v672 = vrot.slane %v639, 7
        %v673 = vrot.slane %v652, 6
        %v674 = vrot.slane %v665, 5
        %vm675 = vcmask 1040384
        %v676 = vsel %vm675, %v626, %v672
        %vm677 = vcmask 1042434
        %v678 = vsel %vm677, %v673, %v674
        %v679 = vsel %vm603, %v676, %v678
        %v681 = vlaneseq
        %vm682 = vcmp.ge.s32.totalorder %v681, 0
        %vm683 = vcmp.lt.s32.totalorder %v681, 512
        %vm684 = vmand %vm682, %vm683
        %685 = vst.msk [vmem:[%s319] sm:$0xf] %vm684, %v679
        %s686 = smul.u32 4, %s16
        %p687 = scmp.lt.s32.totalorder %s686, 7
        %s688 = scalar_select %p687, %s686, 7
        %s689 = scalar_lea.vmem %s5, %s688
        // Predicated region
        $region64: #{unet3d_forward.19} parent=58 // pred_check
          %p690 = pneg %p149
        $region65: #{unet3d_forward.19} parent=58 // pred_check_branch
          %692 = sbr.rel (%p690) target = $region67
        $region66: #{unet3d_forward.19} parent=58 // pred_region
          %s693 = smul.u32 4, %s16
        $region67: #{unet3d_forward.19} parent=58 // pred_fallthru
          _
      $region59: #{unet3d_forward.19} parent=5 // pred_fallthru
        _
      %p694 = scmp.le.s32.totalorder 2, %s11
      // Predicated region
      $region68: #{unet3d_forward.19} parent=5 // pred_check
        %p695 = pneg %p694
      $region69: #{unet3d_forward.19} parent=5 // pred_check_branch
        %697 = sbr.rel (%p695) target = $region71
      $region70: #{unet3d_forward.19} parent=5 // pred_region
        %s698 = ssub.s32 %s11, 2
        // Predicated region
        $region72: #{unet3d_forward.19} parent=70 // pred_check
          %p699 = pneg %p155
        $region73: #{unet3d_forward.19} parent=70 // pred_check_branch
          %701 = sbr.rel (%p699) target = $region75
        $region74: #{unet3d_forward.19} parent=70 // pred_region
          %s702 = smul.u32 4, %s17
          %p703 = scmp.lt.s32.totalorder %s702, 7
          %s704 = scalar_select %p703, %s702, 7
          %s705 = scalar_lea.vmem %s5, %s704
        $region75: #{unet3d_forward.19} parent=70 // pred_fallthru
          _
      $region71: #{unet3d_forward.19} parent=5 // pred_fallthru
        _
    $region6: #{unet3d_forward.19} parent=1 // loop_footer
      %s15 = sadd.s32 1, %s11
    $region7: #{unet3d_forward.19} parent=1 // loop_footer_branch
      %10 = sbr.rel target = $region3
    $region8: #{unet3d_forward.19} parent=1 // loop_exit
      _

</llo_original>
